<compile_context>
chip_gen: v5e
topology: v5e:2x2
jax: 0.10.0
libtpu: 0.0.40
codegen_flags: <defaults>
</compile_context>

<pallas_src>
import jax
import jax.numpy as jnp
from jax.experimental import pallas as pl
from jax.experimental.pallas import tpu as pltpu

# ----------------------------- config ---------------------------------------
B = 2
C_IN = 3
IMG = 56
PATCH = 14
GRID = IMG // PATCH          # 4
NPATCH = GRID * GRID         # 16
D = 32                       # hidden dim
HEADS = 2
DH = D // HEADS              # 16
DEPTH = 4
NREG = 4                     # register tokens
MLP = 4 * D                  # 128
EPS = 1e-6
T = NPATCH + 1 + NREG        # patches + cls + registers = 21 (patches FIRST)
K_IN = C_IN * PATCH * PATCH  # 588 (im2col feature dim)
K_PAD = 640                  # 5 * 128, zero-padded contraction dim
SCALE = DH ** -0.5


# ----------------------------- in-kernel helpers -----------------------------
def _gelu_tanh(x):
    # TODO(synk): PyTorch nn.GELU() default is exact erf GELU; lax.erf has no
    # Pallas-TPU lowering here, so the tanh approximation is used (EUP tanh,
    # <~3e-3 abs deviation) per the perf review.
    c = 0.7978845608028654  # sqrt(2/pi)
    return 0.5 * x * (1.0 + jnp.tanh(c * (x + 0.044715 * (x * x * x))))


def _layernorm(x, g, b):
    # f32 throughout (only MXU operands are bf16).
    mu = jnp.mean(x, axis=-1, keepdims=True)
    xc = x - mu
    var = jnp.mean(xc * xc, axis=-1, keepdims=True)
    return xc * jax.lax.rsqrt(var + EPS) * g + b


# ----------------------------- fused model kernel ----------------------------
def _dinov2_fused_kernel(xs_ref, base_ref, patch_w_ref, qkv_w_ref, proj_w_ref,
                         fc1_w_ref, fc2_w_ref, vec_ref, out_ref,
                         xbuf_ref, obuf_ref):
    # Patch embed: Conv2d(k=14,s=14) as a bf16 matmul on the im2col rows of THIS
    # sample (f32 accumulation). cls / register / pos-embed / conv bias were
    # pre-folded into the additive `base` slab.
    pe = jnp.dot(xs_ref[...], patch_w_ref[...],
                 preferred_element_type=jnp.float32)           # (NPATCH, D) f32

    # Assemble tokens (rows: [patches | cls | registers]) — sublane-aligned writes.
    xbuf_ref[0:NPATCH, :] = base_ref[0:NPATCH, :] + pe
    xbuf_ref[NPATCH:T, :] = base_ref[NPATCH:T, :]
    x = xbuf_ref[...]                                          # (T, D) f32

    for l in range(DEPTH):                                     # statically unrolled
        r0 = vec_ref[4 * l + 0:4 * l + 1, :]                   # (1, 128)
        r1 = vec_ref[4 * l + 1:4 * l + 2, :]
        r2 = vec_ref[4 * l + 2:4 * l + 3, :]
        r3 = vec_ref[4 * l + 3:4 * l + 4, :]
        n1_w, n1_b = r0[:, 0:D], r0[:, D:2 * D]
        n2_w, n2_b = r0[:, 2 * D:3 * D], r0[:, 3 * D:4 * D]
        qkv_b = r1[:, 0:3 * D]          # SCALE already folded into the q part
        proj_b = r1[:, 3 * D:4 * D]     # LayerScale ls1 folded
        fc1_b = r2                      # (1, MLP)
        fc2_b = r3[:, 0:D]              # LayerScale ls2 folded
        norm_w, norm_b = r3[:, D:2 * D], r3[:, 2 * D:3 * D]

        # ---------------- attention branch (pre-norm) ----------------
        h = _layernorm(x, n1_w, n1_b)
        qkv = jnp.dot(h.astype(jnp.bfloat16), qkv_w_ref[l],
                      preferred_element_type=jnp.float32) + qkv_b     # (T, 3D) f32
        for hd in range(HEADS):
            q = qkv[:, hd * DH:(hd + 1) * DH].astype(jnp.bfloat16)
            k = qkv[:, D + hd * DH:D + (hd + 1) * DH].astype(jnp.bfloat16)
            v = qkv[:, 2 * D + hd * DH:2 * D + (hd + 1) * DH].astype(jnp.bfloat16)
            # scores: contract last dims (no in-kernel transpose of k)
            s = jax.lax.dot_general(q, k, (((1,), (1,)), ((), ())),
                                    preferred_element_type=jnp.float32)  # (T, T)
            m = jnp.max(s, axis=-1, keepdims=True)
            p = jnp.exp(s - m)
            # approx reciprocal (EUP): ~1e-3 rel-error class on the softmax denom.
            p = p * pl.reciprocal(jnp.sum(p, axis=-1, keepdims=True), approx=True)
            obuf_ref[:, hd * DH:(hd + 1) * DH] = jnp.dot(
                p.astype(jnp.bfloat16), v, preferred_element_type=jnp.float32)
        # merged heads -> ONE proj matmul + one residual add
        x = x + proj_b + jnp.dot(obuf_ref[...].astype(jnp.bfloat16), proj_w_ref[l],
                                 preferred_element_type=jnp.float32)

        # ---------------- MLP branch (pre-norm) ----------------
        h = _layernorm(x, n2_w, n2_b)
        h = jnp.dot(h.astype(jnp.bfloat16), fc1_w_ref[l],
                    preferred_element_type=jnp.float32) + fc1_b
        h = _gelu_tanh(h)
        x = x + fc2_b + jnp.dot(h.astype(jnp.bfloat16), fc2_w_ref[l],
                                preferred_element_type=jnp.float32)

        # get_intermediate_layers(norm=True): final LayerNorm of this block's
        # output, written into the lane-dense (T, DEPTH*D) output slab.
        out_ref[:, l * D:(l + 1) * D] = _layernorm(x, norm_w, norm_b)


# ----------------------------- forward ---------------------------------------
def dinov2_backbone_forward(x_nchw, params):
    """Equivalent of DINOv2Backbone.forward: list of 4 NCHW feature maps."""
    b = x_nchw.shape[0]

    # ---- cheap XLA-side prep (im2col + constant folding of params) ----
    # im2col for Conv2d(3, D, kernel=14, stride=14), patch order row-major (i, j);
    # only patch rows are shipped (cls/registers come purely from `base`).
    p = x_nchw.reshape(b, C_IN, GRID, PATCH, GRID, PATCH)
    p = p.transpose(0, 2, 4, 1, 3, 5).reshape(b, NPATCH, K_IN)
    xs = jnp.pad(p, ((0, 0), (0, 0), (0, K_PAD - K_IN))).astype(jnp.bfloat16)

    patch_w = jnp.zeros((K_PAD, D), jnp.float32).at[:K_IN, :].set(params["patch_w"])
    patch_w = patch_w.astype(jnp.bfloat16)

    # additive token base, identical for every sample. Row layout (permutation of
    # the original sequence — full attention is permutation-equivariant):
    #   rows 0..15  : patch tokens  = pos[1:] + conv bias
    #   row  16     : cls token     = cls + pos[0]
    #   rows 17..20 : register tokens (no pos)  [DINOv2 adds pos before registers]
    base = jnp.concatenate([
        params["pos"][0, 1:] + params["patch_b"][None, :],
        params["cls"][0] + params["pos"][0, :1],
        params["reg"][0],
    ], axis=0).astype(jnp.float32)                              # (T, D)

    blocks = params["blocks"]

    def stack(name):
        return jnp.stack([blk[name] for blk in blocks])

    # bf16 weight stacks (f32 accumulation in-kernel); SCALE folded into q cols.
    qkv_w = stack("qkv_w").at[:, :, :D].multiply(SCALE).astype(jnp.bfloat16)
    proj_w = stack("proj_w").astype(jnp.bfloat16)    # LayerScale ls1 folded at init
    fc1_w = stack("fc1_w").astype(jnp.bfloat16)
    fc2_w = stack("fc2_w").astype(jnp.bfloat16)      # LayerScale ls2 folded at init

    # one lane-dense (DEPTH*4, 128) slab for all small per-block vectors
    def row128(*pieces):
        r = jnp.concatenate([jnp.asarray(x, jnp.float32).reshape(-1) for x in pieces])
        return jnp.pad(r, (0, 128 - r.shape[0]))

    rows = []
    for blk in blocks:
        qkv_b = blk["qkv_b"].at[:D].multiply(SCALE)             # SCALE folded
        rows.append(row128(blk["n1_w"], blk["n1_b"], blk["n2_w"], blk["n2_b"]))
        rows.append(row128(qkv_b, blk["proj_b"]))
        rows.append(row128(blk["fc1_b"]))
        rows.append(row128(blk["fc2_b"], params["norm_w"], params["norm_b"]))
    vec = jnp.stack(rows)                                       # (DEPTH*4, 128) f32

    # ---- ONE pallas_call, grid over batch ("parallel" -> both TCs on v7x) ----
    out = pl.pallas_call(
        _dinov2_fused_kernel,
        out_shape=jax.ShapeDtypeStruct((b, T, DEPTH * D), jnp.float32),
        grid_spec=pltpu.PrefetchScalarGridSpec(
            num_scalar_prefetch=0,
            grid=(b,),
            in_specs=[
                pl.BlockSpec((None, NPATCH, K_PAD), lambda i: (i, 0, 0)),  # xs
                pl.BlockSpec((T, D), lambda i: (0, 0)),                    # base
                pl.BlockSpec((K_PAD, D), lambda i: (0, 0)),                # patch_w
                pl.BlockSpec((DEPTH, D, 3 * D), lambda i: (0, 0, 0)),      # qkv_w
                pl.BlockSpec((DEPTH, D, D), lambda i: (0, 0, 0)),          # proj_w
                pl.BlockSpec((DEPTH, D, MLP), lambda i: (0, 0, 0)),        # fc1_w
                pl.BlockSpec((DEPTH, MLP, D), lambda i: (0, 0, 0)),        # fc2_w
                pl.BlockSpec((DEPTH * 4, 128), lambda i: (0, 0)),          # vec slab
            ],
            out_specs=pl.BlockSpec((None, T, DEPTH * D), lambda i: (i, 0, 0)),
            scratch_shapes=[pltpu.VMEM((T, D), jnp.float32),   # token assembly
                            pltpu.VMEM((T, D), jnp.float32)],  # merged head outputs
        ),
        compiler_params=pltpu.CompilerParams(dimension_semantics=("parallel",)),
    )(xs, base, patch_w, qkv_w, proj_w, fc1_w, fc2_w, vec)

    # get_intermediate_layers semantics: keep only patch tokens (rows 0..NPATCH-1
    # in our layout), then the wrapper's permute(0, 2, 1).reshape(B, D, 4, 4).
    tok = out[:, :NPATCH, :]                                    # (B, NPATCH, DEPTH*D)
    feats = []
    for l in range(DEPTH):
        f = tok[:, :, l * D:(l + 1) * D]                        # (B, NPATCH, D)
        feats.append(jnp.transpose(f, (0, 2, 1)).reshape(b, D, GRID, GRID))
    return feats


# ----------------------------- params ---------------------------------------
def init_params(key):
    # TODO(synk): torch.hub pretrained ViT-B/14+reg weights cannot be loaded here;
    # synthetic random init with identical structure (LayerScale folded exactly).
    def nrm(k, shape, std=0.02):
        return std * jax.random.normal(k, shape, jnp.float32)

    keys = iter(jax.random.split(key, 8 + DEPTH * 8))
    params = {
        "patch_w": nrm(next(keys), (K_IN, D)),
        "patch_b": jnp.zeros((D,), jnp.float32),
        "cls": nrm(next(keys), (1, 1, D)),
        "reg": nrm(next(keys), (1, NREG, D)),
        "pos": nrm(next(keys), (1, 1 + NPATCH, D)),
        "norm_w": jnp.ones((D,), jnp.float32),
        "norm_b": jnp.zeros((D,), jnp.float32),
        "blocks": [],
    }
    for _ in range(DEPTH):
        gamma1 = jnp.full((D,), 1e-1, jnp.float32)   # LayerScale (ls1)
        gamma2 = jnp.full((D,), 1e-1, jnp.float32)   # LayerScale (ls2)
        proj_w = nrm(next(keys), (D, D))
        proj_b = nrm(next(keys), (D,))
        fc2_w = nrm(next(keys), (MLP, D))
        fc2_b = nrm(next(keys), (D,))
        blk = {
            "n1_w": jnp.ones((D,), jnp.float32),
            "n1_b": jnp.zeros((D,), jnp.float32),
            "qkv_w": nrm(next(keys), (D, 3 * D)),
            "qkv_b": nrm(next(keys), (3 * D,)),
            # LayerScale folded exactly: (xW + b) * g == x(W*g) + b*g
            "proj_w": proj_w * gamma1[None, :],
            "proj_b": proj_b * gamma1,
            "n2_w": jnp.ones((D,), jnp.float32),
            "n2_b": jnp.zeros((D,), jnp.float32),
            "fc1_w": nrm(next(keys), (D, MLP)),
            "fc1_b": nrm(next(keys), (MLP,)),
            "fc2_w": fc2_w * gamma2[None, :],
            "fc2_b": fc2_b * gamma2,
        }
        params["blocks"].append(blk)
    return params


# ----------------------------- main ---------------------------------------
if __name__ == "__main__":
    key = jax.random.PRNGKey(0)
    pkey, xkey = jax.random.split(key)
    params = init_params(pkey)

    # NCHW input, like the PyTorch module.
    x = jax.random.normal(xkey, (B, C_IN, IMG, IMG), jnp.float32)

    feats = jax.jit(lambda xx: dinov2_backbone_forward(xx, params))(x)
    feats = [jax.block_until_ready(f) for f in feats]

    expected = (B, D, GRID, GRID)
    assert len(feats) == 4
    assert all(f.shape == expected for f in feats), [f.shape for f in feats]
    assert all(bool(jnp.isfinite(f).all()) for f in feats)
    print("KERNEL_OK")
</pallas_src>

<mosaic_0001>
module attributes {stable_mosaic.version = 11 : i64} {
  func.func @_dinov2_fused_kernel(%arg0: i32, %arg1: memref<1x16x640xbf16, #tpu.memory_space<vmem>>, %arg2: memref<21x32xf32, #tpu.memory_space<vmem>>, %arg3: memref<640x32xbf16, #tpu.memory_space<vmem>>, %arg4: memref<4x32x96xbf16, #tpu.memory_space<vmem>>, %arg5: memref<4x32x32xbf16, #tpu.memory_space<vmem>>, %arg6: memref<4x32x128xbf16, #tpu.memory_space<vmem>>, %arg7: memref<4x128x32xbf16, #tpu.memory_space<vmem>>, %arg8: memref<16x128xf32, #tpu.memory_space<vmem>>, %arg9: memref<1x21x128xf32, #tpu.memory_space<vmem>>, %arg10: memref<21x32xf32, #tpu.memory_space<vmem>>, %arg11: memref<21x32xf32, #tpu.memory_space<vmem>>) attributes {dimension_semantics = [#tpu.dimension_semantics<parallel>], iteration_bounds = array<i64: 2>, scalar_prefetch = 0 : i64, scratch_operands = 2 : i64, tpu.core_type = #tpu.core_type<tc>, window_params = [{transform_indices = @transform_0, window_bounds = array<i64: 1, 16, 640>}, {pipeline_mode = #tpu.pipeline_mode<synchronous>, transform_indices = @transform_1, window_bounds = array<i64: 21, 32>}, {pipeline_mode = #tpu.pipeline_mode<synchronous>, transform_indices = @transform_2, window_bounds = array<i64: 640, 32>}, {pipeline_mode = #tpu.pipeline_mode<synchronous>, transform_indices = @transform_3, window_bounds = array<i64: 4, 32, 96>}, {pipeline_mode = #tpu.pipeline_mode<synchronous>, transform_indices = @transform_4, window_bounds = array<i64: 4, 32, 32>}, {pipeline_mode = #tpu.pipeline_mode<synchronous>, transform_indices = @transform_5, window_bounds = array<i64: 4, 32, 128>}, {pipeline_mode = #tpu.pipeline_mode<synchronous>, transform_indices = @transform_6, window_bounds = array<i64: 4, 128, 32>}, {pipeline_mode = #tpu.pipeline_mode<synchronous>, transform_indices = @transform_7, window_bounds = array<i64: 16, 128>}, {transform_indices = @transform_8, window_bounds = array<i64: 1, 21, 128>}]} {
    %c0 = arith.constant 0 : index
    %c0_0 = arith.constant 0 : index
    %c0_1 = arith.constant 0 : index
    %0 = vector.load %arg1[%c0, %c0_0, %c0_1] : memref<1x16x640xbf16, #tpu.memory_space<vmem>>, vector<1x16x640xbf16>
    %1 = vector.shape_cast %0 : vector<1x16x640xbf16> to vector<16x640xbf16>
    %c0_2 = arith.constant 0 : index
    %c0_3 = arith.constant 0 : index
    %2 = vector.load %arg3[%c0_2, %c0_3] : memref<640x32xbf16, #tpu.memory_space<vmem>>, vector<640x32xbf16>
    %cst = arith.constant dense<0.000000e+00> : vector<16x32xf32>
    %3 = tpu.matmul %1, %2, %cst {dimension_numbers = #tpu.dot_dimension_numbers<[1], [0], [0], [1], [0, 0, 1, 1], [], []>} : vector<16x640xbf16>, vector<640x32xbf16>, vector<16x32xf32> -> vector<16x32xf32>
    %c0_4 = arith.constant 0 : index
    %c0_5 = arith.constant 0 : index
    %4 = vector.load %arg2[%c0_4, %c0_5] : memref<21x32xf32, #tpu.memory_space<vmem>>, vector<16x32xf32>
    %5 = arith.addf %4, %3 : vector<16x32xf32>
    %c0_6 = arith.constant 0 : index
    %c0_7 = arith.constant 0 : index
    %6 = vector.load %arg10[%c0_6, %c0_7] : memref<21x32xf32, #tpu.memory_space<vmem>>, vector<16x32xf32>
    tpu.vector_store %arg10[%c0_6, %c0_7], %5 {strides = array<i32>} : memref<21x32xf32, #tpu.memory_space<vmem>>, vector<16x32xf32>,
    %c16 = arith.constant 16 : index
    %c0_8 = arith.constant 0 : index
    %7 = vector.load %arg2[%c16, %c0_8] : memref<21x32xf32, #tpu.memory_space<vmem>>, vector<5x32xf32>
    %c16_9 = arith.constant 16 : index
    %c0_10 = arith.constant 0 : index
    %8 = vector.load %arg10[%c16_9, %c0_10] : memref<21x32xf32, #tpu.memory_space<vmem>>, vector<5x32xf32>
    tpu.vector_store %arg10[%c16_9, %c0_10], %7 {strides = array<i32>} : memref<21x32xf32, #tpu.memory_space<vmem>>, vector<5x32xf32>,
    %c0_11 = arith.constant 0 : index
    %c0_12 = arith.constant 0 : index
    %9 = vector.load %arg10[%c0_11, %c0_12] : memref<21x32xf32, #tpu.memory_space<vmem>>, vector<21x32xf32>
    %c0_13 = arith.constant 0 : index
    %c0_14 = arith.constant 0 : index
    %10 = vector.load %arg8[%c0_13, %c0_14] : memref<16x128xf32, #tpu.memory_space<vmem>>, vector<1x128xf32>
    %c1 = arith.constant 1 : index
    %c0_15 = arith.constant 0 : index
    %11 = vector.load %arg8[%c1, %c0_15] : memref<16x128xf32, #tpu.memory_space<vmem>>, vector<1x128xf32>
    %c2 = arith.constant 2 : index
    %c0_16 = arith.constant 0 : index
    %12 = vector.load %arg8[%c2, %c0_16] : memref<16x128xf32, #tpu.memory_space<vmem>>, vector<1x128xf32>
    %c3 = arith.constant 3 : index
    %c0_17 = arith.constant 0 : index
    %13 = vector.load %arg8[%c3, %c0_17] : memref<16x128xf32, #tpu.memory_space<vmem>>, vector<1x128xf32>
    %14 = vector.extract_strided_slice %10 {offsets = [0, 0], sizes = [1, 32], strides = [1, 1]} : vector<1x128xf32> to vector<1x32xf32>
    %15 = vector.extract_strided_slice %10 {offsets = [0, 32], sizes = [1, 32], strides = [1, 1]} : vector<1x128xf32> to vector<1x32xf32>
    %16 = vector.extract_strided_slice %10 {offsets = [0, 64], sizes = [1, 32], strides = [1, 1]} : vector<1x128xf32> to vector<1x32xf32>
    %17 = vector.extract_strided_slice %10 {offsets = [0, 96], sizes = [1, 32], strides = [1, 1]} : vector<1x128xf32> to vector<1x32xf32>
    %18 = vector.extract_strided_slice %11 {offsets = [0, 0], sizes = [1, 96], strides = [1, 1]} : vector<1x128xf32> to vector<1x96xf32>
    %19 = vector.extract_strided_slice %11 {offsets = [0, 96], sizes = [1, 32], strides = [1, 1]} : vector<1x128xf32> to vector<1x32xf32>
    %20 = vector.extract_strided_slice %13 {offsets = [0, 0], sizes = [1, 32], strides = [1, 1]} : vector<1x128xf32> to vector<1x32xf32>
    %21 = vector.extract_strided_slice %13 {offsets = [0, 32], sizes = [1, 32], strides = [1, 1]} : vector<1x128xf32> to vector<1x32xf32>
    %22 = vector.extract_strided_slice %13 {offsets = [0, 64], sizes = [1, 32], strides = [1, 1]} : vector<1x128xf32> to vector<1x32xf32>
    %cst_18 = arith.constant dense<0.000000e+00> : vector<21xf32>
    %23 = vector.multi_reduction <add>, %9, %cst_18 [1] : vector<21x32xf32> to vector<21xf32>
    %24 = vector.shape_cast %23 : vector<21xf32> to vector<21x1xf32>
    %cst_19 = arith.constant 3.200000e+01 : f32
    %25 = vector.broadcast %cst_19 : f32 to vector<21x1xf32>
    %26 = arith.divf %24, %25 : vector<21x1xf32>
    %27 = vector.broadcast %26 : vector<21x1xf32> to vector<21x32xf32>
    %28 = arith.subf %9, %27 : vector<21x32xf32>
    %29 = arith.mulf %28, %28 : vector<21x32xf32>
    %cst_20 = arith.constant dense<0.000000e+00> : vector<21xf32>
    %30 = vector.multi_reduction <add>, %29, %cst_20 [1] : vector<21x32xf32> to vector<21xf32>
    %31 = vector.shape_cast %30 : vector<21xf32> to vector<21x1xf32>
    %cst_21 = arith.constant 3.200000e+01 : f32
    %32 = vector.broadcast %cst_21 : f32 to vector<21x1xf32>
    %33 = arith.divf %31, %32 : vector<21x1xf32>
    %cst_22 = arith.constant 9.99999997E-7 : f32
    %34 = vector.broadcast %cst_22 : f32 to vector<21x1xf32>
    %35 = arith.addf %33, %34 : vector<21x1xf32>
    %36 = math.rsqrt %35 : vector<21x1xf32>
    %37 = vector.broadcast %36 : vector<21x1xf32> to vector<21x32xf32>
    %38 = arith.mulf %28, %37 : vector<21x32xf32>
    %39 = vector.broadcast %14 : vector<1x32xf32> to vector<21x32xf32>
    %40 = arith.mulf %38, %39 : vector<21x32xf32>
    %41 = vector.broadcast %15 : vector<1x32xf32> to vector<21x32xf32>
    %42 = arith.addf %40, %41 : vector<21x32xf32>
    %43 = arith.truncf %42 : vector<21x32xf32> to vector<21x32xbf16>
    %c0_23 = arith.constant 0 : index
    %c0_24 = arith.constant 0 : index
    %c0_25 = arith.constant 0 : index
    %44 = vector.load %arg4[%c0_23, %c0_24, %c0_25] : memref<4x32x96xbf16, #tpu.memory_space<vmem>>, vector<1x32x96xbf16>
    %45 = vector.shape_cast %44 : vector<1x32x96xbf16> to vector<32x96xbf16>
    %cst_26 = arith.constant dense<0.000000e+00> : vector<21x96xf32>
    %46 = tpu.matmul %43, %45, %cst_26 {dimension_numbers = #tpu.dot_dimension_numbers<[1], [0], [0], [1], [0, 0, 1, 1], [], []>} : vector<21x32xbf16>, vector<32x96xbf16>, vector<21x96xf32> -> vector<21x96xf32>
    %47 = vector.broadcast %18 : vector<1x96xf32> to vector<21x96xf32>
    %48 = arith.addf %46, %47 : vector<21x96xf32>
    %49 = vector.extract_strided_slice %48 {offsets = [0, 0], sizes = [21, 16], strides = [1, 1]} : vector<21x96xf32> to vector<21x16xf32>
    %50 = arith.truncf %49 : vector<21x16xf32> to vector<21x16xbf16>
    %51 = vector.extract_strided_slice %48 {offsets = [0, 32], sizes = [21, 16], strides = [1, 1]} : vector<21x96xf32> to vector<21x16xf32>
    %52 = arith.truncf %51 : vector<21x16xf32> to vector<21x16xbf16>
    %53 = vector.extract_strided_slice %48 {offsets = [0, 64], sizes = [21, 16], strides = [1, 1]} : vector<21x96xf32> to vector<21x16xf32>
    %54 = arith.truncf %53 : vector<21x16xf32> to vector<21x16xbf16>
    %cst_27 = arith.constant dense<0.000000e+00> : vector<21x21xf32>
    %55 = tpu.matmul %50, %52, %cst_27 {dimension_numbers = #tpu.dot_dimension_numbers<[1], [1], [0], [0], [0, 0, 1, 0], [], []>} : vector<21x16xbf16>, vector<21x16xbf16>, vector<21x21xf32> -> vector<21x21xf32>
    %cst_28 = arith.constant dense<0xFF800000> : vector<21xf32>
    %56 = vector.multi_reduction <maximumf>, %55, %cst_28 [1] : vector<21x21xf32> to vector<21xf32>
    %57 = vector.shape_cast %56 : vector<21xf32> to vector<21x1xf32>
    %58 = vector.broadcast %57 : vector<21x1xf32> to vector<21x21xf32>
    %59 = arith.subf %55, %58 : vector<21x21xf32>
    %60 = math.exp %59 : vector<21x21xf32>
    %cst_29 = arith.constant dense<0.000000e+00> : vector<21xf32>
    %61 = vector.multi_reduction <add>, %60, %cst_29 [1] : vector<21x21xf32> to vector<21xf32>
    %62 = vector.shape_cast %61 : vector<21xf32> to vector<21x1xf32>
    %63 = tpu.reciprocal %62 {approx = true} : vector<21x1xf32> -> vector<21x1xf32>
    %64 = vector.broadcast %63 : vector<21x1xf32> to vector<21x21xf32>
    %65 = arith.mulf %60, %64 : vector<21x21xf32>
    %66 = arith.truncf %65 : vector<21x21xf32> to vector<21x21xbf16>
    %cst_30 = arith.constant dense<0.000000e+00> : vector<21x16xf32>
    %67 = tpu.matmul %66, %54, %cst_30 {dimension_numbers = #tpu.dot_dimension_numbers<[1], [0], [0], [1], [0, 0, 1, 1], [], []>} : vector<21x21xbf16>, vector<21x16xbf16>, vector<21x16xf32> -> vector<21x16xf32>
    %c0_31 = arith.constant 0 : index
    %c0_32 = arith.constant 0 : index
    %68 = vector.load %arg11[%c0_31, %c0_32] : memref<21x32xf32, #tpu.memory_space<vmem>>, vector<21x16xf32>
    tpu.vector_store %arg11[%c0_31, %c0_32], %67 {strides = array<i32>} : memref<21x32xf32, #tpu.memory_space<vmem>>, vector<21x16xf32>,
    %69 = vector.extract_strided_slice %48 {offsets = [0, 16], sizes = [21, 16], strides = [1, 1]} : vector<21x96xf32> to vector<21x16xf32>
    %70 = arith.truncf %69 : vector<21x16xf32> to vector<21x16xbf16>
    %71 = vector.extract_strided_slice %48 {offsets = [0, 48], sizes = [21, 16], strides = [1, 1]} : vector<21x96xf32> to vector<21x16xf32>
    %72 = arith.truncf %71 : vector<21x16xf32> to vector<21x16xbf16>
    %73 = vector.extract_strided_slice %48 {offsets = [0, 80], sizes = [21, 16], strides = [1, 1]} : vector<21x96xf32> to vector<21x16xf32>
    %74 = arith.truncf %73 : vector<21x16xf32> to vector<21x16xbf16>
    %cst_33 = arith.constant dense<0.000000e+00> : vector<21x21xf32>
    %75 = tpu.matmul %70, %72, %cst_33 {dimension_numbers = #tpu.dot_dimension_numbers<[1], [1], [0], [0], [0, 0, 1, 0], [], []>} : vector<21x16xbf16>, vector<21x16xbf16>, vector<21x21xf32> -> vector<21x21xf32>
    %cst_34 = arith.constant dense<0xFF800000> : vector<21xf32>
    %76 = vector.multi_reduction <maximumf>, %75, %cst_34 [1] : vector<21x21xf32> to vector<21xf32>
    %77 = vector.shape_cast %76 : vector<21xf32> to vector<21x1xf32>
    %78 = vector.broadcast %77 : vector<21x1xf32> to vector<21x21xf32>
    %79 = arith.subf %75, %78 : vector<21x21xf32>
    %80 = math.exp %79 : vector<21x21xf32>
    %cst_35 = arith.constant dense<0.000000e+00> : vector<21xf32>
    %81 = vector.multi_reduction <add>, %80, %cst_35 [1] : vector<21x21xf32> to vector<21xf32>
    %82 = vector.shape_cast %81 : vector<21xf32> to vector<21x1xf32>
    %83 = tpu.reciprocal %82 {approx = true} : vector<21x1xf32> -> vector<21x1xf32>
    %84 = vector.broadcast %83 : vector<21x1xf32> to vector<21x21xf32>
    %85 = arith.mulf %80, %84 : vector<21x21xf32>
    %86 = arith.truncf %85 : vector<21x21xf32> to vector<21x21xbf16>
    %cst_36 = arith.constant dense<0.000000e+00> : vector<21x16xf32>
    %87 = tpu.matmul %86, %74, %cst_36 {dimension_numbers = #tpu.dot_dimension_numbers<[1], [0], [0], [1], [0, 0, 1, 1], [], []>} : vector<21x21xbf16>, vector<21x16xbf16>, vector<21x16xf32> -> vector<21x16xf32>
    %c0_37 = arith.constant 0 : index
    %c16_38 = arith.constant 16 : index
    %88 = vector.load %arg11[%c0_37, %c16_38] : memref<21x32xf32, #tpu.memory_space<vmem>>, vector<21x16xf32>
    tpu.vector_store %arg11[%c0_37, %c16_38], %87 {strides = array<i32>} : memref<21x32xf32, #tpu.memory_space<vmem>>, vector<21x16xf32>,
    %89 = vector.broadcast %19 : vector<1x32xf32> to vector<21x32xf32>
    %90 = arith.addf %9, %89 : vector<21x32xf32>
    %c0_39 = arith.constant 0 : index
    %c0_40 = arith.constant 0 : index
    %91 = vector.load %arg11[%c0_39, %c0_40] : memref<21x32xf32, #tpu.memory_space<vmem>>, vector<21x32xf32>
    %92 = arith.truncf %91 : vector<21x32xf32> to vector<21x32xbf16>
    %c0_41 = arith.constant 0 : index
    %c0_42 = arith.constant 0 : index
    %c0_43 = arith.constant 0 : index
    %93 = vector.load %arg5[%c0_41, %c0_42, %c0_43] : memref<4x32x32xbf16, #tpu.memory_space<vmem>>, vector<1x32x32xbf16>
    %94 = vector.shape_cast %93 : vector<1x32x32xbf16> to vector<32x32xbf16>
    %cst_44 = arith.constant dense<0.000000e+00> : vector<21x32xf32>
    %95 = tpu.matmul %92, %94, %cst_44 {dimension_numbers = #tpu.dot_dimension_numbers<[1], [0], [0], [1], [0, 0, 1, 1], [], []>} : vector<21x32xbf16>, vector<32x32xbf16>, vector<21x32xf32> -> vector<21x32xf32>
    %96 = arith.addf %90, %95 : vector<21x32xf32>
    %cst_45 = arith.constant dense<0.000000e+00> : vector<21xf32>
    %97 = vector.multi_reduction <add>, %96, %cst_45 [1] : vector<21x32xf32> to vector<21xf32>
    %98 = vector.shape_cast %97 : vector<21xf32> to vector<21x1xf32>
    %cst_46 = arith.constant 3.200000e+01 : f32
    %99 = vector.broadcast %cst_46 : f32 to vector<21x1xf32>
    %100 = arith.divf %98, %99 : vector<21x1xf32>
    %101 = vector.broadcast %100 : vector<21x1xf32> to vector<21x32xf32>
    %102 = arith.subf %96, %101 : vector<21x32xf32>
    %103 = arith.mulf %102, %102 : vector<21x32xf32>
    %cst_47 = arith.constant dense<0.000000e+00> : vector<21xf32>
    %104 = vector.multi_reduction <add>, %103, %cst_47 [1] : vector<21x32xf32> to vector<21xf32>
    %105 = vector.shape_cast %104 : vector<21xf32> to vector<21x1xf32>
    %cst_48 = arith.constant 3.200000e+01 : f32
    %106 = vector.broadcast %cst_48 : f32 to vector<21x1xf32>
    %107 = arith.divf %105, %106 : vector<21x1xf32>
    %cst_49 = arith.constant 9.99999997E-7 : f32
    %108 = vector.broadcast %cst_49 : f32 to vector<21x1xf32>
    %109 = arith.addf %107, %108 : vector<21x1xf32>
    %110 = math.rsqrt %109 : vector<21x1xf32>
    %111 = vector.broadcast %110 : vector<21x1xf32> to vector<21x32xf32>
    %112 = arith.mulf %102, %111 : vector<21x32xf32>
    %113 = vector.broadcast %16 : vector<1x32xf32> to vector<21x32xf32>
    %114 = arith.mulf %112, %113 : vector<21x32xf32>
    %115 = vector.broadcast %17 : vector<1x32xf32> to vector<21x32xf32>
    %116 = arith.addf %114, %115 : vector<21x32xf32>
    %117 = arith.truncf %116 : vector<21x32xf32> to vector<21x32xbf16>
    %c0_50 = arith.constant 0 : index
    %c0_51 = arith.constant 0 : index
    %c0_52 = arith.constant 0 : index
    %118 = vector.load %arg6[%c0_50, %c0_51, %c0_52] : memref<4x32x128xbf16, #tpu.memory_space<vmem>>, vector<1x32x128xbf16>
    %119 = vector.shape_cast %118 : vector<1x32x128xbf16> to vector<32x128xbf16>
    %cst_53 = arith.constant dense<0.000000e+00> : vector<21x128xf32>
    %120 = tpu.matmul %117, %119, %cst_53 {dimension_numbers = #tpu.dot_dimension_numbers<[1], [0], [0], [1], [0, 0, 1, 1], [], []>} : vector<21x32xbf16>, vector<32x128xbf16>, vector<21x128xf32> -> vector<21x128xf32>
    %121 = vector.broadcast %12 : vector<1x128xf32> to vector<21x128xf32>
    %122 = arith.addf %120, %121 : vector<21x128xf32>
    %cst_54 = arith.constant 5.000000e-01 : f32
    %123 = vector.broadcast %cst_54 : f32 to vector<21x128xf32>
    %124 = arith.mulf %123, %122 : vector<21x128xf32>
    %125 = arith.mulf %122, %122 : vector<21x128xf32>
    %126 = arith.mulf %125, %122 : vector<21x128xf32>
    %cst_55 = arith.constant 4.471500e-02 : f32
    %127 = vector.broadcast %cst_55 : f32 to vector<21x128xf32>
    %128 = arith.mulf %127, %126 : vector<21x128xf32>
    %129 = arith.addf %122, %128 : vector<21x128xf32>
    %cst_56 = arith.constant 0.797884583 : f32
    %130 = vector.broadcast %cst_56 : f32 to vector<21x128xf32>
    %131 = arith.mulf %130, %129 : vector<21x128xf32>
    %132 = math.tanh %131 : vector<21x128xf32>
    %cst_57 = arith.constant 1.000000e+00 : f32
    %133 = vector.broadcast %cst_57 : f32 to vector<21x128xf32>
    %134 = arith.addf %133, %132 : vector<21x128xf32>
    %135 = arith.mulf %124, %134 : vector<21x128xf32>
    %136 = vector.broadcast %20 : vector<1x32xf32> to vector<21x32xf32>
    %137 = arith.addf %96, %136 : vector<21x32xf32>
    %138 = arith.truncf %135 : vector<21x128xf32> to vector<21x128xbf16>
    %c0_58 = arith.constant 0 : index
    %c0_59 = arith.constant 0 : index
    %c0_60 = arith.constant 0 : index
    %139 = vector.load %arg7[%c0_58, %c0_59, %c0_60] : memref<4x128x32xbf16, #tpu.memory_space<vmem>>, vector<1x128x32xbf16>
    %140 = vector.shape_cast %139 : vector<1x128x32xbf16> to vector<128x32xbf16>
    %cst_61 = arith.constant dense<0.000000e+00> : vector<21x32xf32>
    %141 = tpu.matmul %138, %140, %cst_61 {dimension_numbers = #tpu.dot_dimension_numbers<[1], [0], [0], [1], [0, 0, 1, 1], [], []>} : vector<21x128xbf16>, vector<128x32xbf16>, vector<21x32xf32> -> vector<21x32xf32>
    %142 = arith.addf %137, %141 : vector<21x32xf32>
    %cst_62 = arith.constant dense<0.000000e+00> : vector<21xf32>
    %143 = vector.multi_reduction <add>, %142, %cst_62 [1] : vector<21x32xf32> to vector<21xf32>
    %144 = vector.shape_cast %143 : vector<21xf32> to vector<21x1xf32>
    %cst_63 = arith.constant 3.200000e+01 : f32
    %145 = vector.broadcast %cst_63 : f32 to vector<21x1xf32>
    %146 = arith.divf %144, %145 : vector<21x1xf32>
    %147 = vector.broadcast %146 : vector<21x1xf32> to vector<21x32xf32>
    %148 = arith.subf %142, %147 : vector<21x32xf32>
    %149 = arith.mulf %148, %148 : vector<21x32xf32>
    %cst_64 = arith.constant dense<0.000000e+00> : vector<21xf32>
    %150 = vector.multi_reduction <add>, %149, %cst_64 [1] : vector<21x32xf32> to vector<21xf32>
    %151 = vector.shape_cast %150 : vector<21xf32> to vector<21x1xf32>
    %cst_65 = arith.constant 3.200000e+01 : f32
    %152 = vector.broadcast %cst_65 : f32 to vector<21x1xf32>
    %153 = arith.divf %151, %152 : vector<21x1xf32>
    %cst_66 = arith.constant 9.99999997E-7 : f32
    %154 = vector.broadcast %cst_66 : f32 to vector<21x1xf32>
    %155 = arith.addf %153, %154 : vector<21x1xf32>
    %156 = math.rsqrt %155 : vector<21x1xf32>
    %157 = vector.broadcast %156 : vector<21x1xf32> to vector<21x32xf32>
    %158 = arith.mulf %148, %157 : vector<21x32xf32>
    %159 = vector.broadcast %21 : vector<1x32xf32> to vector<21x32xf32>
    %160 = arith.mulf %158, %159 : vector<21x32xf32>
    %161 = vector.broadcast %22 : vector<1x32xf32> to vector<21x32xf32>
    %162 = arith.addf %160, %161 : vector<21x32xf32>
    %c0_67 = arith.constant 0 : index
    %c0_68 = arith.constant 0 : index
    %c0_69 = arith.constant 0 : index
    %163 = vector.load %arg9[%c0_67, %c0_68, %c0_69] : memref<1x21x128xf32, #tpu.memory_space<vmem>>, vector<1x21x32xf32>
    %164 = vector.shape_cast %163 : vector<1x21x32xf32> to vector<21x32xf32>
    %165 = vector.shape_cast %162 : vector<21x32xf32> to vector<1x21x32xf32>
    tpu.vector_store %arg9[%c0_67, %c0_68, %c0_69], %165 {strides = array<i32>} : memref<1x21x128xf32, #tpu.memory_space<vmem>>, vector<1x21x32xf32>,
    %c4 = arith.constant 4 : index
    %c0_70 = arith.constant 0 : index
    %166 = vector.load %arg8[%c4, %c0_70] : memref<16x128xf32, #tpu.memory_space<vmem>>, vector<1x128xf32>
    %c5 = arith.constant 5 : index
    %c0_71 = arith.constant 0 : index
    %167 = vector.load %arg8[%c5, %c0_71] : memref<16x128xf32, #tpu.memory_space<vmem>>, vector<1x128xf32>
    %c6 = arith.constant 6 : index
    %c0_72 = arith.constant 0 : index
    %168 = vector.load %arg8[%c6, %c0_72] : memref<16x128xf32, #tpu.memory_space<vmem>>, vector<1x128xf32>
    %c7 = arith.constant 7 : index
    %c0_73 = arith.constant 0 : index
    %169 = vector.load %arg8[%c7, %c0_73] : memref<16x128xf32, #tpu.memory_space<vmem>>, vector<1x128xf32>
    %170 = vector.extract_strided_slice %166 {offsets = [0, 0], sizes = [1, 32], strides = [1, 1]} : vector<1x128xf32> to vector<1x32xf32>
    %171 = vector.extract_strided_slice %166 {offsets = [0, 32], sizes = [1, 32], strides = [1, 1]} : vector<1x128xf32> to vector<1x32xf32>
    %172 = vector.extract_strided_slice %166 {offsets = [0, 64], sizes = [1, 32], strides = [1, 1]} : vector<1x128xf32> to vector<1x32xf32>
    %173 = vector.extract_strided_slice %166 {offsets = [0, 96], sizes = [1, 32], strides = [1, 1]} : vector<1x128xf32> to vector<1x32xf32>
    %174 = vector.extract_strided_slice %167 {offsets = [0, 0], sizes = [1, 96], strides = [1, 1]} : vector<1x128xf32> to vector<1x96xf32>
    %175 = vector.extract_strided_slice %167 {offsets = [0, 96], sizes = [1, 32], strides = [1, 1]} : vector<1x128xf32> to vector<1x32xf32>
    %176 = vector.extract_strided_slice %169 {offsets = [0, 0], sizes = [1, 32], strides = [1, 1]} : vector<1x128xf32> to vector<1x32xf32>
    %177 = vector.extract_strided_slice %169 {offsets = [0, 32], sizes = [1, 32], strides = [1, 1]} : vector<1x128xf32> to vector<1x32xf32>
    %178 = vector.extract_strided_slice %169 {offsets = [0, 64], sizes = [1, 32], strides = [1, 1]} : vector<1x128xf32> to vector<1x32xf32>
    %cst_74 = arith.constant dense<0.000000e+00> : vector<21xf32>
    %179 = vector.multi_reduction <add>, %142, %cst_74 [1] : vector<21x32xf32> to vector<21xf32>
    %180 = vector.shape_cast %179 : vector<21xf32> to vector<21x1xf32>
    %cst_75 = arith.constant 3.200000e+01 : f32
    %181 = vector.broadcast %cst_75 : f32 to vector<21x1xf32>
    %182 = arith.divf %180, %181 : vector<21x1xf32>
    %183 = vector.broadcast %182 : vector<21x1xf32> to vector<21x32xf32>
    %184 = arith.subf %142, %183 : vector<21x32xf32>
    %185 = arith.mulf %184, %184 : vector<21x32xf32>
    %cst_76 = arith.constant dense<0.000000e+00> : vector<21xf32>
    %186 = vector.multi_reduction <add>, %185, %cst_76 [1] : vector<21x32xf32> to vector<21xf32>
    %187 = vector.shape_cast %186 : vector<21xf32> to vector<21x1xf32>
    %cst_77 = arith.constant 3.200000e+01 : f32
    %188 = vector.broadcast %cst_77 : f32 to vector<21x1xf32>
    %189 = arith.divf %187, %188 : vector<21x1xf32>
    %cst_78 = arith.constant 9.99999997E-7 : f32
    %190 = vector.broadcast %cst_78 : f32 to vector<21x1xf32>
    %191 = arith.addf %189, %190 : vector<21x1xf32>
    %192 = math.rsqrt %191 : vector<21x1xf32>
    %193 = vector.broadcast %192 : vector<21x1xf32> to vector<21x32xf32>
    %194 = arith.mulf %184, %193 : vector<21x32xf32>
    %195 = vector.broadcast %170 : vector<1x32xf32> to vector<21x32xf32>
    %196 = arith.mulf %194, %195 : vector<21x32xf32>
    %197 = vector.broadcast %171 : vector<1x32xf32> to vector<21x32xf32>
    %198 = arith.addf %196, %197 : vector<21x32xf32>
    %199 = arith.truncf %198 : vector<21x32xf32> to vector<21x32xbf16>
    %c1_79 = arith.constant 1 : index
    %c0_80 = arith.constant 0 : index
    %c0_81 = arith.constant 0 : index
    %200 = vector.load %arg4[%c1_79, %c0_80, %c0_81] : memref<4x32x96xbf16, #tpu.memory_space<vmem>>, vector<1x32x96xbf16>
    %201 = vector.shape_cast %200 : vector<1x32x96xbf16> to vector<32x96xbf16>
    %cst_82 = arith.constant dense<0.000000e+00> : vector<21x96xf32>
    %202 = tpu.matmul %199, %201, %cst_82 {dimension_numbers = #tpu.dot_dimension_numbers<[1], [0], [0], [1], [0, 0, 1, 1], [], []>} : vector<21x32xbf16>, vector<32x96xbf16>, vector<21x96xf32> -> vector<21x96xf32>
    %203 = vector.broadcast %174 : vector<1x96xf32> to vector<21x96xf32>
    %204 = arith.addf %202, %203 : vector<21x96xf32>
    %205 = vector.extract_strided_slice %204 {offsets = [0, 0], sizes = [21, 16], strides = [1, 1]} : vector<21x96xf32> to vector<21x16xf32>
    %206 = arith.truncf %205 : vector<21x16xf32> to vector<21x16xbf16>
    %207 = vector.extract_strided_slice %204 {offsets = [0, 32], sizes = [21, 16], strides = [1, 1]} : vector<21x96xf32> to vector<21x16xf32>
    %208 = arith.truncf %207 : vector<21x16xf32> to vector<21x16xbf16>
    %209 = vector.extract_strided_slice %204 {offsets = [0, 64], sizes = [21, 16], strides = [1, 1]} : vector<21x96xf32> to vector<21x16xf32>
    %210 = arith.truncf %209 : vector<21x16xf32> to vector<21x16xbf16>
    %cst_83 = arith.constant dense<0.000000e+00> : vector<21x21xf32>
    %211 = tpu.matmul %206, %208, %cst_83 {dimension_numbers = #tpu.dot_dimension_numbers<[1], [1], [0], [0], [0, 0, 1, 0], [], []>} : vector<21x16xbf16>, vector<21x16xbf16>, vector<21x21xf32> -> vector<21x21xf32>
    %cst_84 = arith.constant dense<0xFF800000> : vector<21xf32>
    %212 = vector.multi_reduction <maximumf>, %211, %cst_84 [1] : vector<21x21xf32> to vector<21xf32>
    %213 = vector.shape_cast %212 : vector<21xf32> to vector<21x1xf32>
    %214 = vector.broadcast %213 : vector<21x1xf32> to vector<21x21xf32>
    %215 = arith.subf %211, %214 : vector<21x21xf32>
    %216 = math.exp %215 : vector<21x21xf32>
    %cst_85 = arith.constant dense<0.000000e+00> : vector<21xf32>
    %217 = vector.multi_reduction <add>, %216, %cst_85 [1] : vector<21x21xf32> to vector<21xf32>
    %218 = vector.shape_cast %217 : vector<21xf32> to vector<21x1xf32>
    %219 = tpu.reciprocal %218 {approx = true} : vector<21x1xf32> -> vector<21x1xf32>
    %220 = vector.broadcast %219 : vector<21x1xf32> to vector<21x21xf32>
    %221 = arith.mulf %216, %220 : vector<21x21xf32>
    %222 = arith.truncf %221 : vector<21x21xf32> to vector<21x21xbf16>
    %cst_86 = arith.constant dense<0.000000e+00> : vector<21x16xf32>
    %223 = tpu.matmul %222, %210, %cst_86 {dimension_numbers = #tpu.dot_dimension_numbers<[1], [0], [0], [1], [0, 0, 1, 1], [], []>} : vector<21x21xbf16>, vector<21x16xbf16>, vector<21x16xf32> -> vector<21x16xf32>
    %c0_87 = arith.constant 0 : index
    %c0_88 = arith.constant 0 : index
    %224 = vector.load %arg11[%c0_87, %c0_88] : memref<21x32xf32, #tpu.memory_space<vmem>>, vector<21x16xf32>
    tpu.vector_store %arg11[%c0_87, %c0_88], %223 {strides = array<i32>} : memref<21x32xf32, #tpu.memory_space<vmem>>, vector<21x16xf32>,
    %225 = vector.extract_strided_slice %204 {offsets = [0, 16], sizes = [21, 16], strides = [1, 1]} : vector<21x96xf32> to vector<21x16xf32>
    %226 = arith.truncf %225 : vector<21x16xf32> to vector<21x16xbf16>
    %227 = vector.extract_strided_slice %204 {offsets = [0, 48], sizes = [21, 16], strides = [1, 1]} : vector<21x96xf32> to vector<21x16xf32>
    %228 = arith.truncf %227 : vector<21x16xf32> to vector<21x16xbf16>
    %229 = vector.extract_strided_slice %204 {offsets = [0, 80], sizes = [21, 16], strides = [1, 1]} : vector<21x96xf32> to vector<21x16xf32>
    %230 = arith.truncf %229 : vector<21x16xf32> to vector<21x16xbf16>
    %cst_89 = arith.constant dense<0.000000e+00> : vector<21x21xf32>
    %231 = tpu.matmul %226, %228, %cst_89 {dimension_numbers = #tpu.dot_dimension_numbers<[1], [1], [0], [0], [0, 0, 1, 0], [], []>} : vector<21x16xbf16>, vector<21x16xbf16>, vector<21x21xf32> -> vector<21x21xf32>
    %cst_90 = arith.constant dense<0xFF800000> : vector<21xf32>
    %232 = vector.multi_reduction <maximumf>, %231, %cst_90 [1] : vector<21x21xf32> to vector<21xf32>
    %233 = vector.shape_cast %232 : vector<21xf32> to vector<21x1xf32>
    %234 = vector.broadcast %233 : vector<21x1xf32> to vector<21x21xf32>
    %235 = arith.subf %231, %234 : vector<21x21xf32>
    %236 = math.exp %235 : vector<21x21xf32>
    %cst_91 = arith.constant dense<0.000000e+00> : vector<21xf32>
    %237 = vector.multi_reduction <add>, %236, %cst_91 [1] : vector<21x21xf32> to vector<21xf32>
    %238 = vector.shape_cast %237 : vector<21xf32> to vector<21x1xf32>
    %239 = tpu.reciprocal %238 {approx = true} : vector<21x1xf32> -> vector<21x1xf32>
    %240 = vector.broadcast %239 : vector<21x1xf32> to vector<21x21xf32>
    %241 = arith.mulf %236, %240 : vector<21x21xf32>
    %242 = arith.truncf %241 : vector<21x21xf32> to vector<21x21xbf16>
    %cst_92 = arith.constant dense<0.000000e+00> : vector<21x16xf32>
    %243 = tpu.matmul %242, %230, %cst_92 {dimension_numbers = #tpu.dot_dimension_numbers<[1], [0], [0], [1], [0, 0, 1, 1], [], []>} : vector<21x21xbf16>, vector<21x16xbf16>, vector<21x16xf32> -> vector<21x16xf32>
    %c0_93 = arith.constant 0 : index
    %c16_94 = arith.constant 16 : index
    %244 = vector.load %arg11[%c0_93, %c16_94] : memref<21x32xf32, #tpu.memory_space<vmem>>, vector<21x16xf32>
    tpu.vector_store %arg11[%c0_93, %c16_94], %243 {strides = array<i32>} : memref<21x32xf32, #tpu.memory_space<vmem>>, vector<21x16xf32>,
    %245 = vector.broadcast %175 : vector<1x32xf32> to vector<21x32xf32>
    %246 = arith.addf %142, %245 : vector<21x32xf32>
    %c0_95 = arith.constant 0 : index
    %c0_96 = arith.constant 0 : index
    %247 = vector.load %arg11[%c0_95, %c0_96] : memref<21x32xf32, #tpu.memory_space<vmem>>, vector<21x32xf32>
    %248 = arith.truncf %247 : vector<21x32xf32> to vector<21x32xbf16>
    %c1_97 = arith.constant 1 : index
    %c0_98 = arith.constant 0 : index
    %c0_99 = arith.constant 0 : index
    %249 = vector.load %arg5[%c1_97, %c0_98, %c0_99] : memref<4x32x32xbf16, #tpu.memory_space<vmem>>, vector<1x32x32xbf16>
    %250 = vector.shape_cast %249 : vector<1x32x32xbf16> to vector<32x32xbf16>
    %cst_100 = arith.constant dense<0.000000e+00> : vector<21x32xf32>
    %251 = tpu.matmul %248, %250, %cst_100 {dimension_numbers = #tpu.dot_dimension_numbers<[1], [0], [0], [1], [0, 0, 1, 1], [], []>} : vector<21x32xbf16>, vector<32x32xbf16>, vector<21x32xf32> -> vector<21x32xf32>
    %252 = arith.addf %246, %251 : vector<21x32xf32>
    %cst_101 = arith.constant dense<0.000000e+00> : vector<21xf32>
    %253 = vector.multi_reduction <add>, %252, %cst_101 [1] : vector<21x32xf32> to vector<21xf32>
    %254 = vector.shape_cast %253 : vector<21xf32> to vector<21x1xf32>
    %cst_102 = arith.constant 3.200000e+01 : f32
    %255 = vector.broadcast %cst_102 : f32 to vector<21x1xf32>
    %256 = arith.divf %254, %255 : vector<21x1xf32>
    %257 = vector.broadcast %256 : vector<21x1xf32> to vector<21x32xf32>
    %258 = arith.subf %252, %257 : vector<21x32xf32>
    %259 = arith.mulf %258, %258 : vector<21x32xf32>
    %cst_103 = arith.constant dense<0.000000e+00> : vector<21xf32>
    %260 = vector.multi_reduction <add>, %259, %cst_103 [1] : vector<21x32xf32> to vector<21xf32>
    %261 = vector.shape_cast %260 : vector<21xf32> to vector<21x1xf32>
    %cst_104 = arith.constant 3.200000e+01 : f32
    %262 = vector.broadcast %cst_104 : f32 to vector<21x1xf32>
    %263 = arith.divf %261, %262 : vector<21x1xf32>
    %cst_105 = arith.constant 9.99999997E-7 : f32
    %264 = vector.broadcast %cst_105 : f32 to vector<21x1xf32>
    %265 = arith.addf %263, %264 : vector<21x1xf32>
    %266 = math.rsqrt %265 : vector<21x1xf32>
    %267 = vector.broadcast %266 : vector<21x1xf32> to vector<21x32xf32>
    %268 = arith.mulf %258, %267 : vector<21x32xf32>
    %269 = vector.broadcast %172 : vector<1x32xf32> to vector<21x32xf32>
    %270 = arith.mulf %268, %269 : vector<21x32xf32>
    %271 = vector.broadcast %173 : vector<1x32xf32> to vector<21x32xf32>
    %272 = arith.addf %270, %271 : vector<21x32xf32>
    %273 = arith.truncf %272 : vector<21x32xf32> to vector<21x32xbf16>
    %c1_106 = arith.constant 1 : index
    %c0_107 = arith.constant 0 : index
    %c0_108 = arith.constant 0 : index
    %274 = vector.load %arg6[%c1_106, %c0_107, %c0_108] : memref<4x32x128xbf16, #tpu.memory_space<vmem>>, vector<1x32x128xbf16>
    %275 = vector.shape_cast %274 : vector<1x32x128xbf16> to vector<32x128xbf16>
    %cst_109 = arith.constant dense<0.000000e+00> : vector<21x128xf32>
    %276 = tpu.matmul %273, %275, %cst_109 {dimension_numbers = #tpu.dot_dimension_numbers<[1], [0], [0], [1], [0, 0, 1, 1], [], []>} : vector<21x32xbf16>, vector<32x128xbf16>, vector<21x128xf32> -> vector<21x128xf32>
    %277 = vector.broadcast %168 : vector<1x128xf32> to vector<21x128xf32>
    %278 = arith.addf %276, %277 : vector<21x128xf32>
    %cst_110 = arith.constant 5.000000e-01 : f32
    %279 = vector.broadcast %cst_110 : f32 to vector<21x128xf32>
    %280 = arith.mulf %279, %278 : vector<21x128xf32>
    %281 = arith.mulf %278, %278 : vector<21x128xf32>
    %282 = arith.mulf %281, %278 : vector<21x128xf32>
    %cst_111 = arith.constant 4.471500e-02 : f32
    %283 = vector.broadcast %cst_111 : f32 to vector<21x128xf32>
    %284 = arith.mulf %283, %282 : vector<21x128xf32>
    %285 = arith.addf %278, %284 : vector<21x128xf32>
    %cst_112 = arith.constant 0.797884583 : f32
    %286 = vector.broadcast %cst_112 : f32 to vector<21x128xf32>
    %287 = arith.mulf %286, %285 : vector<21x128xf32>
    %288 = math.tanh %287 : vector<21x128xf32>
    %cst_113 = arith.constant 1.000000e+00 : f32
    %289 = vector.broadcast %cst_113 : f32 to vector<21x128xf32>
    %290 = arith.addf %289, %288 : vector<21x128xf32>
    %291 = arith.mulf %280, %290 : vector<21x128xf32>
    %292 = vector.broadcast %176 : vector<1x32xf32> to vector<21x32xf32>
    %293 = arith.addf %252, %292 : vector<21x32xf32>
    %294 = arith.truncf %291 : vector<21x128xf32> to vector<21x128xbf16>
    %c1_114 = arith.constant 1 : index
    %c0_115 = arith.constant 0 : index
    %c0_116 = arith.constant 0 : index
    %295 = vector.load %arg7[%c1_114, %c0_115, %c0_116] : memref<4x128x32xbf16, #tpu.memory_space<vmem>>, vector<1x128x32xbf16>
    %296 = vector.shape_cast %295 : vector<1x128x32xbf16> to vector<128x32xbf16>
    %cst_117 = arith.constant dense<0.000000e+00> : vector<21x32xf32>
    %297 = tpu.matmul %294, %296, %cst_117 {dimension_numbers = #tpu.dot_dimension_numbers<[1], [0], [0], [1], [0, 0, 1, 1], [], []>} : vector<21x128xbf16>, vector<128x32xbf16>, vector<21x32xf32> -> vector<21x32xf32>
    %298 = arith.addf %293, %297 : vector<21x32xf32>
    %cst_118 = arith.constant dense<0.000000e+00> : vector<21xf32>
    %299 = vector.multi_reduction <add>, %298, %cst_118 [1] : vector<21x32xf32> to vector<21xf32>
    %300 = vector.shape_cast %299 : vector<21xf32> to vector<21x1xf32>
    %cst_119 = arith.constant 3.200000e+01 : f32
    %301 = vector.broadcast %cst_119 : f32 to vector<21x1xf32>
    %302 = arith.divf %300, %301 : vector<21x1xf32>
    %303 = vector.broadcast %302 : vector<21x1xf32> to vector<21x32xf32>
    %304 = arith.subf %298, %303 : vector<21x32xf32>
    %305 = arith.mulf %304, %304 : vector<21x32xf32>
    %cst_120 = arith.constant dense<0.000000e+00> : vector<21xf32>
    %306 = vector.multi_reduction <add>, %305, %cst_120 [1] : vector<21x32xf32> to vector<21xf32>
    %307 = vector.shape_cast %306 : vector<21xf32> to vector<21x1xf32>
    %cst_121 = arith.constant 3.200000e+01 : f32
    %308 = vector.broadcast %cst_121 : f32 to vector<21x1xf32>
    %309 = arith.divf %307, %308 : vector<21x1xf32>
    %cst_122 = arith.constant 9.99999997E-7 : f32
    %310 = vector.broadcast %cst_122 : f32 to vector<21x1xf32>
    %311 = arith.addf %309, %310 : vector<21x1xf32>
    %312 = math.rsqrt %311 : vector<21x1xf32>
    %313 = vector.broadcast %312 : vector<21x1xf32> to vector<21x32xf32>
    %314 = arith.mulf %304, %313 : vector<21x32xf32>
    %315 = vector.broadcast %177 : vector<1x32xf32> to vector<21x32xf32>
    %316 = arith.mulf %314, %315 : vector<21x32xf32>
    %317 = vector.broadcast %178 : vector<1x32xf32> to vector<21x32xf32>
    %318 = arith.addf %316, %317 : vector<21x32xf32>
    %c0_123 = arith.constant 0 : index
    %c0_124 = arith.constant 0 : index
    %c32 = arith.constant 32 : index
    %319 = vector.load %arg9[%c0_123, %c0_124, %c32] : memref<1x21x128xf32, #tpu.memory_space<vmem>>, vector<1x21x32xf32>
    %320 = vector.shape_cast %319 : vector<1x21x32xf32> to vector<21x32xf32>
    %321 = vector.shape_cast %318 : vector<21x32xf32> to vector<1x21x32xf32>
    tpu.vector_store %arg9[%c0_123, %c0_124, %c32], %321 {strides = array<i32>} : memref<1x21x128xf32, #tpu.memory_space<vmem>>, vector<1x21x32xf32>,
    %c8 = arith.constant 8 : index
    %c0_125 = arith.constant 0 : index
    %322 = vector.load %arg8[%c8, %c0_125] : memref<16x128xf32, #tpu.memory_space<vmem>>, vector<1x128xf32>
    %c9 = arith.constant 9 : index
    %c0_126 = arith.constant 0 : index
    %323 = vector.load %arg8[%c9, %c0_126] : memref<16x128xf32, #tpu.memory_space<vmem>>, vector<1x128xf32>
    %c10 = arith.constant 10 : index
    %c0_127 = arith.constant 0 : index
    %324 = vector.load %arg8[%c10, %c0_127] : memref<16x128xf32, #tpu.memory_space<vmem>>, vector<1x128xf32>
    %c11 = arith.constant 11 : index
    %c0_128 = arith.constant 0 : index
    %325 = vector.load %arg8[%c11, %c0_128] : memref<16x128xf32, #tpu.memory_space<vmem>>, vector<1x128xf32>
    %326 = vector.extract_strided_slice %322 {offsets = [0, 0], sizes = [1, 32], strides = [1, 1]} : vector<1x128xf32> to vector<1x32xf32>
    %327 = vector.extract_strided_slice %322 {offsets = [0, 32], sizes = [1, 32], strides = [1, 1]} : vector<1x128xf32> to vector<1x32xf32>
    %328 = vector.extract_strided_slice %322 {offsets = [0, 64], sizes = [1, 32], strides = [1, 1]} : vector<1x128xf32> to vector<1x32xf32>
    %329 = vector.extract_strided_slice %322 {offsets = [0, 96], sizes = [1, 32], strides = [1, 1]} : vector<1x128xf32> to vector<1x32xf32>
    %330 = vector.extract_strided_slice %323 {offsets = [0, 0], sizes = [1, 96], strides = [1, 1]} : vector<1x128xf32> to vector<1x96xf32>
    %331 = vector.extract_strided_slice %323 {offsets = [0, 96], sizes = [1, 32], strides = [1, 1]} : vector<1x128xf32> to vector<1x32xf32>
    %332 = vector.extract_strided_slice %325 {offsets = [0, 0], sizes = [1, 32], strides = [1, 1]} : vector<1x128xf32> to vector<1x32xf32>
    %333 = vector.extract_strided_slice %325 {offsets = [0, 32], sizes = [1, 32], strides = [1, 1]} : vector<1x128xf32> to vector<1x32xf32>
    %334 = vector.extract_strided_slice %325 {offsets = [0, 64], sizes = [1, 32], strides = [1, 1]} : vector<1x128xf32> to vector<1x32xf32>
    %cst_129 = arith.constant dense<0.000000e+00> : vector<21xf32>
    %335 = vector.multi_reduction <add>, %298, %cst_129 [1] : vector<21x32xf32> to vector<21xf32>
    %336 = vector.shape_cast %335 : vector<21xf32> to vector<21x1xf32>
    %cst_130 = arith.constant 3.200000e+01 : f32
    %337 = vector.broadcast %cst_130 : f32 to vector<21x1xf32>
    %338 = arith.divf %336, %337 : vector<21x1xf32>
    %339 = vector.broadcast %338 : vector<21x1xf32> to vector<21x32xf32>
    %340 = arith.subf %298, %339 : vector<21x32xf32>
    %341 = arith.mulf %340, %340 : vector<21x32xf32>
    %cst_131 = arith.constant dense<0.000000e+00> : vector<21xf32>
    %342 = vector.multi_reduction <add>, %341, %cst_131 [1] : vector<21x32xf32> to vector<21xf32>
    %343 = vector.shape_cast %342 : vector<21xf32> to vector<21x1xf32>
    %cst_132 = arith.constant 3.200000e+01 : f32
    %344 = vector.broadcast %cst_132 : f32 to vector<21x1xf32>
    %345 = arith.divf %343, %344 : vector<21x1xf32>
    %cst_133 = arith.constant 9.99999997E-7 : f32
    %346 = vector.broadcast %cst_133 : f32 to vector<21x1xf32>
    %347 = arith.addf %345, %346 : vector<21x1xf32>
    %348 = math.rsqrt %347 : vector<21x1xf32>
    %349 = vector.broadcast %348 : vector<21x1xf32> to vector<21x32xf32>
    %350 = arith.mulf %340, %349 : vector<21x32xf32>
    %351 = vector.broadcast %326 : vector<1x32xf32> to vector<21x32xf32>
    %352 = arith.mulf %350, %351 : vector<21x32xf32>
    %353 = vector.broadcast %327 : vector<1x32xf32> to vector<21x32xf32>
    %354 = arith.addf %352, %353 : vector<21x32xf32>
    %355 = arith.truncf %354 : vector<21x32xf32> to vector<21x32xbf16>
    %c2_134 = arith.constant 2 : index
    %c0_135 = arith.constant 0 : index
    %c0_136 = arith.constant 0 : index
    %356 = vector.load %arg4[%c2_134, %c0_135, %c0_136] : memref<4x32x96xbf16, #tpu.memory_space<vmem>>, vector<1x32x96xbf16>
    %357 = vector.shape_cast %356 : vector<1x32x96xbf16> to vector<32x96xbf16>
    %cst_137 = arith.constant dense<0.000000e+00> : vector<21x96xf32>
    %358 = tpu.matmul %355, %357, %cst_137 {dimension_numbers = #tpu.dot_dimension_numbers<[1], [0], [0], [1], [0, 0, 1, 1], [], []>} : vector<21x32xbf16>, vector<32x96xbf16>, vector<21x96xf32> -> vector<21x96xf32>
    %359 = vector.broadcast %330 : vector<1x96xf32> to vector<21x96xf32>
    %360 = arith.addf %358, %359 : vector<21x96xf32>
    %361 = vector.extract_strided_slice %360 {offsets = [0, 0], sizes = [21, 16], strides = [1, 1]} : vector<21x96xf32> to vector<21x16xf32>
    %362 = arith.truncf %361 : vector<21x16xf32> to vector<21x16xbf16>
    %363 = vector.extract_strided_slice %360 {offsets = [0, 32], sizes = [21, 16], strides = [1, 1]} : vector<21x96xf32> to vector<21x16xf32>
    %364 = arith.truncf %363 : vector<21x16xf32> to vector<21x16xbf16>
    %365 = vector.extract_strided_slice %360 {offsets = [0, 64], sizes = [21, 16], strides = [1, 1]} : vector<21x96xf32> to vector<21x16xf32>
    %366 = arith.truncf %365 : vector<21x16xf32> to vector<21x16xbf16>
    %cst_138 = arith.constant dense<0.000000e+00> : vector<21x21xf32>
    %367 = tpu.matmul %362, %364, %cst_138 {dimension_numbers = #tpu.dot_dimension_numbers<[1], [1], [0], [0], [0, 0, 1, 0], [], []>} : vector<21x16xbf16>, vector<21x16xbf16>, vector<21x21xf32> -> vector<21x21xf32>
    %cst_139 = arith.constant dense<0xFF800000> : vector<21xf32>
    %368 = vector.multi_reduction <maximumf>, %367, %cst_139 [1] : vector<21x21xf32> to vector<21xf32>
    %369 = vector.shape_cast %368 : vector<21xf32> to vector<21x1xf32>
    %370 = vector.broadcast %369 : vector<21x1xf32> to vector<21x21xf32>
    %371 = arith.subf %367, %370 : vector<21x21xf32>
    %372 = math.exp %371 : vector<21x21xf32>
    %cst_140 = arith.constant dense<0.000000e+00> : vector<21xf32>
    %373 = vector.multi_reduction <add>, %372, %cst_140 [1] : vector<21x21xf32> to vector<21xf32>
    %374 = vector.shape_cast %373 : vector<21xf32> to vector<21x1xf32>
    %375 = tpu.reciprocal %374 {approx = true} : vector<21x1xf32> -> vector<21x1xf32>
    %376 = vector.broadcast %375 : vector<21x1xf32> to vector<21x21xf32>
    %377 = arith.mulf %372, %376 : vector<21x21xf32>
    %378 = arith.truncf %377 : vector<21x21xf32> to vector<21x21xbf16>
    %cst_141 = arith.constant dense<0.000000e+00> : vector<21x16xf32>
    %379 = tpu.matmul %378, %366, %cst_141 {dimension_numbers = #tpu.dot_dimension_numbers<[1], [0], [0], [1], [0, 0, 1, 1], [], []>} : vector<21x21xbf16>, vector<21x16xbf16>, vector<21x16xf32> -> vector<21x16xf32>
    %c0_142 = arith.constant 0 : index
    %c0_143 = arith.constant 0 : index
    %380 = vector.load %arg11[%c0_142, %c0_143] : memref<21x32xf32, #tpu.memory_space<vmem>>, vector<21x16xf32>
    tpu.vector_store %arg11[%c0_142, %c0_143], %379 {strides = array<i32>} : memref<21x32xf32, #tpu.memory_space<vmem>>, vector<21x16xf32>,
    %381 = vector.extract_strided_slice %360 {offsets = [0, 16], sizes = [21, 16], strides = [1, 1]} : vector<21x96xf32> to vector<21x16xf32>
    %382 = arith.truncf %381 : vector<21x16xf32> to vector<21x16xbf16>
    %383 = vector.extract_strided_slice %360 {offsets = [0, 48], sizes = [21, 16], strides = [1, 1]} : vector<21x96xf32> to vector<21x16xf32>
    %384 = arith.truncf %383 : vector<21x16xf32> to vector<21x16xbf16>
    %385 = vector.extract_strided_slice %360 {offsets = [0, 80], sizes = [21, 16], strides = [1, 1]} : vector<21x96xf32> to vector<21x16xf32>
    %386 = arith.truncf %385 : vector<21x16xf32> to vector<21x16xbf16>
    %cst_144 = arith.constant dense<0.000000e+00> : vector<21x21xf32>
    %387 = tpu.matmul %382, %384, %cst_144 {dimension_numbers = #tpu.dot_dimension_numbers<[1], [1], [0], [0], [0, 0, 1, 0], [], []>} : vector<21x16xbf16>, vector<21x16xbf16>, vector<21x21xf32> -> vector<21x21xf32>
    %cst_145 = arith.constant dense<0xFF800000> : vector<21xf32>
    %388 = vector.multi_reduction <maximumf>, %387, %cst_145 [1] : vector<21x21xf32> to vector<21xf32>
    %389 = vector.shape_cast %388 : vector<21xf32> to vector<21x1xf32>
    %390 = vector.broadcast %389 : vector<21x1xf32> to vector<21x21xf32>
    %391 = arith.subf %387, %390 : vector<21x21xf32>
    %392 = math.exp %391 : vector<21x21xf32>
    %cst_146 = arith.constant dense<0.000000e+00> : vector<21xf32>
    %393 = vector.multi_reduction <add>, %392, %cst_146 [1] : vector<21x21xf32> to vector<21xf32>
    %394 = vector.shape_cast %393 : vector<21xf32> to vector<21x1xf32>
    %395 = tpu.reciprocal %394 {approx = true} : vector<21x1xf32> -> vector<21x1xf32>
    %396 = vector.broadcast %395 : vector<21x1xf32> to vector<21x21xf32>
    %397 = arith.mulf %392, %396 : vector<21x21xf32>
    %398 = arith.truncf %397 : vector<21x21xf32> to vector<21x21xbf16>
    %cst_147 = arith.constant dense<0.000000e+00> : vector<21x16xf32>
    %399 = tpu.matmul %398, %386, %cst_147 {dimension_numbers = #tpu.dot_dimension_numbers<[1], [0], [0], [1], [0, 0, 1, 1], [], []>} : vector<21x21xbf16>, vector<21x16xbf16>, vector<21x16xf32> -> vector<21x16xf32>
    %c0_148 = arith.constant 0 : index
    %c16_149 = arith.constant 16 : index
    %400 = vector.load %arg11[%c0_148, %c16_149] : memref<21x32xf32, #tpu.memory_space<vmem>>, vector<21x16xf32>
    tpu.vector_store %arg11[%c0_148, %c16_149], %399 {strides = array<i32>} : memref<21x32xf32, #tpu.memory_space<vmem>>, vector<21x16xf32>,
    %401 = vector.broadcast %331 : vector<1x32xf32> to vector<21x32xf32>
    %402 = arith.addf %298, %401 : vector<21x32xf32>
    %c0_150 = arith.constant 0 : index
    %c0_151 = arith.constant 0 : index
    %403 = vector.load %arg11[%c0_150, %c0_151] : memref<21x32xf32, #tpu.memory_space<vmem>>, vector<21x32xf32>
    %404 = arith.truncf %403 : vector<21x32xf32> to vector<21x32xbf16>
    %c2_152 = arith.constant 2 : index
    %c0_153 = arith.constant 0 : index
    %c0_154 = arith.constant 0 : index
    %405 = vector.load %arg5[%c2_152, %c0_153, %c0_154] : memref<4x32x32xbf16, #tpu.memory_space<vmem>>, vector<1x32x32xbf16>
    %406 = vector.shape_cast %405 : vector<1x32x32xbf16> to vector<32x32xbf16>
    %cst_155 = arith.constant dense<0.000000e+00> : vector<21x32xf32>
    %407 = tpu.matmul %404, %406, %cst_155 {dimension_numbers = #tpu.dot_dimension_numbers<[1], [0], [0], [1], [0, 0, 1, 1], [], []>} : vector<21x32xbf16>, vector<32x32xbf16>, vector<21x32xf32> -> vector<21x32xf32>
    %408 = arith.addf %402, %407 : vector<21x32xf32>
    %cst_156 = arith.constant dense<0.000000e+00> : vector<21xf32>
    %409 = vector.multi_reduction <add>, %408, %cst_156 [1] : vector<21x32xf32> to vector<21xf32>
    %410 = vector.shape_cast %409 : vector<21xf32> to vector<21x1xf32>
    %cst_157 = arith.constant 3.200000e+01 : f32
    %411 = vector.broadcast %cst_157 : f32 to vector<21x1xf32>
    %412 = arith.divf %410, %411 : vector<21x1xf32>
    %413 = vector.broadcast %412 : vector<21x1xf32> to vector<21x32xf32>
    %414 = arith.subf %408, %413 : vector<21x32xf32>
    %415 = arith.mulf %414, %414 : vector<21x32xf32>
    %cst_158 = arith.constant dense<0.000000e+00> : vector<21xf32>
    %416 = vector.multi_reduction <add>, %415, %cst_158 [1] : vector<21x32xf32> to vector<21xf32>
    %417 = vector.shape_cast %416 : vector<21xf32> to vector<21x1xf32>
    %cst_159 = arith.constant 3.200000e+01 : f32
    %418 = vector.broadcast %cst_159 : f32 to vector<21x1xf32>
    %419 = arith.divf %417, %418 : vector<21x1xf32>
    %cst_160 = arith.constant 9.99999997E-7 : f32
    %420 = vector.broadcast %cst_160 : f32 to vector<21x1xf32>
    %421 = arith.addf %419, %420 : vector<21x1xf32>
    %422 = math.rsqrt %421 : vector<21x1xf32>
    %423 = vector.broadcast %422 : vector<21x1xf32> to vector<21x32xf32>
    %424 = arith.mulf %414, %423 : vector<21x32xf32>
    %425 = vector.broadcast %328 : vector<1x32xf32> to vector<21x32xf32>
    %426 = arith.mulf %424, %425 : vector<21x32xf32>
    %427 = vector.broadcast %329 : vector<1x32xf32> to vector<21x32xf32>
    %428 = arith.addf %426, %427 : vector<21x32xf32>
    %429 = arith.truncf %428 : vector<21x32xf32> to vector<21x32xbf16>
    %c2_161 = arith.constant 2 : index
    %c0_162 = arith.constant 0 : index
    %c0_163 = arith.constant 0 : index
    %430 = vector.load %arg6[%c2_161, %c0_162, %c0_163] : memref<4x32x128xbf16, #tpu.memory_space<vmem>>, vector<1x32x128xbf16>
    %431 = vector.shape_cast %430 : vector<1x32x128xbf16> to vector<32x128xbf16>
    %cst_164 = arith.constant dense<0.000000e+00> : vector<21x128xf32>
    %432 = tpu.matmul %429, %431, %cst_164 {dimension_numbers = #tpu.dot_dimension_numbers<[1], [0], [0], [1], [0, 0, 1, 1], [], []>} : vector<21x32xbf16>, vector<32x128xbf16>, vector<21x128xf32> -> vector<21x128xf32>
    %433 = vector.broadcast %324 : vector<1x128xf32> to vector<21x128xf32>
    %434 = arith.addf %432, %433 : vector<21x128xf32>
    %cst_165 = arith.constant 5.000000e-01 : f32
    %435 = vector.broadcast %cst_165 : f32 to vector<21x128xf32>
    %436 = arith.mulf %435, %434 : vector<21x128xf32>
    %437 = arith.mulf %434, %434 : vector<21x128xf32>
    %438 = arith.mulf %437, %434 : vector<21x128xf32>
    %cst_166 = arith.constant 4.471500e-02 : f32
    %439 = vector.broadcast %cst_166 : f32 to vector<21x128xf32>
    %440 = arith.mulf %439, %438 : vector<21x128xf32>
    %441 = arith.addf %434, %440 : vector<21x128xf32>
    %cst_167 = arith.constant 0.797884583 : f32
    %442 = vector.broadcast %cst_167 : f32 to vector<21x128xf32>
    %443 = arith.mulf %442, %441 : vector<21x128xf32>
    %444 = math.tanh %443 : vector<21x128xf32>
    %cst_168 = arith.constant 1.000000e+00 : f32
    %445 = vector.broadcast %cst_168 : f32 to vector<21x128xf32>
    %446 = arith.addf %445, %444 : vector<21x128xf32>
    %447 = arith.mulf %436, %446 : vector<21x128xf32>
    %448 = vector.broadcast %332 : vector<1x32xf32> to vector<21x32xf32>
    %449 = arith.addf %408, %448 : vector<21x32xf32>
    %450 = arith.truncf %447 : vector<21x128xf32> to vector<21x128xbf16>
    %c2_169 = arith.constant 2 : index
    %c0_170 = arith.constant 0 : index
    %c0_171 = arith.constant 0 : index
    %451 = vector.load %arg7[%c2_169, %c0_170, %c0_171] : memref<4x128x32xbf16, #tpu.memory_space<vmem>>, vector<1x128x32xbf16>
    %452 = vector.shape_cast %451 : vector<1x128x32xbf16> to vector<128x32xbf16>
    %cst_172 = arith.constant dense<0.000000e+00> : vector<21x32xf32>
    %453 = tpu.matmul %450, %452, %cst_172 {dimension_numbers = #tpu.dot_dimension_numbers<[1], [0], [0], [1], [0, 0, 1, 1], [], []>} : vector<21x128xbf16>, vector<128x32xbf16>, vector<21x32xf32> -> vector<21x32xf32>
    %454 = arith.addf %449, %453 : vector<21x32xf32>
    %cst_173 = arith.constant dense<0.000000e+00> : vector<21xf32>
    %455 = vector.multi_reduction <add>, %454, %cst_173 [1] : vector<21x32xf32> to vector<21xf32>
    %456 = vector.shape_cast %455 : vector<21xf32> to vector<21x1xf32>
    %cst_174 = arith.constant 3.200000e+01 : f32
    %457 = vector.broadcast %cst_174 : f32 to vector<21x1xf32>
    %458 = arith.divf %456, %457 : vector<21x1xf32>
    %459 = vector.broadcast %458 : vector<21x1xf32> to vector<21x32xf32>
    %460 = arith.subf %454, %459 : vector<21x32xf32>
    %461 = arith.mulf %460, %460 : vector<21x32xf32>
    %cst_175 = arith.constant dense<0.000000e+00> : vector<21xf32>
    %462 = vector.multi_reduction <add>, %461, %cst_175 [1] : vector<21x32xf32> to vector<21xf32>
    %463 = vector.shape_cast %462 : vector<21xf32> to vector<21x1xf32>
    %cst_176 = arith.constant 3.200000e+01 : f32
    %464 = vector.broadcast %cst_176 : f32 to vector<21x1xf32>
    %465 = arith.divf %463, %464 : vector<21x1xf32>
    %cst_177 = arith.constant 9.99999997E-7 : f32
    %466 = vector.broadcast %cst_177 : f32 to vector<21x1xf32>
    %467 = arith.addf %465, %466 : vector<21x1xf32>
    %468 = math.rsqrt %467 : vector<21x1xf32>
    %469 = vector.broadcast %468 : vector<21x1xf32> to vector<21x32xf32>
    %470 = arith.mulf %460, %469 : vector<21x32xf32>
    %471 = vector.broadcast %333 : vector<1x32xf32> to vector<21x32xf32>
    %472 = arith.mulf %470, %471 : vector<21x32xf32>
    %473 = vector.broadcast %334 : vector<1x32xf32> to vector<21x32xf32>
    %474 = arith.addf %472, %473 : vector<21x32xf32>
    %c0_178 = arith.constant 0 : index
    %c0_179 = arith.constant 0 : index
    %c64 = arith.constant 64 : index
    %475 = vector.load %arg9[%c0_178, %c0_179, %c64] : memref<1x21x128xf32, #tpu.memory_space<vmem>>, vector<1x21x32xf32>
    %476 = vector.shape_cast %475 : vector<1x21x32xf32> to vector<21x32xf32>
    %477 = vector.shape_cast %474 : vector<21x32xf32> to vector<1x21x32xf32>
    tpu.vector_store %arg9[%c0_178, %c0_179, %c64], %477 {strides = array<i32>} : memref<1x21x128xf32, #tpu.memory_space<vmem>>, vector<1x21x32xf32>,
    %c12 = arith.constant 12 : index
    %c0_180 = arith.constant 0 : index
    %478 = vector.load %arg8[%c12, %c0_180] : memref<16x128xf32, #tpu.memory_space<vmem>>, vector<1x128xf32>
    %c13 = arith.constant 13 : index
    %c0_181 = arith.constant 0 : index
    %479 = vector.load %arg8[%c13, %c0_181] : memref<16x128xf32, #tpu.memory_space<vmem>>, vector<1x128xf32>
    %c14 = arith.constant 14 : index
    %c0_182 = arith.constant 0 : index
    %480 = vector.load %arg8[%c14, %c0_182] : memref<16x128xf32, #tpu.memory_space<vmem>>, vector<1x128xf32>
    %c15 = arith.constant 15 : index
    %c0_183 = arith.constant 0 : index
    %481 = vector.load %arg8[%c15, %c0_183] : memref<16x128xf32, #tpu.memory_space<vmem>>, vector<1x128xf32>
    %482 = vector.extract_strided_slice %478 {offsets = [0, 0], sizes = [1, 32], strides = [1, 1]} : vector<1x128xf32> to vector<1x32xf32>
    %483 = vector.extract_strided_slice %478 {offsets = [0, 32], sizes = [1, 32], strides = [1, 1]} : vector<1x128xf32> to vector<1x32xf32>
    %484 = vector.extract_strided_slice %478 {offsets = [0, 64], sizes = [1, 32], strides = [1, 1]} : vector<1x128xf32> to vector<1x32xf32>
    %485 = vector.extract_strided_slice %478 {offsets = [0, 96], sizes = [1, 32], strides = [1, 1]} : vector<1x128xf32> to vector<1x32xf32>
    %486 = vector.extract_strided_slice %479 {offsets = [0, 0], sizes = [1, 96], strides = [1, 1]} : vector<1x128xf32> to vector<1x96xf32>
    %487 = vector.extract_strided_slice %479 {offsets = [0, 96], sizes = [1, 32], strides = [1, 1]} : vector<1x128xf32> to vector<1x32xf32>
    %488 = vector.extract_strided_slice %481 {offsets = [0, 0], sizes = [1, 32], strides = [1, 1]} : vector<1x128xf32> to vector<1x32xf32>
    %489 = vector.extract_strided_slice %481 {offsets = [0, 32], sizes = [1, 32], strides = [1, 1]} : vector<1x128xf32> to vector<1x32xf32>
    %490 = vector.extract_strided_slice %481 {offsets = [0, 64], sizes = [1, 32], strides = [1, 1]} : vector<1x128xf32> to vector<1x32xf32>
    %cst_184 = arith.constant dense<0.000000e+00> : vector<21xf32>
    %491 = vector.multi_reduction <add>, %454, %cst_184 [1] : vector<21x32xf32> to vector<21xf32>
    %492 = vector.shape_cast %491 : vector<21xf32> to vector<21x1xf32>
    %cst_185 = arith.constant 3.200000e+01 : f32
    %493 = vector.broadcast %cst_185 : f32 to vector<21x1xf32>
    %494 = arith.divf %492, %493 : vector<21x1xf32>
    %495 = vector.broadcast %494 : vector<21x1xf32> to vector<21x32xf32>
    %496 = arith.subf %454, %495 : vector<21x32xf32>
    %497 = arith.mulf %496, %496 : vector<21x32xf32>
    %cst_186 = arith.constant dense<0.000000e+00> : vector<21xf32>
    %498 = vector.multi_reduction <add>, %497, %cst_186 [1] : vector<21x32xf32> to vector<21xf32>
    %499 = vector.shape_cast %498 : vector<21xf32> to vector<21x1xf32>
    %cst_187 = arith.constant 3.200000e+01 : f32
    %500 = vector.broadcast %cst_187 : f32 to vector<21x1xf32>
    %501 = arith.divf %499, %500 : vector<21x1xf32>
    %cst_188 = arith.constant 9.99999997E-7 : f32
    %502 = vector.broadcast %cst_188 : f32 to vector<21x1xf32>
    %503 = arith.addf %501, %502 : vector<21x1xf32>
    %504 = math.rsqrt %503 : vector<21x1xf32>
    %505 = vector.broadcast %504 : vector<21x1xf32> to vector<21x32xf32>
    %506 = arith.mulf %496, %505 : vector<21x32xf32>
    %507 = vector.broadcast %482 : vector<1x32xf32> to vector<21x32xf32>
    %508 = arith.mulf %506, %507 : vector<21x32xf32>
    %509 = vector.broadcast %483 : vector<1x32xf32> to vector<21x32xf32>
    %510 = arith.addf %508, %509 : vector<21x32xf32>
    %511 = arith.truncf %510 : vector<21x32xf32> to vector<21x32xbf16>
    %c3_189 = arith.constant 3 : index
    %c0_190 = arith.constant 0 : index
    %c0_191 = arith.constant 0 : index
    %512 = vector.load %arg4[%c3_189, %c0_190, %c0_191] : memref<4x32x96xbf16, #tpu.memory_space<vmem>>, vector<1x32x96xbf16>
    %513 = vector.shape_cast %512 : vector<1x32x96xbf16> to vector<32x96xbf16>
    %cst_192 = arith.constant dense<0.000000e+00> : vector<21x96xf32>
    %514 = tpu.matmul %511, %513, %cst_192 {dimension_numbers = #tpu.dot_dimension_numbers<[1], [0], [0], [1], [0, 0, 1, 1], [], []>} : vector<21x32xbf16>, vector<32x96xbf16>, vector<21x96xf32> -> vector<21x96xf32>
    %515 = vector.broadcast %486 : vector<1x96xf32> to vector<21x96xf32>
    %516 = arith.addf %514, %515 : vector<21x96xf32>
    %517 = vector.extract_strided_slice %516 {offsets = [0, 0], sizes = [21, 16], strides = [1, 1]} : vector<21x96xf32> to vector<21x16xf32>
    %518 = arith.truncf %517 : vector<21x16xf32> to vector<21x16xbf16>
    %519 = vector.extract_strided_slice %516 {offsets = [0, 32], sizes = [21, 16], strides = [1, 1]} : vector<21x96xf32> to vector<21x16xf32>
    %520 = arith.truncf %519 : vector<21x16xf32> to vector<21x16xbf16>
    %521 = vector.extract_strided_slice %516 {offsets = [0, 64], sizes = [21, 16], strides = [1, 1]} : vector<21x96xf32> to vector<21x16xf32>
    %522 = arith.truncf %521 : vector<21x16xf32> to vector<21x16xbf16>
    %cst_193 = arith.constant dense<0.000000e+00> : vector<21x21xf32>
    %523 = tpu.matmul %518, %520, %cst_193 {dimension_numbers = #tpu.dot_dimension_numbers<[1], [1], [0], [0], [0, 0, 1, 0], [], []>} : vector<21x16xbf16>, vector<21x16xbf16>, vector<21x21xf32> -> vector<21x21xf32>
    %cst_194 = arith.constant dense<0xFF800000> : vector<21xf32>
    %524 = vector.multi_reduction <maximumf>, %523, %cst_194 [1] : vector<21x21xf32> to vector<21xf32>
    %525 = vector.shape_cast %524 : vector<21xf32> to vector<21x1xf32>
    %526 = vector.broadcast %525 : vector<21x1xf32> to vector<21x21xf32>
    %527 = arith.subf %523, %526 : vector<21x21xf32>
    %528 = math.exp %527 : vector<21x21xf32>
    %cst_195 = arith.constant dense<0.000000e+00> : vector<21xf32>
    %529 = vector.multi_reduction <add>, %528, %cst_195 [1] : vector<21x21xf32> to vector<21xf32>
    %530 = vector.shape_cast %529 : vector<21xf32> to vector<21x1xf32>
    %531 = tpu.reciprocal %530 {approx = true} : vector<21x1xf32> -> vector<21x1xf32>
    %532 = vector.broadcast %531 : vector<21x1xf32> to vector<21x21xf32>
    %533 = arith.mulf %528, %532 : vector<21x21xf32>
    %534 = arith.truncf %533 : vector<21x21xf32> to vector<21x21xbf16>
    %cst_196 = arith.constant dense<0.000000e+00> : vector<21x16xf32>
    %535 = tpu.matmul %534, %522, %cst_196 {dimension_numbers = #tpu.dot_dimension_numbers<[1], [0], [0], [1], [0, 0, 1, 1], [], []>} : vector<21x21xbf16>, vector<21x16xbf16>, vector<21x16xf32> -> vector<21x16xf32>
    %c0_197 = arith.constant 0 : index
    %c0_198 = arith.constant 0 : index
    %536 = vector.load %arg11[%c0_197, %c0_198] : memref<21x32xf32, #tpu.memory_space<vmem>>, vector<21x16xf32>
    tpu.vector_store %arg11[%c0_197, %c0_198], %535 {strides = array<i32>} : memref<21x32xf32, #tpu.memory_space<vmem>>, vector<21x16xf32>,
    %537 = vector.extract_strided_slice %516 {offsets = [0, 16], sizes = [21, 16], strides = [1, 1]} : vector<21x96xf32> to vector<21x16xf32>
    %538 = arith.truncf %537 : vector<21x16xf32> to vector<21x16xbf16>
    %539 = vector.extract_strided_slice %516 {offsets = [0, 48], sizes = [21, 16], strides = [1, 1]} : vector<21x96xf32> to vector<21x16xf32>
    %540 = arith.truncf %539 : vector<21x16xf32> to vector<21x16xbf16>
    %541 = vector.extract_strided_slice %516 {offsets = [0, 80], sizes = [21, 16], strides = [1, 1]} : vector<21x96xf32> to vector<21x16xf32>
    %542 = arith.truncf %541 : vector<21x16xf32> to vector<21x16xbf16>
    %cst_199 = arith.constant dense<0.000000e+00> : vector<21x21xf32>
    %543 = tpu.matmul %538, %540, %cst_199 {dimension_numbers = #tpu.dot_dimension_numbers<[1], [1], [0], [0], [0, 0, 1, 0], [], []>} : vector<21x16xbf16>, vector<21x16xbf16>, vector<21x21xf32> -> vector<21x21xf32>
    %cst_200 = arith.constant dense<0xFF800000> : vector<21xf32>
    %544 = vector.multi_reduction <maximumf>, %543, %cst_200 [1] : vector<21x21xf32> to vector<21xf32>
    %545 = vector.shape_cast %544 : vector<21xf32> to vector<21x1xf32>
    %546 = vector.broadcast %545 : vector<21x1xf32> to vector<21x21xf32>
    %547 = arith.subf %543, %546 : vector<21x21xf32>
    %548 = math.exp %547 : vector<21x21xf32>
    %cst_201 = arith.constant dense<0.000000e+00> : vector<21xf32>
    %549 = vector.multi_reduction <add>, %548, %cst_201 [1] : vector<21x21xf32> to vector<21xf32>
    %550 = vector.shape_cast %549 : vector<21xf32> to vector<21x1xf32>
    %551 = tpu.reciprocal %550 {approx = true} : vector<21x1xf32> -> vector<21x1xf32>
    %552 = vector.broadcast %551 : vector<21x1xf32> to vector<21x21xf32>
    %553 = arith.mulf %548, %552 : vector<21x21xf32>
    %554 = arith.truncf %553 : vector<21x21xf32> to vector<21x21xbf16>
    %cst_202 = arith.constant dense<0.000000e+00> : vector<21x16xf32>
    %555 = tpu.matmul %554, %542, %cst_202 {dimension_numbers = #tpu.dot_dimension_numbers<[1], [0], [0], [1], [0, 0, 1, 1], [], []>} : vector<21x21xbf16>, vector<21x16xbf16>, vector<21x16xf32> -> vector<21x16xf32>
    %c0_203 = arith.constant 0 : index
    %c16_204 = arith.constant 16 : index
    %556 = vector.load %arg11[%c0_203, %c16_204] : memref<21x32xf32, #tpu.memory_space<vmem>>, vector<21x16xf32>
    tpu.vector_store %arg11[%c0_203, %c16_204], %555 {strides = array<i32>} : memref<21x32xf32, #tpu.memory_space<vmem>>, vector<21x16xf32>,
    %557 = vector.broadcast %487 : vector<1x32xf32> to vector<21x32xf32>
    %558 = arith.addf %454, %557 : vector<21x32xf32>
    %c0_205 = arith.constant 0 : index
    %c0_206 = arith.constant 0 : index
    %559 = vector.load %arg11[%c0_205, %c0_206] : memref<21x32xf32, #tpu.memory_space<vmem>>, vector<21x32xf32>
    %560 = arith.truncf %559 : vector<21x32xf32> to vector<21x32xbf16>
    %c3_207 = arith.constant 3 : index
    %c0_208 = arith.constant 0 : index
    %c0_209 = arith.constant 0 : index
    %561 = vector.load %arg5[%c3_207, %c0_208, %c0_209] : memref<4x32x32xbf16, #tpu.memory_space<vmem>>, vector<1x32x32xbf16>
    %562 = vector.shape_cast %561 : vector<1x32x32xbf16> to vector<32x32xbf16>
    %cst_210 = arith.constant dense<0.000000e+00> : vector<21x32xf32>
    %563 = tpu.matmul %560, %562, %cst_210 {dimension_numbers = #tpu.dot_dimension_numbers<[1], [0], [0], [1], [0, 0, 1, 1], [], []>} : vector<21x32xbf16>, vector<32x32xbf16>, vector<21x32xf32> -> vector<21x32xf32>
    %564 = arith.addf %558, %563 : vector<21x32xf32>
    %cst_211 = arith.constant dense<0.000000e+00> : vector<21xf32>
    %565 = vector.multi_reduction <add>, %564, %cst_211 [1] : vector<21x32xf32> to vector<21xf32>
    %566 = vector.shape_cast %565 : vector<21xf32> to vector<21x1xf32>
    %cst_212 = arith.constant 3.200000e+01 : f32
    %567 = vector.broadcast %cst_212 : f32 to vector<21x1xf32>
    %568 = arith.divf %566, %567 : vector<21x1xf32>
    %569 = vector.broadcast %568 : vector<21x1xf32> to vector<21x32xf32>
    %570 = arith.subf %564, %569 : vector<21x32xf32>
    %571 = arith.mulf %570, %570 : vector<21x32xf32>
    %cst_213 = arith.constant dense<0.000000e+00> : vector<21xf32>
    %572 = vector.multi_reduction <add>, %571, %cst_213 [1] : vector<21x32xf32> to vector<21xf32>
    %573 = vector.shape_cast %572 : vector<21xf32> to vector<21x1xf32>
    %cst_214 = arith.constant 3.200000e+01 : f32
    %574 = vector.broadcast %cst_214 : f32 to vector<21x1xf32>
    %575 = arith.divf %573, %574 : vector<21x1xf32>
    %cst_215 = arith.constant 9.99999997E-7 : f32
    %576 = vector.broadcast %cst_215 : f32 to vector<21x1xf32>
    %577 = arith.addf %575, %576 : vector<21x1xf32>
    %578 = math.rsqrt %577 : vector<21x1xf32>
    %579 = vector.broadcast %578 : vector<21x1xf32> to vector<21x32xf32>
    %580 = arith.mulf %570, %579 : vector<21x32xf32>
    %581 = vector.broadcast %484 : vector<1x32xf32> to vector<21x32xf32>
    %582 = arith.mulf %580, %581 : vector<21x32xf32>
    %583 = vector.broadcast %485 : vector<1x32xf32> to vector<21x32xf32>
    %584 = arith.addf %582, %583 : vector<21x32xf32>
    %585 = arith.truncf %584 : vector<21x32xf32> to vector<21x32xbf16>
    %c3_216 = arith.constant 3 : index
    %c0_217 = arith.constant 0 : index
    %c0_218 = arith.constant 0 : index
    %586 = vector.load %arg6[%c3_216, %c0_217, %c0_218] : memref<4x32x128xbf16, #tpu.memory_space<vmem>>, vector<1x32x128xbf16>
    %587 = vector.shape_cast %586 : vector<1x32x128xbf16> to vector<32x128xbf16>
    %cst_219 = arith.constant dense<0.000000e+00> : vector<21x128xf32>
    %588 = tpu.matmul %585, %587, %cst_219 {dimension_numbers = #tpu.dot_dimension_numbers<[1], [0], [0], [1], [0, 0, 1, 1], [], []>} : vector<21x32xbf16>, vector<32x128xbf16>, vector<21x128xf32> -> vector<21x128xf32>
    %589 = vector.broadcast %480 : vector<1x128xf32> to vector<21x128xf32>
    %590 = arith.addf %588, %589 : vector<21x128xf32>
    %cst_220 = arith.constant 5.000000e-01 : f32
    %591 = vector.broadcast %cst_220 : f32 to vector<21x128xf32>
    %592 = arith.mulf %591, %590 : vector<21x128xf32>
    %593 = arith.mulf %590, %590 : vector<21x128xf32>
    %594 = arith.mulf %593, %590 : vector<21x128xf32>
    %cst_221 = arith.constant 4.471500e-02 : f32
    %595 = vector.broadcast %cst_221 : f32 to vector<21x128xf32>
    %596 = arith.mulf %595, %594 : vector<21x128xf32>
    %597 = arith.addf %590, %596 : vector<21x128xf32>
    %cst_222 = arith.constant 0.797884583 : f32
    %598 = vector.broadcast %cst_222 : f32 to vector<21x128xf32>
    %599 = arith.mulf %598, %597 : vector<21x128xf32>
    %600 = math.tanh %599 : vector<21x128xf32>
    %cst_223 = arith.constant 1.000000e+00 : f32
    %601 = vector.broadcast %cst_223 : f32 to vector<21x128xf32>
    %602 = arith.addf %601, %600 : vector<21x128xf32>
    %603 = arith.mulf %592, %602 : vector<21x128xf32>
    %604 = vector.broadcast %488 : vector<1x32xf32> to vector<21x32xf32>
    %605 = arith.addf %564, %604 : vector<21x32xf32>
    %606 = arith.truncf %603 : vector<21x128xf32> to vector<21x128xbf16>
    %c3_224 = arith.constant 3 : index
    %c0_225 = arith.constant 0 : index
    %c0_226 = arith.constant 0 : index
    %607 = vector.load %arg7[%c3_224, %c0_225, %c0_226] : memref<4x128x32xbf16, #tpu.memory_space<vmem>>, vector<1x128x32xbf16>
    %608 = vector.shape_cast %607 : vector<1x128x32xbf16> to vector<128x32xbf16>
    %cst_227 = arith.constant dense<0.000000e+00> : vector<21x32xf32>
    %609 = tpu.matmul %606, %608, %cst_227 {dimension_numbers = #tpu.dot_dimension_numbers<[1], [0], [0], [1], [0, 0, 1, 1], [], []>} : vector<21x128xbf16>, vector<128x32xbf16>, vector<21x32xf32> -> vector<21x32xf32>
    %610 = arith.addf %605, %609 : vector<21x32xf32>
    %cst_228 = arith.constant dense<0.000000e+00> : vector<21xf32>
    %611 = vector.multi_reduction <add>, %610, %cst_228 [1] : vector<21x32xf32> to vector<21xf32>
    %612 = vector.shape_cast %611 : vector<21xf32> to vector<21x1xf32>
    %cst_229 = arith.constant 3.200000e+01 : f32
    %613 = vector.broadcast %cst_229 : f32 to vector<21x1xf32>
    %614 = arith.divf %612, %613 : vector<21x1xf32>
    %615 = vector.broadcast %614 : vector<21x1xf32> to vector<21x32xf32>
    %616 = arith.subf %610, %615 : vector<21x32xf32>
    %617 = arith.mulf %616, %616 : vector<21x32xf32>
    %cst_230 = arith.constant dense<0.000000e+00> : vector<21xf32>
    %618 = vector.multi_reduction <add>, %617, %cst_230 [1] : vector<21x32xf32> to vector<21xf32>
    %619 = vector.shape_cast %618 : vector<21xf32> to vector<21x1xf32>
    %cst_231 = arith.constant 3.200000e+01 : f32
    %620 = vector.broadcast %cst_231 : f32 to vector<21x1xf32>
    %621 = arith.divf %619, %620 : vector<21x1xf32>
    %cst_232 = arith.constant 9.99999997E-7 : f32
    %622 = vector.broadcast %cst_232 : f32 to vector<21x1xf32>
    %623 = arith.addf %621, %622 : vector<21x1xf32>
    %624 = math.rsqrt %623 : vector<21x1xf32>
    %625 = vector.broadcast %624 : vector<21x1xf32> to vector<21x32xf32>
    %626 = arith.mulf %616, %625 : vector<21x32xf32>
    %627 = vector.broadcast %489 : vector<1x32xf32> to vector<21x32xf32>
    %628 = arith.mulf %626, %627 : vector<21x32xf32>
    %629 = vector.broadcast %490 : vector<1x32xf32> to vector<21x32xf32>
    %630 = arith.addf %628, %629 : vector<21x32xf32>
    %c0_233 = arith.constant 0 : index
    %c0_234 = arith.constant 0 : index
    %c96 = arith.constant 96 : index
    %631 = vector.load %arg9[%c0_233, %c0_234, %c96] : memref<1x21x128xf32, #tpu.memory_space<vmem>>, vector<1x21x32xf32>
    %632 = vector.shape_cast %631 : vector<1x21x32xf32> to vector<21x32xf32>
    %633 = vector.shape_cast %630 : vector<21x32xf32> to vector<1x21x32xf32>
    tpu.vector_store %arg9[%c0_233, %c0_234, %c96], %633 {strides = array<i32>} : memref<1x21x128xf32, #tpu.memory_space<vmem>>, vector<1x21x32xf32>,
    return
  }
  func.func @transform_0(%arg0: i32) -> (i32, i32, i32) {
    %c0_i32 = arith.constant 0 : i32
    %c0_i32_0 = arith.constant 0 : i32
    %c0_i32_1 = arith.constant 0 : i32
    return %arg0, %c0_i32, %c0_i32_0 : i32, i32, i32
  }
  func.func @transform_1(%arg0: i32) -> (i32, i32) {
    %c0_i32 = arith.constant 0 : i32
    %c0_i32_0 = arith.constant 0 : i32
    %c0_i32_1 = arith.constant 0 : i32
    return %c0_i32, %c0_i32_0 : i32, i32
  }
  func.func @transform_2(%arg0: i32) -> (i32, i32) {
    %c0_i32 = arith.constant 0 : i32
    %c0_i32_0 = arith.constant 0 : i32
    %c0_i32_1 = arith.constant 0 : i32
    return %c0_i32, %c0_i32_0 : i32, i32
  }
  func.func @transform_3(%arg0: i32) -> (i32, i32, i32) {
    %c0_i32 = arith.constant 0 : i32
    %c0_i32_0 = arith.constant 0 : i32
    %c0_i32_1 = arith.constant 0 : i32
    %c0_i32_2 = arith.constant 0 : i32
    return %c0_i32, %c0_i32_0, %c0_i32_1 : i32, i32, i32
  }
  func.func @transform_4(%arg0: i32) -> (i32, i32, i32) {
    %c0_i32 = arith.constant 0 : i32
    %c0_i32_0 = arith.constant 0 : i32
    %c0_i32_1 = arith.constant 0 : i32
    %c0_i32_2 = arith.constant 0 : i32
    return %c0_i32, %c0_i32_0, %c0_i32_1 : i32, i32, i32
  }
  func.func @transform_5(%arg0: i32) -> (i32, i32, i32) {
    %c0_i32 = arith.constant 0 : i32
    %c0_i32_0 = arith.constant 0 : i32
    %c0_i32_1 = arith.constant 0 : i32
    %c0_i32_2 = arith.constant 0 : i32
    return %c0_i32, %c0_i32_0, %c0_i32_1 : i32, i32, i32
  }
  func.func @transform_6(%arg0: i32) -> (i32, i32, i32) {
    %c0_i32 = arith.constant 0 : i32
    %c0_i32_0 = arith.constant 0 : i32
    %c0_i32_1 = arith.constant 0 : i32
    %c0_i32_2 = arith.constant 0 : i32
    return %c0_i32, %c0_i32_0, %c0_i32_1 : i32, i32, i32
  }
  func.func @transform_7(%arg0: i32) -> (i32, i32) {
    %c0_i32 = arith.constant 0 : i32
    %c0_i32_0 = arith.constant 0 : i32
    %c0_i32_1 = arith.constant 0 : i32
    return %c0_i32, %c0_i32_0 : i32, i32
  }
  func.func @transform_8(%arg0: i32) -> (i32, i32, i32) {
    %c0_i32 = arith.constant 0 : i32
    %c0_i32_0 = arith.constant 0 : i32
    %c0_i32_1 = arith.constant 0 : i32
    return %arg0, %c0_i32, %c0_i32_0 : i32, i32, i32
  }
}

</mosaic_0001>

<llo_original>
// kernel: _lambda_.1
$region0: #{_lambda_.1}
  #allocation0 [shape = 'u32[]', space=smem, size = 0x4, offset = 0x4, fixed_abs, tag = 'smem constant byte address 0x4 - core index']
  #allocation1 [shape = 'u32[72,128]{1,0:T(1,128)}', space=vmem, size = 0x9000, scoped, tag = 'internal scratch']
  #allocation2 [shape = 'f32[21,32]{1,0:T(8,128)}', space=vmem, size = 0x3000, scoped, tag = 'scratch operand']
  #allocation3 [shape = 'f32[21,32]{1,0:T(8,128)}', space=vmem, size = 0x3000, scoped, tag = 'scratch operand']
  %s0 = inlined_call_operand.vmem [shape: bf16[2,16,640], index: 0, kind: input, shape index: {}]
  %s1 = inlined_call_operand.vmem [shape: f32[21,32], index: 1, kind: input, shape index: {}]
  %s2 = inlined_call_operand.vmem [shape: bf16[640,32], index: 2, kind: input, shape index: {}]
  %s3 = inlined_call_operand.vmem [shape: bf16[4,32,96], index: 3, kind: input, shape index: {}]
  %s4 = inlined_call_operand.vmem [shape: bf16[4,32,32], index: 4, kind: input, shape index: {}]
  %s5 = inlined_call_operand.vmem [shape: bf16[4,32,128], index: 5, kind: input, shape index: {}]
  %s6 = inlined_call_operand.vmem [shape: bf16[4,128,32], index: 6, kind: input, shape index: {}]
  %s7 = inlined_call_operand.vmem [shape: f32[16,128], index: 7, kind: input, shape index: {}]
  %s8 = inlined_call_operand.vmem [shape: f32[2,21,128], index: 8, kind: output, shape index: {}]
  %s9 = sld [smem:[#allocation0]]
  $region65: #{_lambda_.1} parent=0
    _
  %s11 = ssub.s32 1, %s9
  %s12 = scalar_select 0, %s11, %s9
  loop: start=0, step=1, limit=4
  $region2: #{_lambda_.1} parent=0 // loop_pre_header
    _
  $region3: #{_lambda_.1} parent=0 // loop_header
    %s14 = sphi 0, %s18
    %p15 = scmp.ge.s32.totalorder %s14, 4
    %s24 = sphi 0, %s26
    %s27 = sphi 0, %s24
    %s28 = sphi 0, %s27
    %s44 = sphi 0, %s28
    %s48 = sphi 0, %s48
    %s50 = sphi 0, %s48
    %s51 = sphi 0, %s50
    %s65 = sphi 0, %s51
    %s69 = sphi 0, %s69
    %s71 = sphi 0, %s69
    %s72 = sphi 0, %s71
    %s86 = sphi 0, %s72
    %s90 = sphi 0, %s90
    %s92 = sphi 0, %s90
    %s93 = sphi 0, %s92
    %s107 = sphi 0, %s93
    %s111 = sphi 0, %s111
    %s113 = sphi 0, %s111
    %s114 = sphi 0, %s113
    %s128 = sphi 0, %s114
    %s132 = sphi 0, %s132
    %s134 = sphi 0, %s132
    %s135 = sphi 0, %s134
    %s149 = sphi 0, %s135
    %s153 = sphi 0, %s153
    %s155 = sphi 0, %s153
    %s156 = sphi 0, %s155
    %s170 = sphi 0, %s156
    %s174 = sphi 0, %s174
    %s176 = sphi 0, %s174
    %s177 = sphi 0, %s176
    %s191 = sphi 0, %s177
    %s197 = sphi 0, %s199
    %s200 = sphi 0, %s197
    %s201 = sphi 0, %s200
    %s217 = sphi 0, %s201
  $region4: #{_lambda_.1} parent=0 // loop_header_branch
    %17 = sbr.rel (%p15) target = $region8
  $region5: #{_lambda_.1} parent=0 // loop_body
    %s19 = ssub.s32 %s14, 1
    %s20 = ssub.s32 %s14, 2
    %s21 = sadd.s32 %s14, 1
    %s22 = ssub.s32 %s14, %s21
    %p23 = scmp.eq.s32.totalorder %s22, 0
    %s25 = sadd.s32 %s24, 1
    %s26 = scalar_select %p23, %s24, %s25
    %p29 = pneg %p23
    %p30 = scmp.eq.s32.totalorder %s14, 1
    %p31 = por %p29, %p30
    %p32 = scmp.ne.s32.totalorder %s24, %s27
    %p33 = scmp.eq.s32.totalorder %s14, 0
    %p34 = por %p32, %p33
    %p35 = scmp.ne.s32.totalorder %s24, %s27
    %p36 = scmp.eq.s32.totalorder %s19, 1
    %p37 = por %p35, %p36
    %p38 = scmp.ne.s32.totalorder %s27, %s28
    %p39 = scmp.eq.s32.totalorder %s19, 0
    %p40 = por %p38, %p39
    %p41 = scmp.ne.s32.totalorder %s27, %s28
    %p42 = scmp.eq.s32.totalorder %s20, 1
    %p43 = por %p41, %p42
    %p45 = scmp.ne.s32.totalorder %s28, %s44
    %p46 = scmp.eq.s32.totalorder %s20, 0
    %p47 = por %p45, %p46
    %s49 = sadd.s32 %s48, 1
    %p52 = scmp.eq.s32.totalorder %s14, 1
    %p53 = scmp.ne.s32.totalorder %s48, %s50
    %p54 = scmp.eq.s32.totalorder %s14, 0
    %p55 = por %p53, %p54
    %p56 = scmp.ne.s32.totalorder %s48, %s50
    %p57 = scmp.eq.s32.totalorder %s19, 1
    %p58 = por %p56, %p57
    %p59 = scmp.ne.s32.totalorder %s50, %s51
    %p60 = scmp.eq.s32.totalorder %s19, 0
    %p61 = por %p59, %p60
    %p62 = scmp.ne.s32.totalorder %s50, %s51
    %p63 = scmp.eq.s32.totalorder %s20, 1
    %p64 = por %p62, %p63
    %p66 = scmp.ne.s32.totalorder %s51, %s65
    %p67 = scmp.eq.s32.totalorder %s20, 0
    %p68 = por %p66, %p67
    %s70 = sadd.s32 %s69, 1
    %p73 = scmp.eq.s32.totalorder %s14, 1
    %p74 = scmp.ne.s32.totalorder %s69, %s71
    %p75 = scmp.eq.s32.totalorder %s14, 0
    %p76 = por %p74, %p75
    %p77 = scmp.ne.s32.totalorder %s69, %s71
    %p78 = scmp.eq.s32.totalorder %s19, 1
    %p79 = por %p77, %p78
    %p80 = scmp.ne.s32.totalorder %s71, %s72
    %p81 = scmp.eq.s32.totalorder %s19, 0
    %p82 = por %p80, %p81
    %p83 = scmp.ne.s32.totalorder %s71, %s72
    %p84 = scmp.eq.s32.totalorder %s20, 1
    %p85 = por %p83, %p84
    %p87 = scmp.ne.s32.totalorder %s72, %s86
    %p88 = scmp.eq.s32.totalorder %s20, 0
    %p89 = por %p87, %p88
    %s91 = sadd.s32 %s90, 1
    %p94 = scmp.eq.s32.totalorder %s14, 1
    %p95 = scmp.ne.s32.totalorder %s90, %s92
    %p96 = scmp.eq.s32.totalorder %s14, 0
    %p97 = por %p95, %p96
    %p98 = scmp.ne.s32.totalorder %s90, %s92
    %p99 = scmp.eq.s32.totalorder %s19, 1
    %p100 = por %p98, %p99
    %p101 = scmp.ne.s32.totalorder %s92, %s93
    %p102 = scmp.eq.s32.totalorder %s19, 0
    %p103 = por %p101, %p102
    %p104 = scmp.ne.s32.totalorder %s92, %s93
    %p105 = scmp.eq.s32.totalorder %s20, 1
    %p106 = por %p104, %p105
    %p108 = scmp.ne.s32.totalorder %s93, %s107
    %p109 = scmp.eq.s32.totalorder %s20, 0
    %p110 = por %p108, %p109
    %s112 = sadd.s32 %s111, 1
    %p115 = scmp.eq.s32.totalorder %s14, 1
    %p116 = scmp.ne.s32.totalorder %s111, %s113
    %p117 = scmp.eq.s32.totalorder %s14, 0
    %p118 = por %p116, %p117
    %p119 = scmp.ne.s32.totalorder %s111, %s113
    %p120 = scmp.eq.s32.totalorder %s19, 1
    %p121 = por %p119, %p120
    %p122 = scmp.ne.s32.totalorder %s113, %s114
    %p123 = scmp.eq.s32.totalorder %s19, 0
    %p124 = por %p122, %p123
    %p125 = scmp.ne.s32.totalorder %s113, %s114
    %p126 = scmp.eq.s32.totalorder %s20, 1
    %p127 = por %p125, %p126
    %p129 = scmp.ne.s32.totalorder %s114, %s128
    %p130 = scmp.eq.s32.totalorder %s20, 0
    %p131 = por %p129, %p130
    %s133 = sadd.s32 %s132, 1
    %p136 = scmp.eq.s32.totalorder %s14, 1
    %p137 = scmp.ne.s32.totalorder %s132, %s134
    %p138 = scmp.eq.s32.totalorder %s14, 0
    %p139 = por %p137, %p138
    %p140 = scmp.ne.s32.totalorder %s132, %s134
    %p141 = scmp.eq.s32.totalorder %s19, 1
    %p142 = por %p140, %p141
    %p143 = scmp.ne.s32.totalorder %s134, %s135
    %p144 = scmp.eq.s32.totalorder %s19, 0
    %p145 = por %p143, %p144
    %p146 = scmp.ne.s32.totalorder %s134, %s135
    %p147 = scmp.eq.s32.totalorder %s20, 1
    %p148 = por %p146, %p147
    %p150 = scmp.ne.s32.totalorder %s135, %s149
    %p151 = scmp.eq.s32.totalorder %s20, 0
    %p152 = por %p150, %p151
    %s154 = sadd.s32 %s153, 1
    %p157 = scmp.eq.s32.totalorder %s14, 1
    %p158 = scmp.ne.s32.totalorder %s153, %s155
    %p159 = scmp.eq.s32.totalorder %s14, 0
    %p160 = por %p158, %p159
    %p161 = scmp.ne.s32.totalorder %s153, %s155
    %p162 = scmp.eq.s32.totalorder %s19, 1
    %p163 = por %p161, %p162
    %p164 = scmp.ne.s32.totalorder %s155, %s156
    %p165 = scmp.eq.s32.totalorder %s19, 0
    %p166 = por %p164, %p165
    %p167 = scmp.ne.s32.totalorder %s155, %s156
    %p168 = scmp.eq.s32.totalorder %s20, 1
    %p169 = por %p167, %p168
    %p171 = scmp.ne.s32.totalorder %s156, %s170
    %p172 = scmp.eq.s32.totalorder %s20, 0
    %p173 = por %p171, %p172
    %s175 = sadd.s32 %s174, 1
    %p178 = scmp.eq.s32.totalorder %s14, 1
    %p179 = scmp.ne.s32.totalorder %s174, %s176
    %p180 = scmp.eq.s32.totalorder %s14, 0
    %p181 = por %p179, %p180
    %p182 = scmp.ne.s32.totalorder %s174, %s176
    %p183 = scmp.eq.s32.totalorder %s19, 1
    %p184 = por %p182, %p183
    %p185 = scmp.ne.s32.totalorder %s176, %s177
    %p186 = scmp.eq.s32.totalorder %s19, 0
    %p187 = por %p185, %p186
    %p188 = scmp.ne.s32.totalorder %s176, %s177
    %p189 = scmp.eq.s32.totalorder %s20, 1
    %p190 = por %p188, %p189
    %p192 = scmp.ne.s32.totalorder %s177, %s191
    %p193 = scmp.eq.s32.totalorder %s20, 0
    %p194 = por %p192, %p193
    %s195 = ssub.s32 %s14, %s21
    %p196 = scmp.eq.s32.totalorder %s195, 0
    %s198 = sadd.s32 %s197, 1
    %s199 = scalar_select %p196, %s197, %s198
    %p202 = pneg %p196
    %p203 = scmp.eq.s32.totalorder %s14, 1
    %p204 = por %p202, %p203
    %p205 = scmp.ne.s32.totalorder %s197, %s200
    %p206 = scmp.eq.s32.totalorder %s14, 0
    %p207 = por %p205, %p206
    %p208 = scmp.ne.s32.totalorder %s197, %s200
    %p209 = scmp.eq.s32.totalorder %s19, 1
    %p210 = por %p208, %p209
    %p211 = scmp.ne.s32.totalorder %s200, %s201
    %p212 = scmp.eq.s32.totalorder %s19, 0
    %p213 = por %p211, %p212
    %p214 = scmp.ne.s32.totalorder %s200, %s201
    %p215 = scmp.eq.s32.totalorder %s20, 1
    %p216 = por %p214, %p215
    %p218 = scmp.ne.s32.totalorder %s201, %s217
    %p219 = scmp.eq.s32.totalorder %s20, 0
    %p220 = por %p218, %p219
    %p221 = scmp.le.s32.totalorder 1, %s14
    %p222 = scmp.lt.s32.totalorder %s14, 3
    %p223 = pnand %p221, %p222
    %p224 = pneg %p223
    // Predicated region
    $region9: #{_lambda_.1} parent=5 // pred_check
      _
    $region10: #{_lambda_.1} parent=5 // pred_check_branch
      %226 = sbr.rel (%p223) target = $region12
    $region11: #{_lambda_.1} parent=5 // pred_region
      %s227 = ssub.s32 %s14, 1
      // Predicated region
      $region13: #{_lambda_.1} parent=11 // pred_check
        %p228 = pneg %p61
      $region14: #{_lambda_.1} parent=11 // pred_check_branch
        %230 = sbr.rel (%p228) target = $region16
      $region15: #{_lambda_.1} parent=11 // pred_region
        _
      $region16: #{_lambda_.1} parent=11 // pred_fallthru
        _
      // Predicated region
      $region17: #{_lambda_.1} parent=11 // pred_check
        %p231 = pneg %p82
      $region18: #{_lambda_.1} parent=11 // pred_check_branch
        %233 = sbr.rel (%p231) target = $region20
      $region19: #{_lambda_.1} parent=11 // pred_region
        _
      $region20: #{_lambda_.1} parent=11 // pred_fallthru
        _
      // Predicated region
      $region21: #{_lambda_.1} parent=11 // pred_check
        %p234 = pneg %p103
      $region22: #{_lambda_.1} parent=11 // pred_check_branch
        %236 = sbr.rel (%p234) target = $region24
      $region23: #{_lambda_.1} parent=11 // pred_region
        _
      $region24: #{_lambda_.1} parent=11 // pred_fallthru
        _
      // Predicated region
      $region25: #{_lambda_.1} parent=11 // pred_check
        %p237 = pneg %p124
      $region26: #{_lambda_.1} parent=11 // pred_check_branch
        %239 = sbr.rel (%p237) target = $region28
      $region27: #{_lambda_.1} parent=11 // pred_region
        _
      $region28: #{_lambda_.1} parent=11 // pred_fallthru
        _
      // Predicated region
      $region29: #{_lambda_.1} parent=11 // pred_check
        %p240 = pneg %p145
      $region30: #{_lambda_.1} parent=11 // pred_check_branch
        %242 = sbr.rel (%p240) target = $region32
      $region31: #{_lambda_.1} parent=11 // pred_region
        _
      $region32: #{_lambda_.1} parent=11 // pred_fallthru
        _
      // Predicated region
      $region33: #{_lambda_.1} parent=11 // pred_check
        %p243 = pneg %p166
      $region34: #{_lambda_.1} parent=11 // pred_check_branch
        %245 = sbr.rel (%p243) target = $region36
      $region35: #{_lambda_.1} parent=11 // pred_region
        _
      $region36: #{_lambda_.1} parent=11 // pred_fallthru
        _
      // Predicated region
      $region37: #{_lambda_.1} parent=11 // pred_check
        %p246 = pneg %p187
      $region38: #{_lambda_.1} parent=11 // pred_check_branch
        %248 = sbr.rel (%p246) target = $region40
      $region39: #{_lambda_.1} parent=11 // pred_region
        _
      $region40: #{_lambda_.1} parent=11 // pred_fallthru
        _
    $region12: #{_lambda_.1} parent=5 // pred_fallthru
      _
    %p249 = scmp.lt.s32.totalorder %s14, 2
    // Predicated region
    $region41: #{_lambda_.1} parent=5 // pred_check
      %p250 = pneg %p249
    $region42: #{_lambda_.1} parent=5 // pred_check_branch
      %252 = sbr.rel (%p250) target = $region44
    $region43: #{_lambda_.1} parent=5 // pred_region
      // Predicated region
      $region45: #{_lambda_.1} parent=43 // pred_check
        %p253 = pneg %p34
      $region46: #{_lambda_.1} parent=43 // pred_check_branch
        %255 = sbr.rel (%p253) target = $region48
      $region47: #{_lambda_.1} parent=43 // pred_region
        %p256 = scmp.lt.s32.totalorder %s14, 1
        %s257 = scalar_select %p256, %s14, 1
        %s258 = smul.addr %s257, 10
        %s259 = smul.addr %s258, 4
        %s260 = scalar_lea.vmem %s0, %s259
      $region48: #{_lambda_.1} parent=43 // pred_fallthru
        _
    $region44: #{_lambda_.1} parent=5 // pred_fallthru
      _
    %p261 = scmp.le.s32.totalorder 1, %s14
    %p262 = scmp.lt.s32.totalorder %s14, 3
    %p263 = pnand %p261, %p262
    %p264 = pneg %p263
    // Predicated region
    $region49: #{_lambda_.1} parent=5 // pred_check
      _
    $region50: #{_lambda_.1} parent=5 // pred_check_branch
      %266 = sbr.rel (%p263) target = $region52
    $region51: #{_lambda_.1} parent=5 // pred_region
      %s267 = ssub.s32 %s14, 1
      %p268 = scmp.lt.s32.totalorder %s19, 1
      %s269 = scalar_select %p268, %s19, 1
      %s270 = smul.addr %s269, 10
      %s271 = smul.addr %s270, 4
      %s272 = scalar_lea.vmem %s0, %s271
      %p273 = pneg %p40
      %p274 = pneg %p37
      %p275 = pneg %p61
      %p276 = pneg %p58
      %p277 = pneg %p82
      %p278 = pneg %p79
      %p279 = pneg %p103
      %p280 = pneg %p100
      %p281 = pneg %p124
      %p282 = pneg %p121
      %p283 = pneg %p145
      %p284 = pneg %p142
      %p285 = pneg %p166
      %p286 = pneg %p163
      %p287 = pneg %p187
      %p288 = pneg %p184
      %p289 = pneg %p213
      %p290 = pneg %p210
      %p291 = scmp.lt.s32.totalorder %s19, 1
      %s292 = scalar_select %p291, %s19, 1
      %s293 = smul.addr %s292, 3
      %s294 = smul.addr %s293, 8
      %s295 = scalar_lea.vmem %s8, %s294
      %p296 = scmp.lt.s32.totalorder %s19, 1
      %s297 = scalar_select %p296, %s19, 1
      %s298 = smul.addr %s297, 10
      %s299 = smul.addr %s298, 4
      %s300 = scalar_lea.vmem %s0, %s299
      %p301 = scmp.lt.s32.totalorder %s19, 1
      %s302 = scalar_select %p301, %s19, 1
      %s303 = smul.addr %s302, 3
      %s304 = smul.addr %s303, 8
      %s305 = scalar_lea.vmem %s8, %s304
      %v307 = vld [vmem:[%s300] sm:$0xff]
      %v308 = vld [vmem:[%s300 + $0x8] sm:$0xff]
      %v309 = vld [vmem:[%s300 + $0x10] sm:$0xf]
      %v310 = vld [vmem:[%s300 + $0x14] sm:$0xff]
      %v311 = vld [vmem:[%s300 + $0x1c] sm:$0xff]
      %v312 = vld [vmem:[%s300 + $0x24] sm:$0xf]
      %v313 = vld [vmem:[%s2] sm:$0xf]
      %v314 = vld [vmem:[%s2 + $0x4] sm:$0xf]
      %v315 = vld [vmem:[%s2 + $0x8] sm:$0xf]
      %v316 = vld [vmem:[%s2 + $0xc] sm:$0xf]
      %v317 = vld [vmem:[%s2 + $0x10] sm:$0xf]
      %v318 = vld [vmem:[%s2 + $0x14] sm:$0xf]
      %v319 = vld [vmem:[%s2 + $0x18] sm:$0xf]
      %v320 = vld [vmem:[%s2 + $0x1c] sm:$0xf]
      %v321 = vld [vmem:[%s2 + $0x20] sm:$0xf]
      %v322 = vld [vmem:[%s2 + $0x24] sm:$0xf]
      %v323 = vld [vmem:[%s2 + $0x28] sm:$0xf]
      %v324 = vld [vmem:[%s2 + $0x2c] sm:$0xf]
      %v325 = vld [vmem:[%s2 + $0x30] sm:$0xf]
      %v326 = vld [vmem:[%s2 + $0x34] sm:$0xf]
      %v327 = vld [vmem:[%s2 + $0x38] sm:$0xf]
      %v328 = vld [vmem:[%s2 + $0x3c] sm:$0xf]
      %v329 = vld [vmem:[%s2 + $0x40] sm:$0xf]
      %v330 = vld [vmem:[%s2 + $0x44] sm:$0xf]
      %v331 = vld [vmem:[%s2 + $0x48] sm:$0xf]
      %v332 = vld [vmem:[%s2 + $0x4c] sm:$0xf]
      %v333 = vld [vmem:[%s2 + $0x50] sm:$0xf]
      %v334 = vld [vmem:[%s2 + $0x54] sm:$0xf]
      %v335 = vld [vmem:[%s2 + $0x58] sm:$0xf]
      %v336 = vld [vmem:[%s2 + $0x5c] sm:$0xf]
      %v337 = vld [vmem:[%s2 + $0x60] sm:$0xf]
      %v338 = vld [vmem:[%s2 + $0x64] sm:$0xf]
      %v339 = vld [vmem:[%s2 + $0x68] sm:$0xf]
      %v340 = vld [vmem:[%s2 + $0x6c] sm:$0xf]
      %v341 = vld [vmem:[%s2 + $0x70] sm:$0xf]
      %v342 = vld [vmem:[%s2 + $0x74] sm:$0xf]
      %v343 = vld [vmem:[%s2 + $0x78] sm:$0xf]
      %v344 = vld [vmem:[%s2 + $0x7c] sm:$0xf]
      %v345 = vld [vmem:[%s2 + $0x80] sm:$0xf]
      %v346 = vld [vmem:[%s2 + $0x84] sm:$0xf]
      %v347 = vld [vmem:[%s2 + $0x88] sm:$0xf]
      %v348 = vld [vmem:[%s2 + $0x8c] sm:$0xf]
      %v349 = vld [vmem:[%s2 + $0x90] sm:$0xf]
      %v350 = vld [vmem:[%s2 + $0x94] sm:$0xf]
      %v351 = vld [vmem:[%s2 + $0x98] sm:$0xf]
      %v352 = vld [vmem:[%s2 + $0x9c] sm:$0xf]
      %v353 = vld [vmem:[%s2 + $0xa0] sm:$0xf]
      %v354 = vld [vmem:[%s2 + $0xa4] sm:$0xf]
      %v355 = vld [vmem:[%s2 + $0xa8] sm:$0xf]
      %v356 = vld [vmem:[%s2 + $0xac] sm:$0xf]
      %v357 = vld [vmem:[%s2 + $0xb0] sm:$0xf]
      %v358 = vld [vmem:[%s2 + $0xb4] sm:$0xf]
      %v359 = vld [vmem:[%s2 + $0xb8] sm:$0xf]
      %v360 = vld [vmem:[%s2 + $0xbc] sm:$0xf]
      %v361 = vld [vmem:[%s2 + $0xc0] sm:$0xf]
      %v362 = vld [vmem:[%s2 + $0xc4] sm:$0xf]
      %v363 = vld [vmem:[%s2 + $0xc8] sm:$0xf]
      %v364 = vld [vmem:[%s2 + $0xcc] sm:$0xf]
      %v365 = vld [vmem:[%s2 + $0xd0] sm:$0xf]
      %v366 = vld [vmem:[%s2 + $0xd4] sm:$0xf]
      %v367 = vld [vmem:[%s2 + $0xd8] sm:$0xf]
      %v368 = vld [vmem:[%s2 + $0xdc] sm:$0xf]
      %v369 = vld [vmem:[%s2 + $0xe0] sm:$0xf]
      %v370 = vld [vmem:[%s2 + $0xe4] sm:$0xf]
      %v371 = vld [vmem:[%s2 + $0xe8] sm:$0xf]
      %v372 = vld [vmem:[%s2 + $0xec] sm:$0xf]
      %v373 = vld [vmem:[%s2 + $0xf0] sm:$0xf]
      %v374 = vld [vmem:[%s2 + $0xf4] sm:$0xf]
      %v375 = vld [vmem:[%s2 + $0xf8] sm:$0xf]
      %v376 = vld [vmem:[%s2 + $0xfc] sm:$0xf]
      %v377 = vld [vmem:[%s2 + $0x100] sm:$0xf]
      %v378 = vld [vmem:[%s2 + $0x104] sm:$0xf]
      %v379 = vld [vmem:[%s2 + $0x108] sm:$0xf]
      %v380 = vld [vmem:[%s2 + $0x10c] sm:$0xf]
      %v381 = vld [vmem:[%s2 + $0x110] sm:$0xf]
      %v382 = vld [vmem:[%s2 + $0x114] sm:$0xf]
      %v383 = vld [vmem:[%s2 + $0x118] sm:$0xf]
      %v384 = vld [vmem:[%s2 + $0x11c] sm:$0xf]
      %v385 = vld [vmem:[%s2 + $0x120] sm:$0xf]
      %v386 = vld [vmem:[%s2 + $0x124] sm:$0xf]
      %v387 = vld [vmem:[%s2 + $0x128] sm:$0xf]
      %v388 = vld [vmem:[%s2 + $0x12c] sm:$0xf]
      %v389 = vld [vmem:[%s2 + $0x130] sm:$0xf]
      %v390 = vld [vmem:[%s2 + $0x134] sm:$0xf]
      %v391 = vld [vmem:[%s2 + $0x138] sm:$0xf]
      %v392 = vld [vmem:[%s2 + $0x13c] sm:$0xf]
      %v399 = vunpack.c.l.b16 %v307
      %v400 = vunpack.c.h.b16 %v307
      %v401 = vunpack.c.l.b16 %v308
      %v402 = vunpack.c.h.b16 %v308
      %v403 = vunpack.c.l.b16 %v309
      %v404 = vunpack.c.l.b16 %v310
      %v405 = vunpack.c.h.b16 %v310
      %v406 = vunpack.c.l.b16 %v311
      %v407 = vunpack.c.h.b16 %v311
      %v408 = vunpack.c.l.b16 %v312
      %v409 = vpack.c.b16 %v404, %v399
      %v410 = vpack.c.b16 %v405, %v400
      %v411 = vpack.c.b16 %v406, %v401
      %v412 = vpack.c.b16 %v407, %v402
      %v413 = vpack.c.b16 %v408, %v403
      %v499 = vunpack.c.l.b16 %v313
      %v500 = vunpack.c.l.b16 %v314
      %v501 = vunpack.c.l.b16 %v315
      %v502 = vunpack.c.l.b16 %v316
      %v503 = vunpack.c.l.b16 %v317
      %v504 = vunpack.c.l.b16 %v318
      %v505 = vunpack.c.l.b16 %v319
      %v506 = vunpack.c.l.b16 %v320
      %v507 = vunpack.c.l.b16 %v321
      %v508 = vunpack.c.l.b16 %v322
      %v509 = vunpack.c.l.b16 %v323
      %v510 = vunpack.c.l.b16 %v324
      %v511 = vunpack.c.l.b16 %v325
      %v512 = vunpack.c.l.b16 %v326
      %v513 = vunpack.c.l.b16 %v327
      %v514 = vunpack.c.l.b16 %v328
      %v515 = vunpack.c.l.b16 %v329
      %v516 = vunpack.c.l.b16 %v330
      %v517 = vunpack.c.l.b16 %v331
      %v518 = vunpack.c.l.b16 %v332
      %v519 = vunpack.c.l.b16 %v333
      %v520 = vunpack.c.l.b16 %v334
      %v521 = vunpack.c.l.b16 %v335
      %v522 = vunpack.c.l.b16 %v336
      %v523 = vunpack.c.l.b16 %v337
      %v524 = vunpack.c.l.b16 %v338
      %v525 = vunpack.c.l.b16 %v339
      %v526 = vunpack.c.l.b16 %v340
      %v527 = vunpack.c.l.b16 %v341
      %v528 = vunpack.c.l.b16 %v342
      %v529 = vunpack.c.l.b16 %v343
      %v530 = vunpack.c.l.b16 %v344
      %v531 = vunpack.c.l.b16 %v345
      %v532 = vunpack.c.l.b16 %v346
      %v533 = vunpack.c.l.b16 %v347
      %v534 = vunpack.c.l.b16 %v348
      %v535 = vunpack.c.l.b16 %v349
      %v536 = vunpack.c.l.b16 %v350
      %v537 = vunpack.c.l.b16 %v351
      %v538 = vunpack.c.l.b16 %v352
      %v539 = vunpack.c.l.b16 %v353
      %v540 = vunpack.c.l.b16 %v354
      %v541 = vunpack.c.l.b16 %v355
      %v542 = vunpack.c.l.b16 %v356
      %v543 = vunpack.c.l.b16 %v357
      %v544 = vunpack.c.l.b16 %v358
      %v545 = vunpack.c.l.b16 %v359
      %v546 = vunpack.c.l.b16 %v360
      %v547 = vunpack.c.l.b16 %v361
      %v548 = vunpack.c.l.b16 %v362
      %v549 = vunpack.c.l.b16 %v363
      %v550 = vunpack.c.l.b16 %v364
      %v551 = vunpack.c.l.b16 %v365
      %v552 = vunpack.c.l.b16 %v366
      %v553 = vunpack.c.l.b16 %v367
      %v554 = vunpack.c.l.b16 %v368
      %v555 = vunpack.c.l.b16 %v369
      %v556 = vunpack.c.l.b16 %v370
      %v557 = vunpack.c.l.b16 %v371
      %v558 = vunpack.c.l.b16 %v372
      %v559 = vunpack.c.l.b16 %v373
      %v560 = vunpack.c.l.b16 %v374
      %v561 = vunpack.c.l.b16 %v375
      %v562 = vunpack.c.l.b16 %v376
      %v563 = vunpack.c.l.b16 %v377
      %v564 = vunpack.c.l.b16 %v378
      %v565 = vunpack.c.l.b16 %v379
      %v566 = vunpack.c.l.b16 %v380
      %v567 = vunpack.c.l.b16 %v381
      %v568 = vunpack.c.l.b16 %v382
      %v569 = vunpack.c.l.b16 %v383
      %v570 = vunpack.c.l.b16 %v384
      %v571 = vunpack.c.l.b16 %v385
      %v572 = vunpack.c.l.b16 %v386
      %v573 = vunpack.c.l.b16 %v387
      %v574 = vunpack.c.l.b16 %v388
      %v575 = vunpack.c.l.b16 %v389
      %v576 = vunpack.c.l.b16 %v390
      %v577 = vunpack.c.l.b16 %v391
      %v578 = vunpack.c.l.b16 %v392
      %v579 = vpack.c.b16 %v500, %v499
      %v580 = vpack.c.b16 %v502, %v501
      %v581 = vpack.c.b16 %v504, %v503
      %v582 = vpack.c.b16 %v506, %v505
      %v583 = vpack.c.b16 %v508, %v507
      %v584 = vpack.c.b16 %v510, %v509
      %v585 = vpack.c.b16 %v512, %v511
      %v586 = vpack.c.b16 %v514, %v513
      %v587 = vpack.c.b16 %v516, %v515
      %v588 = vpack.c.b16 %v518, %v517
      %v589 = vpack.c.b16 %v520, %v519
      %v590 = vpack.c.b16 %v522, %v521
      %v591 = vpack.c.b16 %v524, %v523
      %v592 = vpack.c.b16 %v526, %v525
      %v593 = vpack.c.b16 %v528, %v527
      %v594 = vpack.c.b16 %v530, %v529
      %v595 = vpack.c.b16 %v532, %v531
      %v596 = vpack.c.b16 %v534, %v533
      %v597 = vpack.c.b16 %v536, %v535
      %v598 = vpack.c.b16 %v538, %v537
      %v599 = vpack.c.b16 %v540, %v539
      %v600 = vpack.c.b16 %v542, %v541
      %v601 = vpack.c.b16 %v544, %v543
      %v602 = vpack.c.b16 %v546, %v545
      %v603 = vpack.c.b16 %v548, %v547
      %v604 = vpack.c.b16 %v550, %v549
      %v605 = vpack.c.b16 %v552, %v551
      %v606 = vpack.c.b16 %v554, %v553
      %v607 = vpack.c.b16 %v556, %v555
      %v608 = vpack.c.b16 %v558, %v557
      %v609 = vpack.c.b16 %v560, %v559
      %v610 = vpack.c.b16 %v562, %v561
      %v611 = vpack.c.b16 %v564, %v563
      %v612 = vpack.c.b16 %v566, %v565
      %v613 = vpack.c.b16 %v568, %v567
      %v614 = vpack.c.b16 %v570, %v569
      %v615 = vpack.c.b16 %v572, %v571
      %v616 = vpack.c.b16 %v574, %v573
      %v617 = vpack.c.b16 %v576, %v575
      %v618 = vpack.c.b16 %v578, %v577
      %659 = vmatpush.bf16.msra.mxu0 %v586
      %660 = vmatpush.bf16.msra.mxu0 %v585
      %661 = vmatpush.bf16.msra.mxu0 %v584
      %662 = vmatpush.bf16.msra.mxu0 %v583
      %663 = vmatpush.bf16.msra.mxu0 %v582
      %664 = vmatpush.bf16.msra.mxu0 %v581
      %665 = vmatpush.bf16.msra.mxu0 %v580
      %666 = vmatpush.bf16.msra.mxu0 %v579
      %667 = vmatmul.bf16.gmra.mxu0 %v409
      %v668 = vpop.f32.mrf.mxu0
      %v669 = vadd.f32 0.0, %v668
      %v670 = vpop.f32.mrf.mxu0
      %v671 = vadd.f32 0.0, %v670
      %672 = vdwg.mxu0
      %673 = vmatpush.bf16.msra.mxu0 %v594
      %674 = vmatpush.bf16.msra.mxu0 %v593
      %675 = vmatpush.bf16.msra.mxu0 %v592
      %676 = vmatpush.bf16.msra.mxu0 %v591
      %677 = vmatpush.bf16.msra.mxu0 %v590
      %678 = vmatpush.bf16.msra.mxu0 %v589
      %679 = vmatpush.bf16.msra.mxu0 %v588
      %680 = vmatpush.bf16.msra.mxu0 %v587
      %681 = vmatmul.bf16.gmra.mxu0 %v410
      %v682 = vpop.f32.mrf.mxu0
      %v683 = vadd.f32 %v669, %v682
      %v684 = vpop.f32.mrf.mxu0
      %v685 = vadd.f32 %v671, %v684
      %686 = vdwg.mxu0
      %687 = vmatpush.bf16.msra.mxu0 %v602
      %688 = vmatpush.bf16.msra.mxu0 %v601
      %689 = vmatpush.bf16.msra.mxu0 %v600
      %690 = vmatpush.bf16.msra.mxu0 %v599
      %691 = vmatpush.bf16.msra.mxu0 %v598
      %692 = vmatpush.bf16.msra.mxu0 %v597
      %693 = vmatpush.bf16.msra.mxu0 %v596
      %694 = vmatpush.bf16.msra.mxu0 %v595
      %695 = vmatmul.bf16.gmra.mxu0 %v411
      %v696 = vpop.f32.mrf.mxu0
      %v697 = vadd.f32 %v683, %v696
      %v698 = vpop.f32.mrf.mxu0
      %v699 = vadd.f32 %v685, %v698
      %700 = vdwg.mxu0
      %701 = vmatpush.bf16.msra.mxu0 %v610
      %702 = vmatpush.bf16.msra.mxu0 %v609
      %703 = vmatpush.bf16.msra.mxu0 %v608
      %704 = vmatpush.bf16.msra.mxu0 %v607
      %705 = vmatpush.bf16.msra.mxu0 %v606
      %706 = vmatpush.bf16.msra.mxu0 %v605
      %707 = vmatpush.bf16.msra.mxu0 %v604
      %708 = vmatpush.bf16.msra.mxu0 %v603
      %709 = vmatmul.bf16.gmra.mxu0 %v412
      %v710 = vpop.f32.mrf.mxu0
      %v711 = vadd.f32 %v697, %v710
      %v712 = vpop.f32.mrf.mxu0
      %v713 = vadd.f32 %v699, %v712
      %714 = vdwg.mxu0
      %715 = vmatpush.bf16.msra.mxu0 %v618
      %716 = vmatpush.bf16.msra.mxu0 %v617
      %717 = vmatpush.bf16.msra.mxu0 %v616
      %718 = vmatpush.bf16.msra.mxu0 %v615
      %719 = vmatpush.bf16.msra.mxu0 %v614
      %720 = vmatpush.bf16.msra.mxu0 %v613
      %721 = vmatpush.bf16.msra.mxu0 %v612
      %722 = vmatpush.bf16.msra.mxu0 %v611
      %723 = vmatmul.bf16.gmra.mxu0 %v413
      %v724 = vpop.f32.mrf.mxu0
      %v725 = vadd.f32 %v711, %v724
      %v726 = vpop.f32.mrf.mxu0
      %v727 = vadd.f32 %v713, %v726
      %728 = vdwg.mxu0
      %v729 = vld [vmem:[%s1] sm:$0xff]
      %v730 = vld [vmem:[%s1 + $0x8] sm:$0xff]
      %v731 = vadd.f32 %v729, %v725
      %v732 = vadd.f32 %v730, %v727
      %vm733 = vcmask 261120
      %734 = vst.msk [vmem:[#allocation2] sm:$0xff] %vm733, %v731
      %735 = vst.msk [vmem:[#allocation2 + $0x8] sm:$0xff] %vm733, %v732
      %v736 = vld [vmem:[%s1 + $0x10] sm:$0x1f]
      %vm737 = vcmask 258048
      %738 = vst.msk [vmem:[#allocation2 + $0x10] sm:$0x1f] %vm737, %v736
      %v739 = vld [vmem:[#allocation2] sm:$0xff]
      %v740 = vld [vmem:[#allocation2 + $0x8] sm:$0xff]
      %v741 = vld [vmem:[#allocation2 + $0x10] sm:$0x1f]
      %v742 = vld [vmem:[%s7] sm:$0x1]
      %v743 = vld [vmem:[%s7 + $0x1] sm:$0x1]
      %v744 = vld [vmem:[%s7 + $0x2] sm:$0x1]
      %v745 = vld [vmem:[%s7 + $0x3] sm:$0x1]
      %v746 = vsel %vm733, %v739, 0.0
      %747 = vadd.xlane.f32.xlu0 %v746
      %v748 = vpop.xlane.xlu0 %747
      %v749 = vsel %vm733, %v740, 0.0
      %750 = vadd.xlane.f32.xlu0 %v749
      %v751 = vpop.xlane.xlu0 %750
      %v752 = vsel %vm737, %v741, 0.0
      %753 = vadd.xlane.f32.xlu0 %v752
      %v754 = vpop.xlane.xlu0 %753
      %v755 = vrcp.pop 32.0
      %v756 = vmul.f32 32.0, %v755
      %v757 = vsub.f32 1.0, %v756
      %v758 = vmul.f32 %v755, %v757
      %v759 = vadd.f32 %v755, %v758
      %vm760 = vweird.f32 %v755
      %v761 = vsel %vm760, %v755, %v759
      %v762 = vmul.f32 %v748, %v761
      %v763 = vmul.f32 %v751, %v761
      %v764 = vmul.f32 %v754, %v761
      %v765 = vsub.f32 %v739, %v762
      %v766 = vsub.f32 %v740, %v763
      %v767 = vsub.f32 %v741, %v764
      %v768 = vmul.f32 %v765, %v765
      %v769 = vmul.f32 %v766, %v766
      %v770 = vmul.f32 %v767, %v767
      %v771 = vsel %vm733, %v768, 0.0
      %772 = vadd.xlane.f32.xlu0 %v771
      %v773 = vpop.xlane.xlu0 %772
      %v774 = vsel %vm733, %v769, 0.0
      %775 = vadd.xlane.f32.xlu0 %v774
      %v776 = vpop.xlane.xlu0 %775
      %v777 = vsel %vm737, %v770, 0.0
      %778 = vadd.xlane.f32.xlu0 %v777
      %v779 = vpop.xlane.xlu0 %778
      %v780 = vmul.f32 %v773, %v761
      %v781 = vmul.f32 %v776, %v761
      %v782 = vmul.f32 %v779, %v761
      %v783 = vadd.f32 %v780, 1e-06
      %v784 = vadd.f32 %v781, 1e-06
      %v785 = vadd.f32 %v782, 1e-06
      %v786 = vrsqrt.pop %v783
      %v787 = vmul.f32 %v786, %v783
      %v788 = vmul.f32 %v787, %v786
      %v789 = vmul.f32 0.5, %v788
      %v790 = vsub.f32 1.5, %v789
      %v791 = vmul.f32 %v786, %v790
      %vm792 = vweird.f32 %v783
      %vm793 = vweird.f32 %v786
      %vm794 = vmor %vm792, %vm793
      %v795 = vsel %vm794, %v786, %v791
      %v796 = vrsqrt.pop %v784
      %v797 = vmul.f32 %v796, %v784
      %v798 = vmul.f32 %v797, %v796
      %v799 = vmul.f32 0.5, %v798
      %v800 = vsub.f32 1.5, %v799
      %v801 = vmul.f32 %v796, %v800
      %vm802 = vweird.f32 %v784
      %vm803 = vweird.f32 %v796
      %vm804 = vmor %vm802, %vm803
      %v805 = vsel %vm804, %v796, %v801
      %v806 = vrsqrt.pop %v785
      %v807 = vmul.f32 %v806, %v785
      %v808 = vmul.f32 %v807, %v806
      %v809 = vmul.f32 0.5, %v808
      %v810 = vsub.f32 1.5, %v809
      %v811 = vmul.f32 %v806, %v810
      %vm812 = vweird.f32 %v785
      %vm813 = vweird.f32 %v806
      %vm814 = vmor %vm812, %vm813
      %v815 = vsel %vm814, %v806, %v811
      %v816 = vmul.f32 %v765, %v795
      %v817 = vmul.f32 %v766, %v805
      %v818 = vmul.f32 %v767, %v815
      %v819 = vperm.slane %v742, 0
      %v820 = vmul.f32 %v816, %v819
      %v821 = vmul.f32 %v817, %v819
      %v822 = vmul.f32 %v818, %v819
      %824 = vrot.lane.b32.xlu0 %v819, 96
      %v825 = vpop.permute.xlu0 %824
      %v827 = vadd.f32 %v820, %v825
      %v828 = vadd.f32 %v821, %v825
      %v829 = vadd.f32 %v822, %v825
      %v830 = vpack.c.bf16 %v828, %v827
      %v831 = vpack.c.bf16 %v829, %v829
      %v832 = vld [vmem:[%s3] sm:$0xf]
      %v833 = vld [vmem:[%s3 + $0x4] sm:$0xf]
      %v834 = vld [vmem:[%s3 + $0x8] sm:$0xf]
      %v835 = vld [vmem:[%s3 + $0xc] sm:$0xf]
      %v836 = vperm.slane %v743, 0
      %v841 = vunpack.c.l.b16 %v832
      %v842 = vunpack.c.l.b16 %v833
      %v843 = vunpack.c.l.b16 %v834
      %v844 = vunpack.c.l.b16 %v835
      %v845 = vpack.c.b16 %v842, %v841
      %v846 = vpack.c.b16 %v844, %v843
      %v850 = vsel %vm733, %v830, 0
      %v853 = vsel %vm733, %v831, 0
      %855 = vmatpush.bf16.msra.mxu0 0
      %856 = vmatpush.bf16.msra.mxu0 0
      %857 = vmatpush.bf16.msra.mxu0 0
      %858 = vmatpush.bf16.msra.mxu0 0
      %859 = vmatpush.bf16.msra.mxu0 0
      %860 = vmatpush.bf16.msra.mxu0 0
      %861 = vmatpush.bf16.msra.mxu0 %v846
      %862 = vmatpush.bf16.msra.mxu0 %v845
      %863 = vmatmul.bf16.gmra.mxu0 %v850
      %v864 = vpop.f32.mrf.mxu0
      %v865 = vadd.f32 %v836, %v864
      %v866 = vpop.f32.mrf.mxu0
      %v867 = vadd.f32 %v836, %v866
      %868 = vmatmul.bf16.gmra.mxu0 %v853
      %v869 = vpop.f32.mrf.mxu0
      %v870 = vadd.f32 %v836, %v869
      %v871 = vpop.f32.mrf.mxu0
      %872 = vdwg.mxu0
      %v873 = vpack.c.bf16 %v867, %v865
      %v874 = vpack.c.bf16 %v870, %v870
      %877 = vrot.lane.b32.xlu0 %v873, 96
      %v878 = vpop.permute.xlu0 %877
      %879 = vrot.lane.b32.xlu0 %v874, 96
      %v880 = vpop.permute.xlu0 %879
      %vm881 = vcmask 130048
      %v883 = vsel %vm881, %v873, 0
      %v886 = vsel %vm881, %v874, 0
      %v889 = vsel %vm881, %v878, 0
      %v892 = vsel %vm881, %v880, 0
      %894 = vmatpush.bf16.xpose.msra.mxu0 0
      %895 = vmatpush.bf16.xpose.msra.mxu0 0
      %896 = vmatpush.bf16.xpose.msra.mxu0 0
      %897 = vmatpush.bf16.xpose.msra.mxu0 0
      %898 = vmatpush.bf16.xpose.msra.mxu0 0
      %899 = vmatpush.bf16.xpose.msra.mxu0 0
      %900 = vmatpush.bf16.xpose.msra.mxu0 %v892
      %901 = vmatpush.bf16.xpose.msra.mxu0 %v889
      %902 = vmatmul.bf16.gmra.mxu0 %v883
      %v903 = vpop.f32.mrf.mxu0
      %v904 = vadd.f32 0.0, %v903
      %v905 = vpop.f32.mrf.mxu0
      %v906 = vadd.f32 0.0, %v905
      %907 = vmatmul.bf16.gmra.mxu0 %v886
      %v908 = vpop.f32.mrf.mxu0
      %v909 = vadd.f32 0.0, %v908
      %v910 = vpop.f32.mrf.mxu0
      %911 = vdwg.mxu0
      %vm912 = vcmask 171008
      %v913 = vsel %vm912, %v904, -inf
      %914 = vmax.xlane.f32.xlu0 %v913
      %v915 = vpop.xlane.xlu0 %914
      %v916 = vsel %vm912, %v906, -inf
      %917 = vmax.xlane.f32.xlu0 %v916
      %v918 = vpop.xlane.xlu0 %917
      %vm919 = vcmask 167936
      %v920 = vsel %vm919, %v909, -inf
      %921 = vmax.xlane.f32.xlu0 %v920
      %v922 = vpop.xlane.xlu0 %921
      %v923 = vsub.f32 %v904, %v915
      %v924 = vsub.f32 %v906, %v918
      %v925 = vsub.f32 %v909, %v922
      %v926 = vmul.f32 %v923, 1.442695
      %v927 = vpow.pop %v926
      %v928 = vmul.f32 %v924, 1.442695
      %v929 = vpow.pop %v928
      %v930 = vmul.f32 %v925, 1.442695
      %v931 = vpow.pop %v930
      %v932 = vsel %vm912, %v927, 0.0
      %933 = vadd.xlane.f32.xlu0 %v932
      %v934 = vpop.xlane.xlu0 %933
      %v935 = vsel %vm912, %v929, 0.0
      %936 = vadd.xlane.f32.xlu0 %v935
      %v937 = vpop.xlane.xlu0 %936
      %v938 = vsel %vm919, %v931, 0.0
      %939 = vadd.xlane.f32.xlu0 %v938
      %v940 = vpop.xlane.xlu0 %939
      %v941 = vrcp.pop %v934
      %v942 = vrcp.pop %v937
      %v943 = vrcp.pop %v940
      %v944 = vmul.f32 %v927, %v941
      %v945 = vmul.f32 %v929, %v942
      %v946 = vmul.f32 %v931, %v943
      %v947 = vpack.c.bf16 %v945, %v944
      %v948 = vpack.c.bf16 %v946, %v946
      %949 = vrot.lane.b32.xlu0 %v873, 64
      %v950 = vpop.permute.xlu0 %949
      %951 = vrot.lane.b32.xlu0 %v874, 64
      %v952 = vpop.permute.xlu0 %951
      %v955 = vsel %vm912, %v947, 0
      %v958 = vsel %vm912, %v948, 0
      %vm960 = vcmask 1041408
      %vm961 = vcmask 1042432
      %v962 = vsel %vm960, 4294967295, 65535
      %v963 = vsel %vm961, %v962, 0
      %v965 = vand.u32 %v952, %v963
      %967 = vmatpush.bf16.msra.mxu0 0
      %968 = vmatpush.bf16.msra.mxu0 0
      %969 = vmatpush.bf16.msra.mxu0 0
      %970 = vmatpush.bf16.msra.mxu0 0
      %971 = vmatpush.bf16.msra.mxu0 0
      %972 = vmatpush.bf16.msra.mxu0 0
      %973 = vmatpush.bf16.msra.mxu0 %v965
      %974 = vmatpush.bf16.msra.mxu0 %v950
      %975 = vmatmul.bf16.gmra.mxu0 %v955
      %v976 = vpop.f32.mrf.mxu0
      %v977 = vadd.f32 0.0, %v976
      %v978 = vpop.f32.mrf.mxu0
      %v979 = vadd.f32 0.0, %v978
      %980 = vmatmul.bf16.gmra.mxu0 %v958
      %v981 = vpop.f32.mrf.mxu0
      %v982 = vadd.f32 0.0, %v981
      %v983 = vpop.f32.mrf.mxu0
      %984 = vdwg.mxu0
      %985 = vst.msk [vmem:[#allocation3] sm:$0xff] %vm881, %v977
      %986 = vst.msk [vmem:[#allocation3 + $0x8] sm:$0xff] %vm881, %v979
      %vm987 = vcmask 126976
      %988 = vst.msk [vmem:[#allocation3 + $0x10] sm:$0x1f] %vm987, %v982
      %989 = vrot.lane.b32.xlu0 %v873, 112
      %v990 = vpop.permute.xlu0 %989
      %991 = vrot.lane.b32.xlu0 %v874, 112
      %v992 = vpop.permute.xlu0 %991
      %993 = vrot.lane.b32.xlu0 %v873, 80
      %v994 = vpop.permute.xlu0 %993
      %995 = vrot.lane.b32.xlu0 %v874, 80
      %v996 = vpop.permute.xlu0 %995
      %v998 = vsel %vm881, %v990, 0
      %v1001 = vsel %vm881, %v992, 0
      %v1004 = vsel %vm881, %v994, 0
      %v1007 = vsel %vm881, %v996, 0
      %1009 = vmatpush.bf16.xpose.msra.mxu0 0
      %1010 = vmatpush.bf16.xpose.msra.mxu0 0
      %1011 = vmatpush.bf16.xpose.msra.mxu0 0
      %1012 = vmatpush.bf16.xpose.msra.mxu0 0
      %1013 = vmatpush.bf16.xpose.msra.mxu0 0
      %1014 = vmatpush.bf16.xpose.msra.mxu0 0
      %1015 = vmatpush.bf16.xpose.msra.mxu0 %v1007
      %1016 = vmatpush.bf16.xpose.msra.mxu0 %v1004
      %1017 = vmatmul.bf16.gmra.mxu0 %v998
      %v1018 = vpop.f32.mrf.mxu0
      %v1019 = vadd.f32 0.0, %v1018
      %v1020 = vpop.f32.mrf.mxu0
      %v1021 = vadd.f32 0.0, %v1020
      %1022 = vmatmul.bf16.gmra.mxu0 %v1001
      %v1023 = vpop.f32.mrf.mxu0
      %v1024 = vadd.f32 0.0, %v1023
      %v1025 = vpop.f32.mrf.mxu0
      %1026 = vdwg.mxu0
      %v1027 = vsel %vm912, %v1019, -inf
      %1028 = vmax.xlane.f32.xlu0 %v1027
      %v1029 = vpop.xlane.xlu0 %1028
      %v1030 = vsel %vm912, %v1021, -inf
      %1031 = vmax.xlane.f32.xlu0 %v1030
      %v1032 = vpop.xlane.xlu0 %1031
      %v1033 = vsel %vm919, %v1024, -inf
      %1034 = vmax.xlane.f32.xlu0 %v1033
      %v1035 = vpop.xlane.xlu0 %1034
      %v1036 = vsub.f32 %v1019, %v1029
      %v1037 = vsub.f32 %v1021, %v1032
      %v1038 = vsub.f32 %v1024, %v1035
      %v1039 = vmul.f32 %v1036, 1.442695
      %v1040 = vpow.pop %v1039
      %v1041 = vmul.f32 %v1037, 1.442695
      %v1042 = vpow.pop %v1041
      %v1043 = vmul.f32 %v1038, 1.442695
      %v1044 = vpow.pop %v1043
      %v1045 = vsel %vm912, %v1040, 0.0
      %1046 = vadd.xlane.f32.xlu0 %v1045
      %v1047 = vpop.xlane.xlu0 %1046
      %v1048 = vsel %vm912, %v1042, 0.0
      %1049 = vadd.xlane.f32.xlu0 %v1048
      %v1050 = vpop.xlane.xlu0 %1049
      %v1051 = vsel %vm919, %v1044, 0.0
      %1052 = vadd.xlane.f32.xlu0 %v1051
      %v1053 = vpop.xlane.xlu0 %1052
      %v1054 = vrcp.pop %v1047
      %v1055 = vrcp.pop %v1050
      %v1056 = vrcp.pop %v1053
      %v1057 = vmul.f32 %v1040, %v1054
      %v1058 = vmul.f32 %v1042, %v1055
      %v1059 = vmul.f32 %v1044, %v1056
      %v1060 = vpack.c.bf16 %v1058, %v1057
      %v1061 = vpack.c.bf16 %v1059, %v1059
      %1062 = vrot.lane.b32.xlu0 %v873, 48
      %v1063 = vpop.permute.xlu0 %1062
      %1064 = vrot.lane.b32.xlu0 %v874, 48
      %v1065 = vpop.permute.xlu0 %1064
      %v1068 = vsel %vm912, %v1060, 0
      %v1071 = vsel %vm912, %v1061, 0
      %v1074 = vand.u32 %v1065, %v963
      %1076 = vmatpush.bf16.msra.mxu0 0
      %1077 = vmatpush.bf16.msra.mxu0 0
      %1078 = vmatpush.bf16.msra.mxu0 0
      %1079 = vmatpush.bf16.msra.mxu0 0
      %1080 = vmatpush.bf16.msra.mxu0 0
      %1081 = vmatpush.bf16.msra.mxu0 0
      %1082 = vmatpush.bf16.msra.mxu0 %v1074
      %1083 = vmatpush.bf16.msra.mxu0 %v1063
      %1084 = vmatmul.bf16.gmra.mxu0 %v1068
      %v1085 = vpop.f32.mrf.mxu0
      %v1086 = vadd.f32 0.0, %v1085
      %v1087 = vpop.f32.mrf.mxu0
      %v1088 = vadd.f32 0.0, %v1087
      %1089 = vmatmul.bf16.gmra.mxu0 %v1071
      %v1090 = vpop.f32.mrf.mxu0
      %v1091 = vadd.f32 0.0, %v1090
      %v1092 = vpop.f32.mrf.mxu0
      %1093 = vdwg.mxu0
      %1097 = vrot.lane.b32.xlu0 %v1086, 16
      %v1098 = vpop.permute.xlu0 %1097
      %1099 = vrot.lane.b32.xlu0 %v1088, 16
      %v1100 = vpop.permute.xlu0 %1099
      %1101 = vrot.lane.b32.xlu0 %v1091, 16
      %v1102 = vpop.permute.xlu0 %1101
      %vm1106 = vcmask 261248
      %1107 = vst.msk [vmem:[#allocation3] sm:$0xff] %vm1106, %v1098
      %1108 = vst.msk [vmem:[#allocation3 + $0x8] sm:$0xff] %vm1106, %v1100
      %vm1109 = vcmask 258176
      %1110 = vst.msk [vmem:[#allocation3 + $0x10] sm:$0x1f] %vm1109, %v1102
      %1112 = vrot.lane.b32.xlu0 %v836, 32
      %v1113 = vpop.permute.xlu0 %1112
      %v1115 = vadd.f32 %v739, %v1113
      %v1116 = vadd.f32 %v740, %v1113
      %v1117 = vadd.f32 %v741, %v1113
      %v1118 = vld [vmem:[#allocation3] sm:$0xff]
      %v1119 = vld [vmem:[#allocation3 + $0x8] sm:$0xff]
      %v1120 = vld [vmem:[#allocation3 + $0x10] sm:$0x1f]
      %v1121 = vpack.c.bf16 %v1119, %v1118
      %v1122 = vpack.c.bf16 %v1120, %v1120
      %v1123 = vld [vmem:[%s4] sm:$0xf]
      %v1124 = vld [vmem:[%s4 + $0x4] sm:$0xf]
      %v1125 = vld [vmem:[%s4 + $0x8] sm:$0xf]
      %v1126 = vld [vmem:[%s4 + $0xc] sm:$0xf]
      %v1131 = vunpack.c.l.b16 %v1123
      %v1132 = vunpack.c.l.b16 %v1124
      %v1133 = vunpack.c.l.b16 %v1125
      %v1134 = vunpack.c.l.b16 %v1126
      %v1135 = vpack.c.b16 %v1132, %v1131
      %v1136 = vpack.c.b16 %v1134, %v1133
      %v1140 = vsel %vm733, %v1121, 0
      %v1143 = vsel %vm733, %v1122, 0
      %1145 = vmatpush.bf16.msra.mxu0 0
      %1146 = vmatpush.bf16.msra.mxu0 0
      %1147 = vmatpush.bf16.msra.mxu0 0
      %1148 = vmatpush.bf16.msra.mxu0 0
      %1149 = vmatpush.bf16.msra.mxu0 0
      %1150 = vmatpush.bf16.msra.mxu0 0
      %1151 = vmatpush.bf16.msra.mxu0 %v1136
      %1152 = vmatpush.bf16.msra.mxu0 %v1135
      %1153 = vmatmul.bf16.gmra.mxu0 %v1140
      %v1154 = vpop.f32.mrf.mxu0
      %v1155 = vadd.f32 0.0, %v1154
      %v1156 = vpop.f32.mrf.mxu0
      %v1157 = vadd.f32 0.0, %v1156
      %1158 = vmatmul.bf16.gmra.mxu0 %v1143
      %v1159 = vpop.f32.mrf.mxu0
      %v1160 = vadd.f32 0.0, %v1159
      %v1161 = vpop.f32.mrf.mxu0
      %1162 = vdwg.mxu0
      %v1163 = vadd.f32 %v1115, %v1155
      %v1164 = vadd.f32 %v1116, %v1157
      %v1165 = vadd.f32 %v1117, %v1160
      %v1166 = vsel %vm733, %v1163, 0.0
      %1167 = vadd.xlane.f32.xlu0 %v1166
      %v1168 = vpop.xlane.xlu0 %1167
      %v1169 = vsel %vm733, %v1164, 0.0
      %1170 = vadd.xlane.f32.xlu0 %v1169
      %v1171 = vpop.xlane.xlu0 %1170
      %v1172 = vsel %vm737, %v1165, 0.0
      %1173 = vadd.xlane.f32.xlu0 %v1172
      %v1174 = vpop.xlane.xlu0 %1173
      %v1175 = vmul.f32 %v1168, %v761
      %v1176 = vmul.f32 %v1171, %v761
      %v1177 = vmul.f32 %v1174, %v761
      %v1178 = vsub.f32 %v1163, %v1175
      %v1179 = vsub.f32 %v1164, %v1176
      %v1180 = vsub.f32 %v1165, %v1177
      %v1181 = vmul.f32 %v1178, %v1178
      %v1182 = vmul.f32 %v1179, %v1179
      %v1183 = vmul.f32 %v1180, %v1180
      %v1184 = vsel %vm733, %v1181, 0.0
      %1185 = vadd.xlane.f32.xlu0 %v1184
      %v1186 = vpop.xlane.xlu0 %1185
      %v1187 = vsel %vm733, %v1182, 0.0
      %1188 = vadd.xlane.f32.xlu0 %v1187
      %v1189 = vpop.xlane.xlu0 %1188
      %v1190 = vsel %vm737, %v1183, 0.0
      %1191 = vadd.xlane.f32.xlu0 %v1190
      %v1192 = vpop.xlane.xlu0 %1191
      %v1193 = vmul.f32 %v1186, %v761
      %v1194 = vmul.f32 %v1189, %v761
      %v1195 = vmul.f32 %v1192, %v761
      %v1196 = vadd.f32 %v1193, 1e-06
      %v1197 = vadd.f32 %v1194, 1e-06
      %v1198 = vadd.f32 %v1195, 1e-06
      %v1199 = vrsqrt.pop %v1196
      %v1200 = vmul.f32 %v1199, %v1196
      %v1201 = vmul.f32 %v1200, %v1199
      %v1202 = vmul.f32 0.5, %v1201
      %v1203 = vsub.f32 1.5, %v1202
      %v1204 = vmul.f32 %v1199, %v1203
      %vm1205 = vweird.f32 %v1196
      %vm1206 = vweird.f32 %v1199
      %vm1207 = vmor %vm1205, %vm1206
      %v1208 = vsel %vm1207, %v1199, %v1204
      %v1209 = vrsqrt.pop %v1197
      %v1210 = vmul.f32 %v1209, %v1197
      %v1211 = vmul.f32 %v1210, %v1209
      %v1212 = vmul.f32 0.5, %v1211
      %v1213 = vsub.f32 1.5, %v1212
      %v1214 = vmul.f32 %v1209, %v1213
      %vm1215 = vweird.f32 %v1197
      %vm1216 = vweird.f32 %v1209
      %vm1217 = vmor %vm1215, %vm1216
      %v1218 = vsel %vm1217, %v1209, %v1214
      %v1219 = vrsqrt.pop %v1198
      %v1220 = vmul.f32 %v1219, %v1198
      %v1221 = vmul.f32 %v1220, %v1219
      %v1222 = vmul.f32 0.5, %v1221
      %v1223 = vsub.f32 1.5, %v1222
      %v1224 = vmul.f32 %v1219, %v1223
      %vm1225 = vweird.f32 %v1198
      %vm1226 = vweird.f32 %v1219
      %vm1227 = vmor %vm1225, %vm1226
      %v1228 = vsel %vm1227, %v1219, %v1224
      %v1229 = vmul.f32 %v1178, %v1208
      %v1230 = vmul.f32 %v1179, %v1218
      %v1231 = vmul.f32 %v1180, %v1228
      %1232 = vrot.lane.b32.xlu0 %v819, 64
      %v1233 = vpop.permute.xlu0 %1232
      %v1235 = vmul.f32 %v1229, %v1233
      %v1236 = vmul.f32 %v1230, %v1233
      %v1237 = vmul.f32 %v1231, %v1233
      %1238 = vrot.lane.b32.xlu0 %v819, 32
      %v1239 = vpop.permute.xlu0 %1238
      %v1241 = vadd.f32 %v1235, %v1239
      %v1242 = vadd.f32 %v1236, %v1239
      %v1243 = vadd.f32 %v1237, %v1239
      %v1244 = vpack.c.bf16 %v1242, %v1241
      %v1245 = vpack.c.bf16 %v1243, %v1243
      %v1246 = vld [vmem:[%s5] sm:$0xf]
      %v1247 = vld [vmem:[%s5 + $0x4] sm:$0xf]
      %v1248 = vld [vmem:[%s5 + $0x8] sm:$0xf]
      %v1249 = vld [vmem:[%s5 + $0xc] sm:$0xf]
      %v1250 = vperm.slane %v744, 0
      %v1255 = vunpack.c.l.b16 %v1246
      %v1256 = vunpack.c.l.b16 %v1247
      %v1257 = vunpack.c.l.b16 %v1248
      %v1258 = vunpack.c.l.b16 %v1249
      %v1259 = vpack.c.b16 %v1256, %v1255
      %v1260 = vpack.c.b16 %v1258, %v1257
      %v1264 = vsel %vm733, %v1244, 0
      %v1267 = vsel %vm733, %v1245, 0
      %1269 = vmatpush.bf16.msra.mxu0 0
      %1270 = vmatpush.bf16.msra.mxu0 0
      %1271 = vmatpush.bf16.msra.mxu0 0
      %1272 = vmatpush.bf16.msra.mxu0 0
      %1273 = vmatpush.bf16.msra.mxu0 0
      %1274 = vmatpush.bf16.msra.mxu0 0
      %1275 = vmatpush.bf16.msra.mxu0 %v1260
      %1276 = vmatpush.bf16.msra.mxu0 %v1259
      %1277 = vmatmul.bf16.gmra.mxu0 %v1264
      %v1278 = vpop.f32.mrf.mxu0
      %v1279 = vadd.f32 %v1250, %v1278
      %v1280 = vpop.f32.mrf.mxu0
      %v1281 = vadd.f32 %v1250, %v1280
      %1282 = vmatmul.bf16.gmra.mxu0 %v1267
      %v1283 = vpop.f32.mrf.mxu0
      %v1284 = vadd.f32 %v1250, %v1283
      %v1285 = vpop.f32.mrf.mxu0
      %1286 = vdwg.mxu0
      %v1287 = vmul.f32 %v1279, 0.5
      %v1288 = vmul.f32 %v1281, 0.5
      %v1289 = vmul.f32 %v1284, 0.5
      %v1290 = vmul.f32 %v1279, %v1279
      %v1291 = vmul.f32 %v1281, %v1281
      %v1292 = vmul.f32 %v1284, %v1284
      %v1293 = vmul.f32 %v1290, %v1279
      %v1294 = vmul.f32 %v1291, %v1281
      %v1295 = vmul.f32 %v1292, %v1284
      %v1296 = vmul.f32 %v1293, 0.044715
      %v1297 = vmul.f32 %v1294, 0.044715
      %v1298 = vmul.f32 %v1295, 0.044715
      %v1299 = vadd.f32 %v1279, %v1296
      %v1300 = vadd.f32 %v1281, %v1297
      %v1301 = vadd.f32 %v1284, %v1298
      %v1302 = vmul.f32 %v1299, 0.7978846
      %v1303 = vmul.f32 %v1300, 0.7978846
      %v1304 = vmul.f32 %v1301, 0.7978846
      %v1305 = vtanh.pop %v1302
      %v1306 = vtanh.pop %v1303
      %v1307 = vtanh.pop %v1304
      %v1308 = vadd.f32 %v1305, 1.0
      %v1309 = vadd.f32 %v1306, 1.0
      %v1310 = vadd.f32 %v1307, 1.0
      %v1311 = vmul.f32 %v1287, %v1308
      %v1312 = vmul.f32 %v1288, %v1309
      %v1313 = vmul.f32 %v1289, %v1310
      %v1314 = vperm.slane %v745, 0
      %v1315 = vadd.f32 %v1163, %v1314
      %v1316 = vadd.f32 %v1164, %v1314
      %v1317 = vadd.f32 %v1165, %v1314
      %v1318 = vpack.c.bf16 %v1312, %v1311
      %v1319 = vpack.c.bf16 %v1313, %v1313
      %v1320 = vld [vmem:[%s6] sm:$0xf]
      %v1321 = vld [vmem:[%s6 + $0x4] sm:$0xf]
      %v1322 = vld [vmem:[%s6 + $0x8] sm:$0xf]
      %v1323 = vld [vmem:[%s6 + $0xc] sm:$0xf]
      %v1324 = vld [vmem:[%s6 + $0x10] sm:$0xf]
      %v1325 = vld [vmem:[%s6 + $0x14] sm:$0xf]
      %v1326 = vld [vmem:[%s6 + $0x18] sm:$0xf]
      %v1327 = vld [vmem:[%s6 + $0x1c] sm:$0xf]
      %v1328 = vld [vmem:[%s6 + $0x20] sm:$0xf]
      %v1329 = vld [vmem:[%s6 + $0x24] sm:$0xf]
      %v1330 = vld [vmem:[%s6 + $0x28] sm:$0xf]
      %v1331 = vld [vmem:[%s6 + $0x2c] sm:$0xf]
      %v1332 = vld [vmem:[%s6 + $0x30] sm:$0xf]
      %v1333 = vld [vmem:[%s6 + $0x34] sm:$0xf]
      %v1334 = vld [vmem:[%s6 + $0x38] sm:$0xf]
      %v1335 = vld [vmem:[%s6 + $0x3c] sm:$0xf]
      %v1352 = vunpack.c.l.b16 %v1320
      %v1353 = vunpack.c.l.b16 %v1321
      %v1354 = vunpack.c.l.b16 %v1322
      %v1355 = vunpack.c.l.b16 %v1323
      %v1356 = vunpack.c.l.b16 %v1324
      %v1357 = vunpack.c.l.b16 %v1325
      %v1358 = vunpack.c.l.b16 %v1326
      %v1359 = vunpack.c.l.b16 %v1327
      %v1360 = vunpack.c.l.b16 %v1328
      %v1361 = vunpack.c.l.b16 %v1329
      %v1362 = vunpack.c.l.b16 %v1330
      %v1363 = vunpack.c.l.b16 %v1331
      %v1364 = vunpack.c.l.b16 %v1332
      %v1365 = vunpack.c.l.b16 %v1333
      %v1366 = vunpack.c.l.b16 %v1334
      %v1367 = vunpack.c.l.b16 %v1335
      %v1368 = vpack.c.b16 %v1353, %v1352
      %v1369 = vpack.c.b16 %v1355, %v1354
      %v1370 = vpack.c.b16 %v1357, %v1356
      %v1371 = vpack.c.b16 %v1359, %v1358
      %v1372 = vpack.c.b16 %v1361, %v1360
      %v1373 = vpack.c.b16 %v1363, %v1362
      %v1374 = vpack.c.b16 %v1365, %v1364
      %v1375 = vpack.c.b16 %v1367, %v1366
      %1384 = vmatpush.bf16.msra.mxu0 %v1375
      %1385 = vmatpush.bf16.msra.mxu0 %v1374
      %1386 = vmatpush.bf16.msra.mxu0 %v1373
      %1387 = vmatpush.bf16.msra.mxu0 %v1372
      %1388 = vmatpush.bf16.msra.mxu0 %v1371
      %1389 = vmatpush.bf16.msra.mxu0 %v1370
      %1390 = vmatpush.bf16.msra.mxu0 %v1369
      %1391 = vmatpush.bf16.msra.mxu0 %v1368
      %1392 = vmatmul.bf16.gmra.mxu0 %v1318
      %v1393 = vpop.f32.mrf.mxu0
      %v1394 = vadd.f32 0.0, %v1393
      %v1395 = vpop.f32.mrf.mxu0
      %v1396 = vadd.f32 0.0, %v1395
      %1397 = vmatmul.bf16.gmra.mxu0 %v1319
      %v1398 = vpop.f32.mrf.mxu0
      %v1399 = vadd.f32 0.0, %v1398
      %v1400 = vpop.f32.mrf.mxu0
      %1401 = vdwg.mxu0
      %v1402 = vadd.f32 %v1315, %v1394
      %v1403 = vadd.f32 %v1316, %v1396
      %v1404 = vadd.f32 %v1317, %v1399
      %v1405 = vsel %vm733, %v1402, 0.0
      %1406 = vadd.xlane.f32.xlu0 %v1405
      %v1407 = vpop.xlane.xlu0 %1406
      %v1408 = vsel %vm733, %v1403, 0.0
      %1409 = vadd.xlane.f32.xlu0 %v1408
      %v1410 = vpop.xlane.xlu0 %1409
      %v1411 = vsel %vm737, %v1404, 0.0
      %1412 = vadd.xlane.f32.xlu0 %v1411
      %v1413 = vpop.xlane.xlu0 %1412
      %v1414 = vmul.f32 %v1407, %v761
      %v1415 = vmul.f32 %v1410, %v761
      %v1416 = vmul.f32 %v1413, %v761
      %v1417 = vsub.f32 %v1402, %v1414
      %v1418 = vsub.f32 %v1403, %v1415
      %v1419 = vsub.f32 %v1404, %v1416
      %v1420 = vmul.f32 %v1417, %v1417
      %v1421 = vmul.f32 %v1418, %v1418
      %v1422 = vmul.f32 %v1419, %v1419
      %v1423 = vsel %vm733, %v1420, 0.0
      %1424 = vadd.xlane.f32.xlu0 %v1423
      %v1425 = vpop.xlane.xlu0 %1424
      %v1426 = vsel %vm733, %v1421, 0.0
      %1427 = vadd.xlane.f32.xlu0 %v1426
      %v1428 = vpop.xlane.xlu0 %1427
      %v1429 = vsel %vm737, %v1422, 0.0
      %1430 = vadd.xlane.f32.xlu0 %v1429
      %v1431 = vpop.xlane.xlu0 %1430
      %v1432 = vmul.f32 %v1425, %v761
      %v1433 = vmul.f32 %v1428, %v761
      %v1434 = vmul.f32 %v1431, %v761
      %v1435 = vadd.f32 %v1432, 1e-06
      %v1436 = vadd.f32 %v1433, 1e-06
      %v1437 = vadd.f32 %v1434, 1e-06
      %v1438 = vrsqrt.pop %v1435
      %v1439 = vmul.f32 %v1438, %v1435
      %v1440 = vmul.f32 %v1439, %v1438
      %v1441 = vmul.f32 0.5, %v1440
      %v1442 = vsub.f32 1.5, %v1441
      %v1443 = vmul.f32 %v1438, %v1442
      %vm1444 = vweird.f32 %v1435
      %vm1445 = vweird.f32 %v1438
      %vm1446 = vmor %vm1444, %vm1445
      %v1447 = vsel %vm1446, %v1438, %v1443
      %v1448 = vrsqrt.pop %v1436
      %v1449 = vmul.f32 %v1448, %v1436
      %v1450 = vmul.f32 %v1449, %v1448
      %v1451 = vmul.f32 0.5, %v1450
      %v1452 = vsub.f32 1.5, %v1451
      %v1453 = vmul.f32 %v1448, %v1452
      %vm1454 = vweird.f32 %v1436
      %vm1455 = vweird.f32 %v1448
      %vm1456 = vmor %vm1454, %vm1455
      %v1457 = vsel %vm1456, %v1448, %v1453
      %v1458 = vrsqrt.pop %v1437
      %v1459 = vmul.f32 %v1458, %v1437
      %v1460 = vmul.f32 %v1459, %v1458
      %v1461 = vmul.f32 0.5, %v1460
      %v1462 = vsub.f32 1.5, %v1461
      %v1463 = vmul.f32 %v1458, %v1462
      %vm1464 = vweird.f32 %v1437
      %vm1465 = vweird.f32 %v1458
      %vm1466 = vmor %vm1464, %vm1465
      %v1467 = vsel %vm1466, %v1458, %v1463
      %v1468 = vmul.f32 %v1417, %v1447
      %v1469 = vmul.f32 %v1418, %v1457
      %v1470 = vmul.f32 %v1419, %v1467
      %1472 = vrot.lane.b32.xlu0 %v1314, 96
      %v1473 = vpop.permute.xlu0 %1472
      %v1475 = vmul.f32 %v1468, %v1473
      %v1476 = vmul.f32 %v1469, %v1473
      %v1477 = vmul.f32 %v1470, %v1473
      %1478 = vrot.lane.b32.xlu0 %v1314, 64
      %v1479 = vpop.permute.xlu0 %1478
      %v1481 = vadd.f32 %v1475, %v1479
      %v1482 = vadd.f32 %v1476, %v1479
      %v1483 = vadd.f32 %v1477, %v1479
      %1484 = vst.msk [vmem:[%s305] sm:$0xff] %vm733, %v1481
      %1485 = vst.msk [vmem:[%s305 + $0x8] sm:$0xff] %vm733, %v1482
      %1486 = vst.msk [vmem:[%s305 + $0x10] sm:$0x1f] %vm737, %v1483
      %v1487 = vld [vmem:[%s7 + $0x4] sm:$0x1]
      %v1488 = vld [vmem:[%s7 + $0x5] sm:$0x1]
      %v1489 = vld [vmem:[%s7 + $0x6] sm:$0x1]
      %v1490 = vld [vmem:[%s7 + $0x7] sm:$0x1]
      %v1491 = vperm.slane %v1487, 0
      %v1492 = vmul.f32 %v1468, %v1491
      %v1493 = vmul.f32 %v1469, %v1491
      %v1494 = vmul.f32 %v1470, %v1491
      %1496 = vrot.lane.b32.xlu0 %v1491, 96
      %v1497 = vpop.permute.xlu0 %1496
      %v1499 = vadd.f32 %v1492, %v1497
      %v1500 = vadd.f32 %v1493, %v1497
      %v1501 = vadd.f32 %v1494, %v1497
      %v1502 = vpack.c.bf16 %v1500, %v1499
      %v1503 = vpack.c.bf16 %v1501, %v1501
      %s1504 = scalar_lea.vmem %s3, 16
      %v1505 = vld [vmem:[%s1504] sm:$0xf]
      %v1506 = vld [vmem:[%s1504 + $0x4] sm:$0xf]
      %v1507 = vld [vmem:[%s1504 + $0x8] sm:$0xf]
      %v1508 = vld [vmem:[%s1504 + $0xc] sm:$0xf]
      %v1509 = vperm.slane %v1488, 0
      %v1514 = vunpack.c.l.b16 %v1505
      %v1515 = vunpack.c.l.b16 %v1506
      %v1516 = vunpack.c.l.b16 %v1507
      %v1517 = vunpack.c.l.b16 %v1508
      %v1518 = vpack.c.b16 %v1515, %v1514
      %v1519 = vpack.c.b16 %v1517, %v1516
      %v1523 = vsel %vm733, %v1502, 0
      %v1526 = vsel %vm733, %v1503, 0
      %1528 = vmatpush.bf16.msra.mxu0 0
      %1529 = vmatpush.bf16.msra.mxu0 0
      %1530 = vmatpush.bf16.msra.mxu0 0
      %1531 = vmatpush.bf16.msra.mxu0 0
      %1532 = vmatpush.bf16.msra.mxu0 0
      %1533 = vmatpush.bf16.msra.mxu0 0
      %1534 = vmatpush.bf16.msra.mxu0 %v1519
      %1535 = vmatpush.bf16.msra.mxu0 %v1518
      %1536 = vmatmul.bf16.gmra.mxu0 %v1523
      %v1537 = vpop.f32.mrf.mxu0
      %v1538 = vadd.f32 %v1509, %v1537
      %v1539 = vpop.f32.mrf.mxu0
      %v1540 = vadd.f32 %v1509, %v1539
      %1541 = vmatmul.bf16.gmra.mxu0 %v1526
      %v1542 = vpop.f32.mrf.mxu0
      %v1543 = vadd.f32 %v1509, %v1542
      %v1544 = vpop.f32.mrf.mxu0
      %1545 = vdwg.mxu0
      %v1546 = vpack.c.bf16 %v1540, %v1538
      %v1547 = vpack.c.bf16 %v1543, %v1543
      %1550 = vrot.lane.b32.xlu0 %v1546, 96
      %v1551 = vpop.permute.xlu0 %1550
      %1552 = vrot.lane.b32.xlu0 %v1547, 96
      %v1553 = vpop.permute.xlu0 %1552
      %v1555 = vsel %vm881, %v1546, 0
      %v1558 = vsel %vm881, %v1547, 0
      %v1561 = vsel %vm881, %v1551, 0
      %v1564 = vsel %vm881, %v1553, 0
      %1566 = vmatpush.bf16.xpose.msra.mxu0 0
      %1567 = vmatpush.bf16.xpose.msra.mxu0 0
      %1568 = vmatpush.bf16.xpose.msra.mxu0 0
      %1569 = vmatpush.bf16.xpose.msra.mxu0 0
      %1570 = vmatpush.bf16.xpose.msra.mxu0 0
      %1571 = vmatpush.bf16.xpose.msra.mxu0 0
      %1572 = vmatpush.bf16.xpose.msra.mxu0 %v1564
      %1573 = vmatpush.bf16.xpose.msra.mxu0 %v1561
      %1574 = vmatmul.bf16.gmra.mxu0 %v1555
      %v1575 = vpop.f32.mrf.mxu0
      %v1576 = vadd.f32 0.0, %v1575
      %v1577 = vpop.f32.mrf.mxu0
      %v1578 = vadd.f32 0.0, %v1577
      %1579 = vmatmul.bf16.gmra.mxu0 %v1558
      %v1580 = vpop.f32.mrf.mxu0
      %v1581 = vadd.f32 0.0, %v1580
      %v1582 = vpop.f32.mrf.mxu0
      %1583 = vdwg.mxu0
      %v1584 = vsel %vm912, %v1576, -inf
      %1585 = vmax.xlane.f32.xlu0 %v1584
      %v1586 = vpop.xlane.xlu0 %1585
      %v1587 = vsel %vm912, %v1578, -inf
      %1588 = vmax.xlane.f32.xlu0 %v1587
      %v1589 = vpop.xlane.xlu0 %1588
      %v1590 = vsel %vm919, %v1581, -inf
      %1591 = vmax.xlane.f32.xlu0 %v1590
      %v1592 = vpop.xlane.xlu0 %1591
      %v1593 = vsub.f32 %v1576, %v1586
      %v1594 = vsub.f32 %v1578, %v1589
      %v1595 = vsub.f32 %v1581, %v1592
      %v1596 = vmul.f32 %v1593, 1.442695
      %v1597 = vpow.pop %v1596
      %v1598 = vmul.f32 %v1594, 1.442695
      %v1599 = vpow.pop %v1598
      %v1600 = vmul.f32 %v1595, 1.442695
      %v1601 = vpow.pop %v1600
      %v1602 = vsel %vm912, %v1597, 0.0
      %1603 = vadd.xlane.f32.xlu0 %v1602
      %v1604 = vpop.xlane.xlu0 %1603
      %v1605 = vsel %vm912, %v1599, 0.0
      %1606 = vadd.xlane.f32.xlu0 %v1605
      %v1607 = vpop.xlane.xlu0 %1606
      %v1608 = vsel %vm919, %v1601, 0.0
      %1609 = vadd.xlane.f32.xlu0 %v1608
      %v1610 = vpop.xlane.xlu0 %1609
      %v1611 = vrcp.pop %v1604
      %v1612 = vrcp.pop %v1607
      %v1613 = vrcp.pop %v1610
      %v1614 = vmul.f32 %v1597, %v1611
      %v1615 = vmul.f32 %v1599, %v1612
      %v1616 = vmul.f32 %v1601, %v1613
      %v1617 = vpack.c.bf16 %v1615, %v1614
      %v1618 = vpack.c.bf16 %v1616, %v1616
      %1619 = vrot.lane.b32.xlu0 %v1546, 64
      %v1620 = vpop.permute.xlu0 %1619
      %1621 = vrot.lane.b32.xlu0 %v1547, 64
      %v1622 = vpop.permute.xlu0 %1621
      %v1625 = vsel %vm912, %v1617, 0
      %v1628 = vsel %vm912, %v1618, 0
      %v1631 = vand.u32 %v1622, %v963
      %1633 = vmatpush.bf16.msra.mxu0 0
      %1634 = vmatpush.bf16.msra.mxu0 0
      %1635 = vmatpush.bf16.msra.mxu0 0
      %1636 = vmatpush.bf16.msra.mxu0 0
      %1637 = vmatpush.bf16.msra.mxu0 0
      %1638 = vmatpush.bf16.msra.mxu0 0
      %1639 = vmatpush.bf16.msra.mxu0 %v1631
      %1640 = vmatpush.bf16.msra.mxu0 %v1620
      %1641 = vmatmul.bf16.gmra.mxu0 %v1625
      %v1642 = vpop.f32.mrf.mxu0
      %v1643 = vadd.f32 0.0, %v1642
      %v1644 = vpop.f32.mrf.mxu0
      %v1645 = vadd.f32 0.0, %v1644
      %1646 = vmatmul.bf16.gmra.mxu0 %v1628
      %v1647 = vpop.f32.mrf.mxu0
      %v1648 = vadd.f32 0.0, %v1647
      %v1649 = vpop.f32.mrf.mxu0
      %1650 = vdwg.mxu0
      %1651 = vst.msk [vmem:[#allocation3] sm:$0xff] %vm881, %v1643
      %1652 = vst.msk [vmem:[#allocation3 + $0x8] sm:$0xff] %vm881, %v1645
      %1653 = vst.msk [vmem:[#allocation3 + $0x10] sm:$0x1f] %vm987, %v1648
      %1654 = vrot.lane.b32.xlu0 %v1546, 112
      %v1655 = vpop.permute.xlu0 %1654
      %1656 = vrot.lane.b32.xlu0 %v1547, 112
      %v1657 = vpop.permute.xlu0 %1656
      %1658 = vrot.lane.b32.xlu0 %v1546, 80
      %v1659 = vpop.permute.xlu0 %1658
      %1660 = vrot.lane.b32.xlu0 %v1547, 80
      %v1661 = vpop.permute.xlu0 %1660
      %v1663 = vsel %vm881, %v1655, 0
      %v1666 = vsel %vm881, %v1657, 0
      %v1669 = vsel %vm881, %v1659, 0
      %v1672 = vsel %vm881, %v1661, 0
      %1674 = vmatpush.bf16.xpose.msra.mxu0 0
      %1675 = vmatpush.bf16.xpose.msra.mxu0 0
      %1676 = vmatpush.bf16.xpose.msra.mxu0 0
      %1677 = vmatpush.bf16.xpose.msra.mxu0 0
      %1678 = vmatpush.bf16.xpose.msra.mxu0 0
      %1679 = vmatpush.bf16.xpose.msra.mxu0 0
      %1680 = vmatpush.bf16.xpose.msra.mxu0 %v1672
      %1681 = vmatpush.bf16.xpose.msra.mxu0 %v1669
      %1682 = vmatmul.bf16.gmra.mxu0 %v1663
      %v1683 = vpop.f32.mrf.mxu0
      %v1684 = vadd.f32 0.0, %v1683
      %v1685 = vpop.f32.mrf.mxu0
      %v1686 = vadd.f32 0.0, %v1685
      %1687 = vmatmul.bf16.gmra.mxu0 %v1666
      %v1688 = vpop.f32.mrf.mxu0
      %v1689 = vadd.f32 0.0, %v1688
      %v1690 = vpop.f32.mrf.mxu0
      %1691 = vdwg.mxu0
      %v1692 = vsel %vm912, %v1684, -inf
      %1693 = vmax.xlane.f32.xlu0 %v1692
      %v1694 = vpop.xlane.xlu0 %1693
      %v1695 = vsel %vm912, %v1686, -inf
      %1696 = vmax.xlane.f32.xlu0 %v1695
      %v1697 = vpop.xlane.xlu0 %1696
      %v1698 = vsel %vm919, %v1689, -inf
      %1699 = vmax.xlane.f32.xlu0 %v1698
      %v1700 = vpop.xlane.xlu0 %1699
      %v1701 = vsub.f32 %v1684, %v1694
      %v1702 = vsub.f32 %v1686, %v1697
      %v1703 = vsub.f32 %v1689, %v1700
      %v1704 = vmul.f32 %v1701, 1.442695
      %v1705 = vpow.pop %v1704
      %v1706 = vmul.f32 %v1702, 1.442695
      %v1707 = vpow.pop %v1706
      %v1708 = vmul.f32 %v1703, 1.442695
      %v1709 = vpow.pop %v1708
      %v1710 = vsel %vm912, %v1705, 0.0
      %1711 = vadd.xlane.f32.xlu0 %v1710
      %v1712 = vpop.xlane.xlu0 %1711
      %v1713 = vsel %vm912, %v1707, 0.0
      %1714 = vadd.xlane.f32.xlu0 %v1713
      %v1715 = vpop.xlane.xlu0 %1714
      %v1716 = vsel %vm919, %v1709, 0.0
      %1717 = vadd.xlane.f32.xlu0 %v1716
      %v1718 = vpop.xlane.xlu0 %1717
      %v1719 = vrcp.pop %v1712
      %v1720 = vrcp.pop %v1715
      %v1721 = vrcp.pop %v1718
      %v1722 = vmul.f32 %v1705, %v1719
      %v1723 = vmul.f32 %v1707, %v1720
      %v1724 = vmul.f32 %v1709, %v1721
      %v1725 = vpack.c.bf16 %v1723, %v1722
      %v1726 = vpack.c.bf16 %v1724, %v1724
      %1727 = vrot.lane.b32.xlu0 %v1546, 48
      %v1728 = vpop.permute.xlu0 %1727
      %1729 = vrot.lane.b32.xlu0 %v1547, 48
      %v1730 = vpop.permute.xlu0 %1729
      %v1733 = vsel %vm912, %v1725, 0
      %v1736 = vsel %vm912, %v1726, 0
      %v1739 = vand.u32 %v1730, %v963
      %1741 = vmatpush.bf16.msra.mxu0 0
      %1742 = vmatpush.bf16.msra.mxu0 0
      %1743 = vmatpush.bf16.msra.mxu0 0
      %1744 = vmatpush.bf16.msra.mxu0 0
      %1745 = vmatpush.bf16.msra.mxu0 0
      %1746 = vmatpush.bf16.msra.mxu0 0
      %1747 = vmatpush.bf16.msra.mxu0 %v1739
      %1748 = vmatpush.bf16.msra.mxu0 %v1728
      %1749 = vmatmul.bf16.gmra.mxu0 %v1733
      %v1750 = vpop.f32.mrf.mxu0
      %v1751 = vadd.f32 0.0, %v1750
      %v1752 = vpop.f32.mrf.mxu0
      %v1753 = vadd.f32 0.0, %v1752
      %1754 = vmatmul.bf16.gmra.mxu0 %v1736
      %v1755 = vpop.f32.mrf.mxu0
      %v1756 = vadd.f32 0.0, %v1755
      %v1757 = vpop.f32.mrf.mxu0
      %1758 = vdwg.mxu0
      %1762 = vrot.lane.b32.xlu0 %v1751, 16
      %v1763 = vpop.permute.xlu0 %1762
      %1764 = vrot.lane.b32.xlu0 %v1753, 16
      %v1765 = vpop.permute.xlu0 %1764
      %1766 = vrot.lane.b32.xlu0 %v1756, 16
      %v1767 = vpop.permute.xlu0 %1766
      %1771 = vst.msk [vmem:[#allocation3] sm:$0xff] %vm1106, %v1763
      %1772 = vst.msk [vmem:[#allocation3 + $0x8] sm:$0xff] %vm1106, %v1765
      %1773 = vst.msk [vmem:[#allocation3 + $0x10] sm:$0x1f] %vm1109, %v1767
      %1775 = vrot.lane.b32.xlu0 %v1509, 32
      %v1776 = vpop.permute.xlu0 %1775
      %v1778 = vadd.f32 %v1402, %v1776
      %v1779 = vadd.f32 %v1403, %v1776
      %v1780 = vadd.f32 %v1404, %v1776
      %v1781 = vld [vmem:[#allocation3] sm:$0xff]
      %v1782 = vld [vmem:[#allocation3 + $0x8] sm:$0xff]
      %v1783 = vld [vmem:[#allocation3 + $0x10] sm:$0x1f]
      %v1784 = vpack.c.bf16 %v1782, %v1781
      %v1785 = vpack.c.bf16 %v1783, %v1783
      %s1786 = scalar_lea.vmem %s4, 16
      %v1787 = vld [vmem:[%s1786] sm:$0xf]
      %v1788 = vld [vmem:[%s1786 + $0x4] sm:$0xf]
      %v1789 = vld [vmem:[%s1786 + $0x8] sm:$0xf]
      %v1790 = vld [vmem:[%s1786 + $0xc] sm:$0xf]
      %v1795 = vunpack.c.l.b16 %v1787
      %v1796 = vunpack.c.l.b16 %v1788
      %v1797 = vunpack.c.l.b16 %v1789
      %v1798 = vunpack.c.l.b16 %v1790
      %v1799 = vpack.c.b16 %v1796, %v1795
      %v1800 = vpack.c.b16 %v1798, %v1797
      %v1804 = vsel %vm733, %v1784, 0
      %v1807 = vsel %vm733, %v1785, 0
      %1809 = vmatpush.bf16.msra.mxu0 0
      %1810 = vmatpush.bf16.msra.mxu0 0
      %1811 = vmatpush.bf16.msra.mxu0 0
      %1812 = vmatpush.bf16.msra.mxu0 0
      %1813 = vmatpush.bf16.msra.mxu0 0
      %1814 = vmatpush.bf16.msra.mxu0 0
      %1815 = vmatpush.bf16.msra.mxu0 %v1800
      %1816 = vmatpush.bf16.msra.mxu0 %v1799
      %1817 = vmatmul.bf16.gmra.mxu0 %v1804
      %v1818 = vpop.f32.mrf.mxu0
      %v1819 = vadd.f32 0.0, %v1818
      %v1820 = vpop.f32.mrf.mxu0
      %v1821 = vadd.f32 0.0, %v1820
      %1822 = vmatmul.bf16.gmra.mxu0 %v1807
      %v1823 = vpop.f32.mrf.mxu0
      %v1824 = vadd.f32 0.0, %v1823
      %v1825 = vpop.f32.mrf.mxu0
      %1826 = vdwg.mxu0
      %v1827 = vadd.f32 %v1778, %v1819
      %v1828 = vadd.f32 %v1779, %v1821
      %v1829 = vadd.f32 %v1780, %v1824
      %v1830 = vsel %vm733, %v1827, 0.0
      %1831 = vadd.xlane.f32.xlu0 %v1830
      %v1832 = vpop.xlane.xlu0 %1831
      %v1833 = vsel %vm733, %v1828, 0.0
      %1834 = vadd.xlane.f32.xlu0 %v1833
      %v1835 = vpop.xlane.xlu0 %1834
      %v1836 = vsel %vm737, %v1829, 0.0
      %1837 = vadd.xlane.f32.xlu0 %v1836
      %v1838 = vpop.xlane.xlu0 %1837
      %v1839 = vmul.f32 %v1832, %v761
      %v1840 = vmul.f32 %v1835, %v761
      %v1841 = vmul.f32 %v1838, %v761
      %v1842 = vsub.f32 %v1827, %v1839
      %v1843 = vsub.f32 %v1828, %v1840
      %v1844 = vsub.f32 %v1829, %v1841
      %v1845 = vmul.f32 %v1842, %v1842
      %v1846 = vmul.f32 %v1843, %v1843
      %v1847 = vmul.f32 %v1844, %v1844
      %v1848 = vsel %vm733, %v1845, 0.0
      %1849 = vadd.xlane.f32.xlu0 %v1848
      %v1850 = vpop.xlane.xlu0 %1849
      %v1851 = vsel %vm733, %v1846, 0.0
      %1852 = vadd.xlane.f32.xlu0 %v1851
      %v1853 = vpop.xlane.xlu0 %1852
      %v1854 = vsel %vm737, %v1847, 0.0
      %1855 = vadd.xlane.f32.xlu0 %v1854
      %v1856 = vpop.xlane.xlu0 %1855
      %v1857 = vmul.f32 %v1850, %v761
      %v1858 = vmul.f32 %v1853, %v761
      %v1859 = vmul.f32 %v1856, %v761
      %v1860 = vadd.f32 %v1857, 1e-06
      %v1861 = vadd.f32 %v1858, 1e-06
      %v1862 = vadd.f32 %v1859, 1e-06
      %v1863 = vrsqrt.pop %v1860
      %v1864 = vmul.f32 %v1863, %v1860
      %v1865 = vmul.f32 %v1864, %v1863
      %v1866 = vmul.f32 0.5, %v1865
      %v1867 = vsub.f32 1.5, %v1866
      %v1868 = vmul.f32 %v1863, %v1867
      %vm1869 = vweird.f32 %v1860
      %vm1870 = vweird.f32 %v1863
      %vm1871 = vmor %vm1869, %vm1870
      %v1872 = vsel %vm1871, %v1863, %v1868
      %v1873 = vrsqrt.pop %v1861
      %v1874 = vmul.f32 %v1873, %v1861
      %v1875 = vmul.f32 %v1874, %v1873
      %v1876 = vmul.f32 0.5, %v1875
      %v1877 = vsub.f32 1.5, %v1876
      %v1878 = vmul.f32 %v1873, %v1877
      %vm1879 = vweird.f32 %v1861
      %vm1880 = vweird.f32 %v1873
      %vm1881 = vmor %vm1879, %vm1880
      %v1882 = vsel %vm1881, %v1873, %v1878
      %v1883 = vrsqrt.pop %v1862
      %v1884 = vmul.f32 %v1883, %v1862
      %v1885 = vmul.f32 %v1884, %v1883
      %v1886 = vmul.f32 0.5, %v1885
      %v1887 = vsub.f32 1.5, %v1886
      %v1888 = vmul.f32 %v1883, %v1887
      %vm1889 = vweird.f32 %v1862
      %vm1890 = vweird.f32 %v1883
      %vm1891 = vmor %vm1889, %vm1890
      %v1892 = vsel %vm1891, %v1883, %v1888
      %v1893 = vmul.f32 %v1842, %v1872
      %v1894 = vmul.f32 %v1843, %v1882
      %v1895 = vmul.f32 %v1844, %v1892
      %1896 = vrot.lane.b32.xlu0 %v1491, 64
      %v1897 = vpop.permute.xlu0 %1896
      %v1899 = vmul.f32 %v1893, %v1897
      %v1900 = vmul.f32 %v1894, %v1897
      %v1901 = vmul.f32 %v1895, %v1897
      %1902 = vrot.lane.b32.xlu0 %v1491, 32
      %v1903 = vpop.permute.xlu0 %1902
      %v1905 = vadd.f32 %v1899, %v1903
      %v1906 = vadd.f32 %v1900, %v1903
      %v1907 = vadd.f32 %v1901, %v1903
      %v1908 = vpack.c.bf16 %v1906, %v1905
      %v1909 = vpack.c.bf16 %v1907, %v1907
      %s1910 = scalar_lea.vmem %s5, 16
      %v1911 = vld [vmem:[%s1910] sm:$0xf]
      %v1912 = vld [vmem:[%s1910 + $0x4] sm:$0xf]
      %v1913 = vld [vmem:[%s1910 + $0x8] sm:$0xf]
      %v1914 = vld [vmem:[%s1910 + $0xc] sm:$0xf]
      %v1915 = vperm.slane %v1489, 0
      %v1920 = vunpack.c.l.b16 %v1911
      %v1921 = vunpack.c.l.b16 %v1912
      %v1922 = vunpack.c.l.b16 %v1913
      %v1923 = vunpack.c.l.b16 %v1914
      %v1924 = vpack.c.b16 %v1921, %v1920
      %v1925 = vpack.c.b16 %v1923, %v1922
      %v1929 = vsel %vm733, %v1908, 0
      %v1932 = vsel %vm733, %v1909, 0
      %1934 = vmatpush.bf16.msra.mxu0 0
      %1935 = vmatpush.bf16.msra.mxu0 0
      %1936 = vmatpush.bf16.msra.mxu0 0
      %1937 = vmatpush.bf16.msra.mxu0 0
      %1938 = vmatpush.bf16.msra.mxu0 0
      %1939 = vmatpush.bf16.msra.mxu0 0
      %1940 = vmatpush.bf16.msra.mxu0 %v1925
      %1941 = vmatpush.bf16.msra.mxu0 %v1924
      %1942 = vmatmul.bf16.gmra.mxu0 %v1929
      %v1943 = vpop.f32.mrf.mxu0
      %v1944 = vadd.f32 %v1915, %v1943
      %v1945 = vpop.f32.mrf.mxu0
      %v1946 = vadd.f32 %v1915, %v1945
      %1947 = vmatmul.bf16.gmra.mxu0 %v1932
      %v1948 = vpop.f32.mrf.mxu0
      %v1949 = vadd.f32 %v1915, %v1948
      %v1950 = vpop.f32.mrf.mxu0
      %1951 = vdwg.mxu0
      %v1952 = vmul.f32 %v1944, 0.5
      %v1953 = vmul.f32 %v1946, 0.5
      %v1954 = vmul.f32 %v1949, 0.5
      %v1955 = vmul.f32 %v1944, %v1944
      %v1956 = vmul.f32 %v1946, %v1946
      %v1957 = vmul.f32 %v1949, %v1949
      %v1958 = vmul.f32 %v1955, %v1944
      %v1959 = vmul.f32 %v1956, %v1946
      %v1960 = vmul.f32 %v1957, %v1949
      %v1961 = vmul.f32 %v1958, 0.044715
      %v1962 = vmul.f32 %v1959, 0.044715
      %v1963 = vmul.f32 %v1960, 0.044715
      %v1964 = vadd.f32 %v1944, %v1961
      %v1965 = vadd.f32 %v1946, %v1962
      %v1966 = vadd.f32 %v1949, %v1963
      %v1967 = vmul.f32 %v1964, 0.7978846
      %v1968 = vmul.f32 %v1965, 0.7978846
      %v1969 = vmul.f32 %v1966, 0.7978846
      %v1970 = vtanh.pop %v1967
      %v1971 = vtanh.pop %v1968
      %v1972 = vtanh.pop %v1969
      %v1973 = vadd.f32 %v1970, 1.0
      %v1974 = vadd.f32 %v1971, 1.0
      %v1975 = vadd.f32 %v1972, 1.0
      %v1976 = vmul.f32 %v1952, %v1973
      %v1977 = vmul.f32 %v1953, %v1974
      %v1978 = vmul.f32 %v1954, %v1975
      %v1979 = vperm.slane %v1490, 0
      %v1980 = vadd.f32 %v1827, %v1979
      %v1981 = vadd.f32 %v1828, %v1979
      %v1982 = vadd.f32 %v1829, %v1979
      %v1983 = vpack.c.bf16 %v1977, %v1976
      %v1984 = vpack.c.bf16 %v1978, %v1978
      %s1985 = scalar_lea.vmem %s6, 64
      %v1986 = vld [vmem:[%s1985] sm:$0xf]
      %v1987 = vld [vmem:[%s1985 + $0x4] sm:$0xf]
      %v1988 = vld [vmem:[%s1985 + $0x8] sm:$0xf]
      %v1989 = vld [vmem:[%s1985 + $0xc] sm:$0xf]
      %v1990 = vld [vmem:[%s1985 + $0x10] sm:$0xf]
      %v1991 = vld [vmem:[%s1985 + $0x14] sm:$0xf]
      %v1992 = vld [vmem:[%s1985 + $0x18] sm:$0xf]
      %v1993 = vld [vmem:[%s1985 + $0x1c] sm:$0xf]
      %v1994 = vld [vmem:[%s1985 + $0x20] sm:$0xf]
      %v1995 = vld [vmem:[%s1985 + $0x24] sm:$0xf]
      %v1996 = vld [vmem:[%s1985 + $0x28] sm:$0xf]
      %v1997 = vld [vmem:[%s1985 + $0x2c] sm:$0xf]
      %v1998 = vld [vmem:[%s1985 + $0x30] sm:$0xf]
      %v1999 = vld [vmem:[%s1985 + $0x34] sm:$0xf]
      %v2000 = vld [vmem:[%s1985 + $0x38] sm:$0xf]
      %v2001 = vld [vmem:[%s1985 + $0x3c] sm:$0xf]
      %v2018 = vunpack.c.l.b16 %v1986
      %v2019 = vunpack.c.l.b16 %v1987
      %v2020 = vunpack.c.l.b16 %v1988
      %v2021 = vunpack.c.l.b16 %v1989
      %v2022 = vunpack.c.l.b16 %v1990
      %v2023 = vunpack.c.l.b16 %v1991
      %v2024 = vunpack.c.l.b16 %v1992
      %v2025 = vunpack.c.l.b16 %v1993
      %v2026 = vunpack.c.l.b16 %v1994
      %v2027 = vunpack.c.l.b16 %v1995
      %v2028 = vunpack.c.l.b16 %v1996
      %v2029 = vunpack.c.l.b16 %v1997
      %v2030 = vunpack.c.l.b16 %v1998
      %v2031 = vunpack.c.l.b16 %v1999
      %v2032 = vunpack.c.l.b16 %v2000
      %v2033 = vunpack.c.l.b16 %v2001
      %v2034 = vpack.c.b16 %v2019, %v2018
      %v2035 = vpack.c.b16 %v2021, %v2020
      %v2036 = vpack.c.b16 %v2023, %v2022
      %v2037 = vpack.c.b16 %v2025, %v2024
      %v2038 = vpack.c.b16 %v2027, %v2026
      %v2039 = vpack.c.b16 %v2029, %v2028
      %v2040 = vpack.c.b16 %v2031, %v2030
      %v2041 = vpack.c.b16 %v2033, %v2032
      %2050 = vmatpush.bf16.msra.mxu0 %v2041
      %2051 = vmatpush.bf16.msra.mxu0 %v2040
      %2052 = vmatpush.bf16.msra.mxu0 %v2039
      %2053 = vmatpush.bf16.msra.mxu0 %v2038
      %2054 = vmatpush.bf16.msra.mxu0 %v2037
      %2055 = vmatpush.bf16.msra.mxu0 %v2036
      %2056 = vmatpush.bf16.msra.mxu0 %v2035
      %2057 = vmatpush.bf16.msra.mxu0 %v2034
      %2058 = vmatmul.bf16.gmra.mxu0 %v1983
      %v2059 = vpop.f32.mrf.mxu0
      %v2060 = vadd.f32 0.0, %v2059
      %v2061 = vpop.f32.mrf.mxu0
      %v2062 = vadd.f32 0.0, %v2061
      %2063 = vmatmul.bf16.gmra.mxu0 %v1984
      %v2064 = vpop.f32.mrf.mxu0
      %v2065 = vadd.f32 0.0, %v2064
      %v2066 = vpop.f32.mrf.mxu0
      %2067 = vdwg.mxu0
      %v2068 = vadd.f32 %v1980, %v2060
      %v2069 = vadd.f32 %v1981, %v2062
      %v2070 = vadd.f32 %v1982, %v2065
      %v2071 = vsel %vm733, %v2068, 0.0
      %2072 = vadd.xlane.f32.xlu0 %v2071
      %v2073 = vpop.xlane.xlu0 %2072
      %v2074 = vsel %vm733, %v2069, 0.0
      %2075 = vadd.xlane.f32.xlu0 %v2074
      %v2076 = vpop.xlane.xlu0 %2075
      %v2077 = vsel %vm737, %v2070, 0.0
      %2078 = vadd.xlane.f32.xlu0 %v2077
      %v2079 = vpop.xlane.xlu0 %2078
      %v2080 = vmul.f32 %v2073, %v761
      %v2081 = vmul.f32 %v2076, %v761
      %v2082 = vmul.f32 %v2079, %v761
      %v2083 = vsub.f32 %v2068, %v2080
      %v2084 = vsub.f32 %v2069, %v2081
      %v2085 = vsub.f32 %v2070, %v2082
      %v2086 = vmul.f32 %v2083, %v2083
      %v2087 = vmul.f32 %v2084, %v2084
      %v2088 = vmul.f32 %v2085, %v2085
      %v2089 = vsel %vm733, %v2086, 0.0
      %2090 = vadd.xlane.f32.xlu0 %v2089
      %v2091 = vpop.xlane.xlu0 %2090
      %v2092 = vsel %vm733, %v2087, 0.0
      %2093 = vadd.xlane.f32.xlu0 %v2092
      %v2094 = vpop.xlane.xlu0 %2093
      %v2095 = vsel %vm737, %v2088, 0.0
      %2096 = vadd.xlane.f32.xlu0 %v2095
      %v2097 = vpop.xlane.xlu0 %2096
      %v2098 = vmul.f32 %v2091, %v761
      %v2099 = vmul.f32 %v2094, %v761
      %v2100 = vmul.f32 %v2097, %v761
      %v2101 = vadd.f32 %v2098, 1e-06
      %v2102 = vadd.f32 %v2099, 1e-06
      %v2103 = vadd.f32 %v2100, 1e-06
      %v2104 = vrsqrt.pop %v2101
      %v2105 = vmul.f32 %v2104, %v2101
      %v2106 = vmul.f32 %v2105, %v2104
      %v2107 = vmul.f32 0.5, %v2106
      %v2108 = vsub.f32 1.5, %v2107
      %v2109 = vmul.f32 %v2104, %v2108
      %vm2110 = vweird.f32 %v2101
      %vm2111 = vweird.f32 %v2104
      %vm2112 = vmor %vm2110, %vm2111
      %v2113 = vsel %vm2112, %v2104, %v2109
      %v2114 = vrsqrt.pop %v2102
      %v2115 = vmul.f32 %v2114, %v2102
      %v2116 = vmul.f32 %v2115, %v2114
      %v2117 = vmul.f32 0.5, %v2116
      %v2118 = vsub.f32 1.5, %v2117
      %v2119 = vmul.f32 %v2114, %v2118
      %vm2120 = vweird.f32 %v2102
      %vm2121 = vweird.f32 %v2114
      %vm2122 = vmor %vm2120, %vm2121
      %v2123 = vsel %vm2122, %v2114, %v2119
      %v2124 = vrsqrt.pop %v2103
      %v2125 = vmul.f32 %v2124, %v2103
      %v2126 = vmul.f32 %v2125, %v2124
      %v2127 = vmul.f32 0.5, %v2126
      %v2128 = vsub.f32 1.5, %v2127
      %v2129 = vmul.f32 %v2124, %v2128
      %vm2130 = vweird.f32 %v2103
      %vm2131 = vweird.f32 %v2124
      %vm2132 = vmor %vm2130, %vm2131
      %v2133 = vsel %vm2132, %v2124, %v2129
      %v2134 = vmul.f32 %v2083, %v2113
      %v2135 = vmul.f32 %v2084, %v2123
      %v2136 = vmul.f32 %v2085, %v2133
      %2138 = vrot.lane.b32.xlu0 %v1979, 96
      %v2139 = vpop.permute.xlu0 %2138
      %v2141 = vmul.f32 %v2134, %v2139
      %v2142 = vmul.f32 %v2135, %v2139
      %v2143 = vmul.f32 %v2136, %v2139
      %2144 = vrot.lane.b32.xlu0 %v1979, 64
      %v2145 = vpop.permute.xlu0 %2144
      %v2147 = vadd.f32 %v2141, %v2145
      %v2148 = vadd.f32 %v2142, %v2145
      %v2149 = vadd.f32 %v2143, %v2145
      %2153 = vrot.lane.b32.xlu0 %v2147, 32
      %v2154 = vpop.permute.xlu0 %2153
      %2155 = vrot.lane.b32.xlu0 %v2148, 32
      %v2156 = vpop.permute.xlu0 %2155
      %2157 = vrot.lane.b32.xlu0 %v2149, 32
      %v2158 = vpop.permute.xlu0 %2157
      %vm2162 = vcmask 523520
      %2163 = vst.msk [vmem:[%s305] sm:$0xff] %vm2162, %v2154
      %2164 = vst.msk [vmem:[%s305 + $0x8] sm:$0xff] %vm2162, %v2156
      %vm2165 = vcmask 520448
      %2166 = vst.msk [vmem:[%s305 + $0x10] sm:$0x1f] %vm2165, %v2158
      %v2167 = vld [vmem:[%s7 + $0x8] sm:$0x1]
      %v2168 = vld [vmem:[%s7 + $0x9] sm:$0x1]
      %v2169 = vld [vmem:[%s7 + $0xa] sm:$0x1]
      %v2170 = vld [vmem:[%s7 + $0xb] sm:$0x1]
      %v2171 = vperm.slane %v2167, 0
      %v2172 = vmul.f32 %v2134, %v2171
      %v2173 = vmul.f32 %v2135, %v2171
      %v2174 = vmul.f32 %v2136, %v2171
      %2176 = vrot.lane.b32.xlu0 %v2171, 96
      %v2177 = vpop.permute.xlu0 %2176
      %v2179 = vadd.f32 %v2172, %v2177
      %v2180 = vadd.f32 %v2173, %v2177
      %v2181 = vadd.f32 %v2174, %v2177
      %v2182 = vpack.c.bf16 %v2180, %v2179
      %v2183 = vpack.c.bf16 %v2181, %v2181
      %s2184 = scalar_lea.vmem %s3, 32
      %v2185 = vld [vmem:[%s2184] sm:$0xf]
      %v2186 = vld [vmem:[%s2184 + $0x4] sm:$0xf]
      %v2187 = vld [vmem:[%s2184 + $0x8] sm:$0xf]
      %v2188 = vld [vmem:[%s2184 + $0xc] sm:$0xf]
      %v2189 = vperm.slane %v2168, 0
      %v2194 = vunpack.c.l.b16 %v2185
      %v2195 = vunpack.c.l.b16 %v2186
      %v2196 = vunpack.c.l.b16 %v2187
      %v2197 = vunpack.c.l.b16 %v2188
      %v2198 = vpack.c.b16 %v2195, %v2194
      %v2199 = vpack.c.b16 %v2197, %v2196
      %v2203 = vsel %vm733, %v2182, 0
      %v2206 = vsel %vm733, %v2183, 0
      %2208 = vmatpush.bf16.msra.mxu0 0
      %2209 = vmatpush.bf16.msra.mxu0 0
      %2210 = vmatpush.bf16.msra.mxu0 0
      %2211 = vmatpush.bf16.msra.mxu0 0
      %2212 = vmatpush.bf16.msra.mxu0 0
      %2213 = vmatpush.bf16.msra.mxu0 0
      %2214 = vmatpush.bf16.msra.mxu0 %v2199
      %2215 = vmatpush.bf16.msra.mxu0 %v2198
      %2216 = vmatmul.bf16.gmra.mxu0 %v2203
      %v2217 = vpop.f32.mrf.mxu0
      %v2218 = vadd.f32 %v2189, %v2217
      %v2219 = vpop.f32.mrf.mxu0
      %v2220 = vadd.f32 %v2189, %v2219
      %2221 = vmatmul.bf16.gmra.mxu0 %v2206
      %v2222 = vpop.f32.mrf.mxu0
      %v2223 = vadd.f32 %v2189, %v2222
      %v2224 = vpop.f32.mrf.mxu0
      %2225 = vdwg.mxu0
      %v2226 = vpack.c.bf16 %v2220, %v2218
      %v2227 = vpack.c.bf16 %v2223, %v2223
      %2230 = vrot.lane.b32.xlu0 %v2226, 96
      %v2231 = vpop.permute.xlu0 %2230
      %2232 = vrot.lane.b32.xlu0 %v2227, 96
      %v2233 = vpop.permute.xlu0 %2232
      %v2235 = vsel %vm881, %v2226, 0
      %v2238 = vsel %vm881, %v2227, 0
      %v2241 = vsel %vm881, %v2231, 0
      %v2244 = vsel %vm881, %v2233, 0
      %2246 = vmatpush.bf16.xpose.msra.mxu0 0
      %2247 = vmatpush.bf16.xpose.msra.mxu0 0
      %2248 = vmatpush.bf16.xpose.msra.mxu0 0
      %2249 = vmatpush.bf16.xpose.msra.mxu0 0
      %2250 = vmatpush.bf16.xpose.msra.mxu0 0
      %2251 = vmatpush.bf16.xpose.msra.mxu0 0
      %2252 = vmatpush.bf16.xpose.msra.mxu0 %v2244
      %2253 = vmatpush.bf16.xpose.msra.mxu0 %v2241
      %2254 = vmatmul.bf16.gmra.mxu0 %v2235
      %v2255 = vpop.f32.mrf.mxu0
      %v2256 = vadd.f32 0.0, %v2255
      %v2257 = vpop.f32.mrf.mxu0
      %v2258 = vadd.f32 0.0, %v2257
      %2259 = vmatmul.bf16.gmra.mxu0 %v2238
      %v2260 = vpop.f32.mrf.mxu0
      %v2261 = vadd.f32 0.0, %v2260
      %v2262 = vpop.f32.mrf.mxu0
      %2263 = vdwg.mxu0
      %v2264 = vsel %vm912, %v2256, -inf
      %2265 = vmax.xlane.f32.xlu0 %v2264
      %v2266 = vpop.xlane.xlu0 %2265
      %v2267 = vsel %vm912, %v2258, -inf
      %2268 = vmax.xlane.f32.xlu0 %v2267
      %v2269 = vpop.xlane.xlu0 %2268
      %v2270 = vsel %vm919, %v2261, -inf
      %2271 = vmax.xlane.f32.xlu0 %v2270
      %v2272 = vpop.xlane.xlu0 %2271
      %v2273 = vsub.f32 %v2256, %v2266
      %v2274 = vsub.f32 %v2258, %v2269
      %v2275 = vsub.f32 %v2261, %v2272
      %v2276 = vmul.f32 %v2273, 1.442695
      %v2277 = vpow.pop %v2276
      %v2278 = vmul.f32 %v2274, 1.442695
      %v2279 = vpow.pop %v2278
      %v2280 = vmul.f32 %v2275, 1.442695
      %v2281 = vpow.pop %v2280
      %v2282 = vsel %vm912, %v2277, 0.0
      %2283 = vadd.xlane.f32.xlu0 %v2282
      %v2284 = vpop.xlane.xlu0 %2283
      %v2285 = vsel %vm912, %v2279, 0.0
      %2286 = vadd.xlane.f32.xlu0 %v2285
      %v2287 = vpop.xlane.xlu0 %2286
      %v2288 = vsel %vm919, %v2281, 0.0
      %2289 = vadd.xlane.f32.xlu0 %v2288
      %v2290 = vpop.xlane.xlu0 %2289
      %v2291 = vrcp.pop %v2284
      %v2292 = vrcp.pop %v2287
      %v2293 = vrcp.pop %v2290
      %v2294 = vmul.f32 %v2277, %v2291
      %v2295 = vmul.f32 %v2279, %v2292
      %v2296 = vmul.f32 %v2281, %v2293
      %v2297 = vpack.c.bf16 %v2295, %v2294
      %v2298 = vpack.c.bf16 %v2296, %v2296
      %2299 = vrot.lane.b32.xlu0 %v2226, 64
      %v2300 = vpop.permute.xlu0 %2299
      %2301 = vrot.lane.b32.xlu0 %v2227, 64
      %v2302 = vpop.permute.xlu0 %2301
      %v2305 = vsel %vm912, %v2297, 0
      %v2308 = vsel %vm912, %v2298, 0
      %v2311 = vand.u32 %v2302, %v963
      %2313 = vmatpush.bf16.msra.mxu0 0
      %2314 = vmatpush.bf16.msra.mxu0 0
      %2315 = vmatpush.bf16.msra.mxu0 0
      %2316 = vmatpush.bf16.msra.mxu0 0
      %2317 = vmatpush.bf16.msra.mxu0 0
      %2318 = vmatpush.bf16.msra.mxu0 0
      %2319 = vmatpush.bf16.msra.mxu0 %v2311
      %2320 = vmatpush.bf16.msra.mxu0 %v2300
      %2321 = vmatmul.bf16.gmra.mxu0 %v2305
      %v2322 = vpop.f32.mrf.mxu0
      %v2323 = vadd.f32 0.0, %v2322
      %v2324 = vpop.f32.mrf.mxu0
      %v2325 = vadd.f32 0.0, %v2324
      %2326 = vmatmul.bf16.gmra.mxu0 %v2308
      %v2327 = vpop.f32.mrf.mxu0
      %v2328 = vadd.f32 0.0, %v2327
      %v2329 = vpop.f32.mrf.mxu0
      %2330 = vdwg.mxu0
      %2331 = vst.msk [vmem:[#allocation3] sm:$0xff] %vm881, %v2323
      %2332 = vst.msk [vmem:[#allocation3 + $0x8] sm:$0xff] %vm881, %v2325
      %2333 = vst.msk [vmem:[#allocation3 + $0x10] sm:$0x1f] %vm987, %v2328
      %2334 = vrot.lane.b32.xlu0 %v2226, 112
      %v2335 = vpop.permute.xlu0 %2334
      %2336 = vrot.lane.b32.xlu0 %v2227, 112
      %v2337 = vpop.permute.xlu0 %2336
      %2338 = vrot.lane.b32.xlu0 %v2226, 80
      %v2339 = vpop.permute.xlu0 %2338
      %2340 = vrot.lane.b32.xlu0 %v2227, 80
      %v2341 = vpop.permute.xlu0 %2340
      %v2343 = vsel %vm881, %v2335, 0
      %v2346 = vsel %vm881, %v2337, 0
      %v2349 = vsel %vm881, %v2339, 0
      %v2352 = vsel %vm881, %v2341, 0
      %2354 = vmatpush.bf16.xpose.msra.mxu0 0
      %2355 = vmatpush.bf16.xpose.msra.mxu0 0
      %2356 = vmatpush.bf16.xpose.msra.mxu0 0
      %2357 = vmatpush.bf16.xpose.msra.mxu0 0
      %2358 = vmatpush.bf16.xpose.msra.mxu0 0
      %2359 = vmatpush.bf16.xpose.msra.mxu0 0
      %2360 = vmatpush.bf16.xpose.msra.mxu0 %v2352
      %2361 = vmatpush.bf16.xpose.msra.mxu0 %v2349
      %2362 = vmatmul.bf16.gmra.mxu0 %v2343
      %v2363 = vpop.f32.mrf.mxu0
      %v2364 = vadd.f32 0.0, %v2363
      %v2365 = vpop.f32.mrf.mxu0
      %v2366 = vadd.f32 0.0, %v2365
      %2367 = vmatmul.bf16.gmra.mxu0 %v2346
      %v2368 = vpop.f32.mrf.mxu0
      %v2369 = vadd.f32 0.0, %v2368
      %v2370 = vpop.f32.mrf.mxu0
      %2371 = vdwg.mxu0
      %v2372 = vsel %vm912, %v2364, -inf
      %2373 = vmax.xlane.f32.xlu0 %v2372
      %v2374 = vpop.xlane.xlu0 %2373
      %v2375 = vsel %vm912, %v2366, -inf
      %2376 = vmax.xlane.f32.xlu0 %v2375
      %v2377 = vpop.xlane.xlu0 %2376
      %v2378 = vsel %vm919, %v2369, -inf
      %2379 = vmax.xlane.f32.xlu0 %v2378
      %v2380 = vpop.xlane.xlu0 %2379
      %v2381 = vsub.f32 %v2364, %v2374
      %v2382 = vsub.f32 %v2366, %v2377
      %v2383 = vsub.f32 %v2369, %v2380
      %v2384 = vmul.f32 %v2381, 1.442695
      %v2385 = vpow.pop %v2384
      %v2386 = vmul.f32 %v2382, 1.442695
      %v2387 = vpow.pop %v2386
      %v2388 = vmul.f32 %v2383, 1.442695
      %v2389 = vpow.pop %v2388
      %v2390 = vsel %vm912, %v2385, 0.0
      %2391 = vadd.xlane.f32.xlu0 %v2390
      %v2392 = vpop.xlane.xlu0 %2391
      %v2393 = vsel %vm912, %v2387, 0.0
      %2394 = vadd.xlane.f32.xlu0 %v2393
      %v2395 = vpop.xlane.xlu0 %2394
      %v2396 = vsel %vm919, %v2389, 0.0
      %2397 = vadd.xlane.f32.xlu0 %v2396
      %v2398 = vpop.xlane.xlu0 %2397
      %v2399 = vrcp.pop %v2392
      %v2400 = vrcp.pop %v2395
      %v2401 = vrcp.pop %v2398
      %v2402 = vmul.f32 %v2385, %v2399
      %v2403 = vmul.f32 %v2387, %v2400
      %v2404 = vmul.f32 %v2389, %v2401
      %v2405 = vpack.c.bf16 %v2403, %v2402
      %v2406 = vpack.c.bf16 %v2404, %v2404
      %2407 = vrot.lane.b32.xlu0 %v2226, 48
      %v2408 = vpop.permute.xlu0 %2407
      %2409 = vrot.lane.b32.xlu0 %v2227, 48
      %v2410 = vpop.permute.xlu0 %2409
      %v2413 = vsel %vm912, %v2405, 0
      %v2416 = vsel %vm912, %v2406, 0
      %v2419 = vand.u32 %v2410, %v963
      %2421 = vmatpush.bf16.msra.mxu0 0
      %2422 = vmatpush.bf16.msra.mxu0 0
      %2423 = vmatpush.bf16.msra.mxu0 0
      %2424 = vmatpush.bf16.msra.mxu0 0
      %2425 = vmatpush.bf16.msra.mxu0 0
      %2426 = vmatpush.bf16.msra.mxu0 0
      %2427 = vmatpush.bf16.msra.mxu0 %v2419
      %2428 = vmatpush.bf16.msra.mxu0 %v2408
      %2429 = vmatmul.bf16.gmra.mxu0 %v2413
      %v2430 = vpop.f32.mrf.mxu0
      %v2431 = vadd.f32 0.0, %v2430
      %v2432 = vpop.f32.mrf.mxu0
      %v2433 = vadd.f32 0.0, %v2432
      %2434 = vmatmul.bf16.gmra.mxu0 %v2416
      %v2435 = vpop.f32.mrf.mxu0
      %v2436 = vadd.f32 0.0, %v2435
      %v2437 = vpop.f32.mrf.mxu0
      %2438 = vdwg.mxu0
      %2442 = vrot.lane.b32.xlu0 %v2431, 16
      %v2443 = vpop.permute.xlu0 %2442
      %2444 = vrot.lane.b32.xlu0 %v2433, 16
      %v2445 = vpop.permute.xlu0 %2444
      %2446 = vrot.lane.b32.xlu0 %v2436, 16
      %v2447 = vpop.permute.xlu0 %2446
      %2451 = vst.msk [vmem:[#allocation3] sm:$0xff] %vm1106, %v2443
      %2452 = vst.msk [vmem:[#allocation3 + $0x8] sm:$0xff] %vm1106, %v2445
      %2453 = vst.msk [vmem:[#allocation3 + $0x10] sm:$0x1f] %vm1109, %v2447
      %2455 = vrot.lane.b32.xlu0 %v2189, 32
      %v2456 = vpop.permute.xlu0 %2455
      %v2458 = vadd.f32 %v2068, %v2456
      %v2459 = vadd.f32 %v2069, %v2456
      %v2460 = vadd.f32 %v2070, %v2456
      %v2461 = vld [vmem:[#allocation3] sm:$0xff]
      %v2462 = vld [vmem:[#allocation3 + $0x8] sm:$0xff]
      %v2463 = vld [vmem:[#allocation3 + $0x10] sm:$0x1f]
      %v2464 = vpack.c.bf16 %v2462, %v2461
      %v2465 = vpack.c.bf16 %v2463, %v2463
      %s2466 = scalar_lea.vmem %s4, 32
      %v2467 = vld [vmem:[%s2466] sm:$0xf]
      %v2468 = vld [vmem:[%s2466 + $0x4] sm:$0xf]
      %v2469 = vld [vmem:[%s2466 + $0x8] sm:$0xf]
      %v2470 = vld [vmem:[%s2466 + $0xc] sm:$0xf]
      %v2475 = vunpack.c.l.b16 %v2467
      %v2476 = vunpack.c.l.b16 %v2468
      %v2477 = vunpack.c.l.b16 %v2469
      %v2478 = vunpack.c.l.b16 %v2470
      %v2479 = vpack.c.b16 %v2476, %v2475
      %v2480 = vpack.c.b16 %v2478, %v2477
      %v2484 = vsel %vm733, %v2464, 0
      %v2487 = vsel %vm733, %v2465, 0
      %2489 = vmatpush.bf16.msra.mxu0 0
      %2490 = vmatpush.bf16.msra.mxu0 0
      %2491 = vmatpush.bf16.msra.mxu0 0
      %2492 = vmatpush.bf16.msra.mxu0 0
      %2493 = vmatpush.bf16.msra.mxu0 0
      %2494 = vmatpush.bf16.msra.mxu0 0
      %2495 = vmatpush.bf16.msra.mxu0 %v2480
      %2496 = vmatpush.bf16.msra.mxu0 %v2479
      %2497 = vmatmul.bf16.gmra.mxu0 %v2484
      %v2498 = vpop.f32.mrf.mxu0
      %v2499 = vadd.f32 0.0, %v2498
      %v2500 = vpop.f32.mrf.mxu0
      %v2501 = vadd.f32 0.0, %v2500
      %2502 = vmatmul.bf16.gmra.mxu0 %v2487
      %v2503 = vpop.f32.mrf.mxu0
      %v2504 = vadd.f32 0.0, %v2503
      %v2505 = vpop.f32.mrf.mxu0
      %2506 = vdwg.mxu0
      %v2507 = vadd.f32 %v2458, %v2499
      %v2508 = vadd.f32 %v2459, %v2501
      %v2509 = vadd.f32 %v2460, %v2504
      %v2510 = vsel %vm733, %v2507, 0.0
      %2511 = vadd.xlane.f32.xlu0 %v2510
      %v2512 = vpop.xlane.xlu0 %2511
      %v2513 = vsel %vm733, %v2508, 0.0
      %2514 = vadd.xlane.f32.xlu0 %v2513
      %v2515 = vpop.xlane.xlu0 %2514
      %v2516 = vsel %vm737, %v2509, 0.0
      %2517 = vadd.xlane.f32.xlu0 %v2516
      %v2518 = vpop.xlane.xlu0 %2517
      %v2519 = vmul.f32 %v2512, %v761
      %v2520 = vmul.f32 %v2515, %v761
      %v2521 = vmul.f32 %v2518, %v761
      %v2522 = vsub.f32 %v2507, %v2519
      %v2523 = vsub.f32 %v2508, %v2520
      %v2524 = vsub.f32 %v2509, %v2521
      %v2525 = vmul.f32 %v2522, %v2522
      %v2526 = vmul.f32 %v2523, %v2523
      %v2527 = vmul.f32 %v2524, %v2524
      %v2528 = vsel %vm733, %v2525, 0.0
      %2529 = vadd.xlane.f32.xlu0 %v2528
      %v2530 = vpop.xlane.xlu0 %2529
      %v2531 = vsel %vm733, %v2526, 0.0
      %2532 = vadd.xlane.f32.xlu0 %v2531
      %v2533 = vpop.xlane.xlu0 %2532
      %v2534 = vsel %vm737, %v2527, 0.0
      %2535 = vadd.xlane.f32.xlu0 %v2534
      %v2536 = vpop.xlane.xlu0 %2535
      %v2537 = vmul.f32 %v2530, %v761
      %v2538 = vmul.f32 %v2533, %v761
      %v2539 = vmul.f32 %v2536, %v761
      %v2540 = vadd.f32 %v2537, 1e-06
      %v2541 = vadd.f32 %v2538, 1e-06
      %v2542 = vadd.f32 %v2539, 1e-06
      %v2543 = vrsqrt.pop %v2540
      %v2544 = vmul.f32 %v2543, %v2540
      %v2545 = vmul.f32 %v2544, %v2543
      %v2546 = vmul.f32 0.5, %v2545
      %v2547 = vsub.f32 1.5, %v2546
      %v2548 = vmul.f32 %v2543, %v2547
      %vm2549 = vweird.f32 %v2540
      %vm2550 = vweird.f32 %v2543
      %vm2551 = vmor %vm2549, %vm2550
      %v2552 = vsel %vm2551, %v2543, %v2548
      %v2553 = vrsqrt.pop %v2541
      %v2554 = vmul.f32 %v2553, %v2541
      %v2555 = vmul.f32 %v2554, %v2553
      %v2556 = vmul.f32 0.5, %v2555
      %v2557 = vsub.f32 1.5, %v2556
      %v2558 = vmul.f32 %v2553, %v2557
      %vm2559 = vweird.f32 %v2541
      %vm2560 = vweird.f32 %v2553
      %vm2561 = vmor %vm2559, %vm2560
      %v2562 = vsel %vm2561, %v2553, %v2558
      %v2563 = vrsqrt.pop %v2542
      %v2564 = vmul.f32 %v2563, %v2542
      %v2565 = vmul.f32 %v2564, %v2563
      %v2566 = vmul.f32 0.5, %v2565
      %v2567 = vsub.f32 1.5, %v2566
      %v2568 = vmul.f32 %v2563, %v2567
      %vm2569 = vweird.f32 %v2542
      %vm2570 = vweird.f32 %v2563
      %vm2571 = vmor %vm2569, %vm2570
      %v2572 = vsel %vm2571, %v2563, %v2568
      %v2573 = vmul.f32 %v2522, %v2552
      %v2574 = vmul.f32 %v2523, %v2562
      %v2575 = vmul.f32 %v2524, %v2572
      %2576 = vrot.lane.b32.xlu0 %v2171, 64
      %v2577 = vpop.permute.xlu0 %2576
      %v2579 = vmul.f32 %v2573, %v2577
      %v2580 = vmul.f32 %v2574, %v2577
      %v2581 = vmul.f32 %v2575, %v2577
      %2582 = vrot.lane.b32.xlu0 %v2171, 32
      %v2583 = vpop.permute.xlu0 %2582
      %v2585 = vadd.f32 %v2579, %v2583
      %v2586 = vadd.f32 %v2580, %v2583
      %v2587 = vadd.f32 %v2581, %v2583
      %v2588 = vpack.c.bf16 %v2586, %v2585
      %v2589 = vpack.c.bf16 %v2587, %v2587
      %s2590 = scalar_lea.vmem %s5, 32
      %v2591 = vld [vmem:[%s2590] sm:$0xf]
      %v2592 = vld [vmem:[%s2590 + $0x4] sm:$0xf]
      %v2593 = vld [vmem:[%s2590 + $0x8] sm:$0xf]
      %v2594 = vld [vmem:[%s2590 + $0xc] sm:$0xf]
      %v2595 = vperm.slane %v2169, 0
      %v2600 = vunpack.c.l.b16 %v2591
      %v2601 = vunpack.c.l.b16 %v2592
      %v2602 = vunpack.c.l.b16 %v2593
      %v2603 = vunpack.c.l.b16 %v2594
      %v2604 = vpack.c.b16 %v2601, %v2600
      %v2605 = vpack.c.b16 %v2603, %v2602
      %v2609 = vsel %vm733, %v2588, 0
      %v2612 = vsel %vm733, %v2589, 0
      %2614 = vmatpush.bf16.msra.mxu0 0
      %2615 = vmatpush.bf16.msra.mxu0 0
      %2616 = vmatpush.bf16.msra.mxu0 0
      %2617 = vmatpush.bf16.msra.mxu0 0
      %2618 = vmatpush.bf16.msra.mxu0 0
      %2619 = vmatpush.bf16.msra.mxu0 0
      %2620 = vmatpush.bf16.msra.mxu0 %v2605
      %2621 = vmatpush.bf16.msra.mxu0 %v2604
      %2622 = vmatmul.bf16.gmra.mxu0 %v2609
      %v2623 = vpop.f32.mrf.mxu0
      %v2624 = vadd.f32 %v2595, %v2623
      %v2625 = vpop.f32.mrf.mxu0
      %v2626 = vadd.f32 %v2595, %v2625
      %2627 = vmatmul.bf16.gmra.mxu0 %v2612
      %v2628 = vpop.f32.mrf.mxu0
      %v2629 = vadd.f32 %v2595, %v2628
      %v2630 = vpop.f32.mrf.mxu0
      %2631 = vdwg.mxu0
      %v2632 = vmul.f32 %v2624, 0.5
      %v2633 = vmul.f32 %v2626, 0.5
      %v2634 = vmul.f32 %v2629, 0.5
      %v2635 = vmul.f32 %v2624, %v2624
      %v2636 = vmul.f32 %v2626, %v2626
      %v2637 = vmul.f32 %v2629, %v2629
      %v2638 = vmul.f32 %v2635, %v2624
      %v2639 = vmul.f32 %v2636, %v2626
      %v2640 = vmul.f32 %v2637, %v2629
      %v2641 = vmul.f32 %v2638, 0.044715
      %v2642 = vmul.f32 %v2639, 0.044715
      %v2643 = vmul.f32 %v2640, 0.044715
      %v2644 = vadd.f32 %v2624, %v2641
      %v2645 = vadd.f32 %v2626, %v2642
      %v2646 = vadd.f32 %v2629, %v2643
      %v2647 = vmul.f32 %v2644, 0.7978846
      %v2648 = vmul.f32 %v2645, 0.7978846
      %v2649 = vmul.f32 %v2646, 0.7978846
      %v2650 = vtanh.pop %v2647
      %v2651 = vtanh.pop %v2648
      %v2652 = vtanh.pop %v2649
      %v2653 = vadd.f32 %v2650, 1.0
      %v2654 = vadd.f32 %v2651, 1.0
      %v2655 = vadd.f32 %v2652, 1.0
      %v2656 = vmul.f32 %v2632, %v2653
      %v2657 = vmul.f32 %v2633, %v2654
      %v2658 = vmul.f32 %v2634, %v2655
      %v2659 = vperm.slane %v2170, 0
      %v2660 = vadd.f32 %v2507, %v2659
      %v2661 = vadd.f32 %v2508, %v2659
      %v2662 = vadd.f32 %v2509, %v2659
      %v2663 = vpack.c.bf16 %v2657, %v2656
      %v2664 = vpack.c.bf16 %v2658, %v2658
      %s2665 = scalar_lea.vmem %s6, 128
      %v2666 = vld [vmem:[%s2665] sm:$0xf]
      %v2667 = vld [vmem:[%s2665 + $0x4] sm:$0xf]
      %v2668 = vld [vmem:[%s2665 + $0x8] sm:$0xf]
      %v2669 = vld [vmem:[%s2665 + $0xc] sm:$0xf]
      %v2670 = vld [vmem:[%s2665 + $0x10] sm:$0xf]
      %v2671 = vld [vmem:[%s2665 + $0x14] sm:$0xf]
      %v2672 = vld [vmem:[%s2665 + $0x18] sm:$0xf]
      %v2673 = vld [vmem:[%s2665 + $0x1c] sm:$0xf]
      %v2674 = vld [vmem:[%s2665 + $0x20] sm:$0xf]
      %v2675 = vld [vmem:[%s2665 + $0x24] sm:$0xf]
      %v2676 = vld [vmem:[%s2665 + $0x28] sm:$0xf]
      %v2677 = vld [vmem:[%s2665 + $0x2c] sm:$0xf]
      %v2678 = vld [vmem:[%s2665 + $0x30] sm:$0xf]
      %v2679 = vld [vmem:[%s2665 + $0x34] sm:$0xf]
      %v2680 = vld [vmem:[%s2665 + $0x38] sm:$0xf]
      %v2681 = vld [vmem:[%s2665 + $0x3c] sm:$0xf]
      %v2698 = vunpack.c.l.b16 %v2666
      %v2699 = vunpack.c.l.b16 %v2667
      %v2700 = vunpack.c.l.b16 %v2668
      %v2701 = vunpack.c.l.b16 %v2669
      %v2702 = vunpack.c.l.b16 %v2670
      %v2703 = vunpack.c.l.b16 %v2671
      %v2704 = vunpack.c.l.b16 %v2672
      %v2705 = vunpack.c.l.b16 %v2673
      %v2706 = vunpack.c.l.b16 %v2674
      %v2707 = vunpack.c.l.b16 %v2675
      %v2708 = vunpack.c.l.b16 %v2676
      %v2709 = vunpack.c.l.b16 %v2677
      %v2710 = vunpack.c.l.b16 %v2678
      %v2711 = vunpack.c.l.b16 %v2679
      %v2712 = vunpack.c.l.b16 %v2680
      %v2713 = vunpack.c.l.b16 %v2681
      %v2714 = vpack.c.b16 %v2699, %v2698
      %v2715 = vpack.c.b16 %v2701, %v2700
      %v2716 = vpack.c.b16 %v2703, %v2702
      %v2717 = vpack.c.b16 %v2705, %v2704
      %v2718 = vpack.c.b16 %v2707, %v2706
      %v2719 = vpack.c.b16 %v2709, %v2708
      %v2720 = vpack.c.b16 %v2711, %v2710
      %v2721 = vpack.c.b16 %v2713, %v2712
      %2730 = vmatpush.bf16.msra.mxu0 %v2721
      %2731 = vmatpush.bf16.msra.mxu0 %v2720
      %2732 = vmatpush.bf16.msra.mxu0 %v2719
      %2733 = vmatpush.bf16.msra.mxu0 %v2718
      %2734 = vmatpush.bf16.msra.mxu0 %v2717
      %2735 = vmatpush.bf16.msra.mxu0 %v2716
      %2736 = vmatpush.bf16.msra.mxu0 %v2715
      %2737 = vmatpush.bf16.msra.mxu0 %v2714
      %2738 = vmatmul.bf16.gmra.mxu0 %v2663
      %v2739 = vpop.f32.mrf.mxu0
      %v2740 = vadd.f32 0.0, %v2739
      %v2741 = vpop.f32.mrf.mxu0
      %v2742 = vadd.f32 0.0, %v2741
      %2743 = vmatmul.bf16.gmra.mxu0 %v2664
      %v2744 = vpop.f32.mrf.mxu0
      %v2745 = vadd.f32 0.0, %v2744
      %v2746 = vpop.f32.mrf.mxu0
      %2747 = vdwg.mxu0
      %v2748 = vadd.f32 %v2660, %v2740
      %v2749 = vadd.f32 %v2661, %v2742
      %v2750 = vadd.f32 %v2662, %v2745
      %v2751 = vsel %vm733, %v2748, 0.0
      %2752 = vadd.xlane.f32.xlu0 %v2751
      %v2753 = vpop.xlane.xlu0 %2752
      %v2754 = vsel %vm733, %v2749, 0.0
      %2755 = vadd.xlane.f32.xlu0 %v2754
      %v2756 = vpop.xlane.xlu0 %2755
      %v2757 = vsel %vm737, %v2750, 0.0
      %2758 = vadd.xlane.f32.xlu0 %v2757
      %v2759 = vpop.xlane.xlu0 %2758
      %v2760 = vmul.f32 %v2753, %v761
      %v2761 = vmul.f32 %v2756, %v761
      %v2762 = vmul.f32 %v2759, %v761
      %v2763 = vsub.f32 %v2748, %v2760
      %v2764 = vsub.f32 %v2749, %v2761
      %v2765 = vsub.f32 %v2750, %v2762
      %v2766 = vmul.f32 %v2763, %v2763
      %v2767 = vmul.f32 %v2764, %v2764
      %v2768 = vmul.f32 %v2765, %v2765
      %v2769 = vsel %vm733, %v2766, 0.0
      %2770 = vadd.xlane.f32.xlu0 %v2769
      %v2771 = vpop.xlane.xlu0 %2770
      %v2772 = vsel %vm733, %v2767, 0.0
      %2773 = vadd.xlane.f32.xlu0 %v2772
      %v2774 = vpop.xlane.xlu0 %2773
      %v2775 = vsel %vm737, %v2768, 0.0
      %2776 = vadd.xlane.f32.xlu0 %v2775
      %v2777 = vpop.xlane.xlu0 %2776
      %v2778 = vmul.f32 %v2771, %v761
      %v2779 = vmul.f32 %v2774, %v761
      %v2780 = vmul.f32 %v2777, %v761
      %v2781 = vadd.f32 %v2778, 1e-06
      %v2782 = vadd.f32 %v2779, 1e-06
      %v2783 = vadd.f32 %v2780, 1e-06
      %v2784 = vrsqrt.pop %v2781
      %v2785 = vmul.f32 %v2784, %v2781
      %v2786 = vmul.f32 %v2785, %v2784
      %v2787 = vmul.f32 0.5, %v2786
      %v2788 = vsub.f32 1.5, %v2787
      %v2789 = vmul.f32 %v2784, %v2788
      %vm2790 = vweird.f32 %v2781
      %vm2791 = vweird.f32 %v2784
      %vm2792 = vmor %vm2790, %vm2791
      %v2793 = vsel %vm2792, %v2784, %v2789
      %v2794 = vrsqrt.pop %v2782
      %v2795 = vmul.f32 %v2794, %v2782
      %v2796 = vmul.f32 %v2795, %v2794
      %v2797 = vmul.f32 0.5, %v2796
      %v2798 = vsub.f32 1.5, %v2797
      %v2799 = vmul.f32 %v2794, %v2798
      %vm2800 = vweird.f32 %v2782
      %vm2801 = vweird.f32 %v2794
      %vm2802 = vmor %vm2800, %vm2801
      %v2803 = vsel %vm2802, %v2794, %v2799
      %v2804 = vrsqrt.pop %v2783
      %v2805 = vmul.f32 %v2804, %v2783
      %v2806 = vmul.f32 %v2805, %v2804
      %v2807 = vmul.f32 0.5, %v2806
      %v2808 = vsub.f32 1.5, %v2807
      %v2809 = vmul.f32 %v2804, %v2808
      %vm2810 = vweird.f32 %v2783
      %vm2811 = vweird.f32 %v2804
      %vm2812 = vmor %vm2810, %vm2811
      %v2813 = vsel %vm2812, %v2804, %v2809
      %v2814 = vmul.f32 %v2763, %v2793
      %v2815 = vmul.f32 %v2764, %v2803
      %v2816 = vmul.f32 %v2765, %v2813
      %2818 = vrot.lane.b32.xlu0 %v2659, 96
      %v2819 = vpop.permute.xlu0 %2818
      %v2821 = vmul.f32 %v2814, %v2819
      %v2822 = vmul.f32 %v2815, %v2819
      %v2823 = vmul.f32 %v2816, %v2819
      %2824 = vrot.lane.b32.xlu0 %v2659, 64
      %v2825 = vpop.permute.xlu0 %2824
      %v2827 = vadd.f32 %v2821, %v2825
      %v2828 = vadd.f32 %v2822, %v2825
      %v2829 = vadd.f32 %v2823, %v2825
      %2833 = vrot.lane.b32.xlu0 %v2827, 64
      %v2834 = vpop.permute.xlu0 %2833
      %2835 = vrot.lane.b32.xlu0 %v2828, 64
      %v2836 = vpop.permute.xlu0 %2835
      %2837 = vrot.lane.b32.xlu0 %v2829, 64
      %v2838 = vpop.permute.xlu0 %2837
      %vm2842 = vcmask 785920
      %2843 = vst.msk [vmem:[%s305] sm:$0xff] %vm2842, %v2834
      %2844 = vst.msk [vmem:[%s305 + $0x8] sm:$0xff] %vm2842, %v2836
      %vm2845 = vcmask 782848
      %2846 = vst.msk [vmem:[%s305 + $0x10] sm:$0x1f] %vm2845, %v2838
      %v2847 = vld [vmem:[%s7 + $0xc] sm:$0x1]
      %v2848 = vld [vmem:[%s7 + $0xd] sm:$0x1]
      %v2849 = vld [vmem:[%s7 + $0xe] sm:$0x1]
      %v2850 = vld [vmem:[%s7 + $0xf] sm:$0x1]
      %v2851 = vperm.slane %v2847, 0
      %v2852 = vmul.f32 %v2814, %v2851
      %v2853 = vmul.f32 %v2815, %v2851
      %v2854 = vmul.f32 %v2816, %v2851
      %2856 = vrot.lane.b32.xlu0 %v2851, 96
      %v2857 = vpop.permute.xlu0 %2856
      %v2859 = vadd.f32 %v2852, %v2857
      %v2860 = vadd.f32 %v2853, %v2857
      %v2861 = vadd.f32 %v2854, %v2857
      %v2862 = vpack.c.bf16 %v2860, %v2859
      %v2863 = vpack.c.bf16 %v2861, %v2861
      %s2864 = scalar_lea.vmem %s3, 48
      %v2865 = vld [vmem:[%s2864] sm:$0xf]
      %v2866 = vld [vmem:[%s2864 + $0x4] sm:$0xf]
      %v2867 = vld [vmem:[%s2864 + $0x8] sm:$0xf]
      %v2868 = vld [vmem:[%s2864 + $0xc] sm:$0xf]
      %v2869 = vperm.slane %v2848, 0
      %v2874 = vunpack.c.l.b16 %v2865
      %v2875 = vunpack.c.l.b16 %v2866
      %v2876 = vunpack.c.l.b16 %v2867
      %v2877 = vunpack.c.l.b16 %v2868
      %v2878 = vpack.c.b16 %v2875, %v2874
      %v2879 = vpack.c.b16 %v2877, %v2876
      %v2883 = vsel %vm733, %v2862, 0
      %v2886 = vsel %vm733, %v2863, 0
      %2888 = vmatpush.bf16.msra.mxu0 0
      %2889 = vmatpush.bf16.msra.mxu0 0
      %2890 = vmatpush.bf16.msra.mxu0 0
      %2891 = vmatpush.bf16.msra.mxu0 0
      %2892 = vmatpush.bf16.msra.mxu0 0
      %2893 = vmatpush.bf16.msra.mxu0 0
      %2894 = vmatpush.bf16.msra.mxu0 %v2879
      %2895 = vmatpush.bf16.msra.mxu0 %v2878
      %2896 = vmatmul.bf16.gmra.mxu0 %v2883
      %v2897 = vpop.f32.mrf.mxu0
      %v2898 = vadd.f32 %v2869, %v2897
      %v2899 = vpop.f32.mrf.mxu0
      %v2900 = vadd.f32 %v2869, %v2899
      %2901 = vmatmul.bf16.gmra.mxu0 %v2886
      %v2902 = vpop.f32.mrf.mxu0
      %v2903 = vadd.f32 %v2869, %v2902
      %v2904 = vpop.f32.mrf.mxu0
      %2905 = vdwg.mxu0
      %v2906 = vpack.c.bf16 %v2900, %v2898
      %v2907 = vpack.c.bf16 %v2903, %v2903
      %2910 = vrot.lane.b32.xlu0 %v2906, 96
      %v2911 = vpop.permute.xlu0 %2910
      %2912 = vrot.lane.b32.xlu0 %v2907, 96
      %v2913 = vpop.permute.xlu0 %2912
      %v2915 = vsel %vm881, %v2906, 0
      %v2918 = vsel %vm881, %v2907, 0
      %v2921 = vsel %vm881, %v2911, 0
      %v2924 = vsel %vm881, %v2913, 0
      %2926 = vmatpush.bf16.xpose.msra.mxu0 0
      %2927 = vmatpush.bf16.xpose.msra.mxu0 0
      %2928 = vmatpush.bf16.xpose.msra.mxu0 0
      %2929 = vmatpush.bf16.xpose.msra.mxu0 0
      %2930 = vmatpush.bf16.xpose.msra.mxu0 0
      %2931 = vmatpush.bf16.xpose.msra.mxu0 0
      %2932 = vmatpush.bf16.xpose.msra.mxu0 %v2924
      %2933 = vmatpush.bf16.xpose.msra.mxu0 %v2921
      %2934 = vmatmul.bf16.gmra.mxu0 %v2915
      %v2935 = vpop.f32.mrf.mxu0
      %v2936 = vadd.f32 0.0, %v2935
      %v2937 = vpop.f32.mrf.mxu0
      %v2938 = vadd.f32 0.0, %v2937
      %2939 = vmatmul.bf16.gmra.mxu0 %v2918
      %v2940 = vpop.f32.mrf.mxu0
      %v2941 = vadd.f32 0.0, %v2940
      %v2942 = vpop.f32.mrf.mxu0
      %2943 = vdwg.mxu0
      %v2944 = vsel %vm912, %v2936, -inf
      %2945 = vmax.xlane.f32.xlu0 %v2944
      %v2946 = vpop.xlane.xlu0 %2945
      %v2947 = vsel %vm912, %v2938, -inf
      %2948 = vmax.xlane.f32.xlu0 %v2947
      %v2949 = vpop.xlane.xlu0 %2948
      %v2950 = vsel %vm919, %v2941, -inf
      %2951 = vmax.xlane.f32.xlu0 %v2950
      %v2952 = vpop.xlane.xlu0 %2951
      %v2953 = vsub.f32 %v2936, %v2946
      %v2954 = vsub.f32 %v2938, %v2949
      %v2955 = vsub.f32 %v2941, %v2952
      %v2956 = vmul.f32 %v2953, 1.442695
      %v2957 = vpow.pop %v2956
      %v2958 = vmul.f32 %v2954, 1.442695
      %v2959 = vpow.pop %v2958
      %v2960 = vmul.f32 %v2955, 1.442695
      %v2961 = vpow.pop %v2960
      %v2962 = vsel %vm912, %v2957, 0.0
      %2963 = vadd.xlane.f32.xlu0 %v2962
      %v2964 = vpop.xlane.xlu0 %2963
      %v2965 = vsel %vm912, %v2959, 0.0
      %2966 = vadd.xlane.f32.xlu0 %v2965
      %v2967 = vpop.xlane.xlu0 %2966
      %v2968 = vsel %vm919, %v2961, 0.0
      %2969 = vadd.xlane.f32.xlu0 %v2968
      %v2970 = vpop.xlane.xlu0 %2969
      %v2971 = vrcp.pop %v2964
      %v2972 = vrcp.pop %v2967
      %v2973 = vrcp.pop %v2970
      %v2974 = vmul.f32 %v2957, %v2971
      %v2975 = vmul.f32 %v2959, %v2972
      %v2976 = vmul.f32 %v2961, %v2973
      %v2977 = vpack.c.bf16 %v2975, %v2974
      %v2978 = vpack.c.bf16 %v2976, %v2976
      %2979 = vrot.lane.b32.xlu0 %v2906, 64
      %v2980 = vpop.permute.xlu0 %2979
      %2981 = vrot.lane.b32.xlu0 %v2907, 64
      %v2982 = vpop.permute.xlu0 %2981
      %v2985 = vsel %vm912, %v2977, 0
      %v2988 = vsel %vm912, %v2978, 0
      %v2991 = vand.u32 %v2982, %v963
      %2993 = vmatpush.bf16.msra.mxu0 0
      %2994 = vmatpush.bf16.msra.mxu0 0
      %2995 = vmatpush.bf16.msra.mxu0 0
      %2996 = vmatpush.bf16.msra.mxu0 0
      %2997 = vmatpush.bf16.msra.mxu0 0
      %2998 = vmatpush.bf16.msra.mxu0 0
      %2999 = vmatpush.bf16.msra.mxu0 %v2991
      %3000 = vmatpush.bf16.msra.mxu0 %v2980
      %3001 = vmatmul.bf16.gmra.mxu0 %v2985
      %v3002 = vpop.f32.mrf.mxu0
      %v3003 = vadd.f32 0.0, %v3002
      %v3004 = vpop.f32.mrf.mxu0
      %v3005 = vadd.f32 0.0, %v3004
      %3006 = vmatmul.bf16.gmra.mxu0 %v2988
      %v3007 = vpop.f32.mrf.mxu0
      %v3008 = vadd.f32 0.0, %v3007
      %v3009 = vpop.f32.mrf.mxu0
      %3010 = vdwg.mxu0
      %3011 = vst.msk [vmem:[#allocation3] sm:$0xff] %vm881, %v3003
      %3012 = vst.msk [vmem:[#allocation3 + $0x8] sm:$0xff] %vm881, %v3005
      %3013 = vst.msk [vmem:[#allocation3 + $0x10] sm:$0x1f] %vm987, %v3008
      %3014 = vrot.lane.b32.xlu0 %v2906, 112
      %v3015 = vpop.permute.xlu0 %3014
      %3016 = vrot.lane.b32.xlu0 %v2907, 112
      %v3017 = vpop.permute.xlu0 %3016
      %3018 = vrot.lane.b32.xlu0 %v2906, 80
      %v3019 = vpop.permute.xlu0 %3018
      %3020 = vrot.lane.b32.xlu0 %v2907, 80
      %v3021 = vpop.permute.xlu0 %3020
      %v3023 = vsel %vm881, %v3015, 0
      %v3026 = vsel %vm881, %v3017, 0
      %v3029 = vsel %vm881, %v3019, 0
      %v3032 = vsel %vm881, %v3021, 0
      %3034 = vmatpush.bf16.xpose.msra.mxu0 0
      %3035 = vmatpush.bf16.xpose.msra.mxu0 0
      %3036 = vmatpush.bf16.xpose.msra.mxu0 0
      %3037 = vmatpush.bf16.xpose.msra.mxu0 0
      %3038 = vmatpush.bf16.xpose.msra.mxu0 0
      %3039 = vmatpush.bf16.xpose.msra.mxu0 0
      %3040 = vmatpush.bf16.xpose.msra.mxu0 %v3032
      %3041 = vmatpush.bf16.xpose.msra.mxu0 %v3029
      %3042 = vmatmul.bf16.gmra.mxu0 %v3023
      %v3043 = vpop.f32.mrf.mxu0
      %v3044 = vadd.f32 0.0, %v3043
      %v3045 = vpop.f32.mrf.mxu0
      %v3046 = vadd.f32 0.0, %v3045
      %3047 = vmatmul.bf16.gmra.mxu0 %v3026
      %v3048 = vpop.f32.mrf.mxu0
      %v3049 = vadd.f32 0.0, %v3048
      %v3050 = vpop.f32.mrf.mxu0
      %3051 = vdwg.mxu0
      %v3052 = vsel %vm912, %v3044, -inf
      %3053 = vmax.xlane.f32.xlu0 %v3052
      %v3054 = vpop.xlane.xlu0 %3053
      %v3055 = vsel %vm912, %v3046, -inf
      %3056 = vmax.xlane.f32.xlu0 %v3055
      %v3057 = vpop.xlane.xlu0 %3056
      %v3058 = vsel %vm919, %v3049, -inf
      %3059 = vmax.xlane.f32.xlu0 %v3058
      %v3060 = vpop.xlane.xlu0 %3059
      %v3061 = vsub.f32 %v3044, %v3054
      %v3062 = vsub.f32 %v3046, %v3057
      %v3063 = vsub.f32 %v3049, %v3060
      %v3064 = vmul.f32 %v3061, 1.442695
      %v3065 = vpow.pop %v3064
      %v3066 = vmul.f32 %v3062, 1.442695
      %v3067 = vpow.pop %v3066
      %v3068 = vmul.f32 %v3063, 1.442695
      %v3069 = vpow.pop %v3068
      %v3070 = vsel %vm912, %v3065, 0.0
      %3071 = vadd.xlane.f32.xlu0 %v3070
      %v3072 = vpop.xlane.xlu0 %3071
      %v3073 = vsel %vm912, %v3067, 0.0
      %3074 = vadd.xlane.f32.xlu0 %v3073
      %v3075 = vpop.xlane.xlu0 %3074
      %v3076 = vsel %vm919, %v3069, 0.0
      %3077 = vadd.xlane.f32.xlu0 %v3076
      %v3078 = vpop.xlane.xlu0 %3077
      %v3079 = vrcp.pop %v3072
      %v3080 = vrcp.pop %v3075
      %v3081 = vrcp.pop %v3078
      %v3082 = vmul.f32 %v3065, %v3079
      %v3083 = vmul.f32 %v3067, %v3080
      %v3084 = vmul.f32 %v3069, %v3081
      %v3085 = vpack.c.bf16 %v3083, %v3082
      %v3086 = vpack.c.bf16 %v3084, %v3084
      %3087 = vrot.lane.b32.xlu0 %v2906, 48
      %v3088 = vpop.permute.xlu0 %3087
      %3089 = vrot.lane.b32.xlu0 %v2907, 48
      %v3090 = vpop.permute.xlu0 %3089
      %v3093 = vsel %vm912, %v3085, 0
      %v3096 = vsel %vm912, %v3086, 0
      %v3099 = vand.u32 %v3090, %v963
      %3101 = vmatpush.bf16.msra.mxu0 0
      %3102 = vmatpush.bf16.msra.mxu0 0
      %3103 = vmatpush.bf16.msra.mxu0 0
      %3104 = vmatpush.bf16.msra.mxu0 0
      %3105 = vmatpush.bf16.msra.mxu0 0
      %3106 = vmatpush.bf16.msra.mxu0 0
      %3107 = vmatpush.bf16.msra.mxu0 %v3099
      %3108 = vmatpush.bf16.msra.mxu0 %v3088
      %3109 = vmatmul.bf16.gmra.mxu0 %v3093
      %v3110 = vpop.f32.mrf.mxu0
      %v3111 = vadd.f32 0.0, %v3110
      %v3112 = vpop.f32.mrf.mxu0
      %v3113 = vadd.f32 0.0, %v3112
      %3114 = vmatmul.bf16.gmra.mxu0 %v3096
      %v3115 = vpop.f32.mrf.mxu0
      %v3116 = vadd.f32 0.0, %v3115
      %v3117 = vpop.f32.mrf.mxu0
      %3118 = vdwg.mxu0
      %3122 = vrot.lane.b32.xlu0 %v3111, 16
      %v3123 = vpop.permute.xlu0 %3122
      %3124 = vrot.lane.b32.xlu0 %v3113, 16
      %v3125 = vpop.permute.xlu0 %3124
      %3126 = vrot.lane.b32.xlu0 %v3116, 16
      %v3127 = vpop.permute.xlu0 %3126
      %3131 = vst.msk [vmem:[#allocation3] sm:$0xff] %vm1106, %v3123
      %3132 = vst.msk [vmem:[#allocation3 + $0x8] sm:$0xff] %vm1106, %v3125
      %3133 = vst.msk [vmem:[#allocation3 + $0x10] sm:$0x1f] %vm1109, %v3127
      %3135 = vrot.lane.b32.xlu0 %v2869, 32
      %v3136 = vpop.permute.xlu0 %3135
      %v3138 = vadd.f32 %v2748, %v3136
      %v3139 = vadd.f32 %v2749, %v3136
      %v3140 = vadd.f32 %v2750, %v3136
      %v3141 = vld [vmem:[#allocation3] sm:$0xff]
      %v3142 = vld [vmem:[#allocation3 + $0x8] sm:$0xff]
      %v3143 = vld [vmem:[#allocation3 + $0x10] sm:$0x1f]
      %v3144 = vpack.c.bf16 %v3142, %v3141
      %v3145 = vpack.c.bf16 %v3143, %v3143
      %s3146 = scalar_lea.vmem %s4, 48
      %v3147 = vld [vmem:[%s3146] sm:$0xf]
      %v3148 = vld [vmem:[%s3146 + $0x4] sm:$0xf]
      %v3149 = vld [vmem:[%s3146 + $0x8] sm:$0xf]
      %v3150 = vld [vmem:[%s3146 + $0xc] sm:$0xf]
      %v3155 = vunpack.c.l.b16 %v3147
      %v3156 = vunpack.c.l.b16 %v3148
      %v3157 = vunpack.c.l.b16 %v3149
      %v3158 = vunpack.c.l.b16 %v3150
      %v3159 = vpack.c.b16 %v3156, %v3155
      %v3160 = vpack.c.b16 %v3158, %v3157
      %v3164 = vsel %vm733, %v3144, 0
      %v3167 = vsel %vm733, %v3145, 0
      %3169 = vmatpush.bf16.msra.mxu0 0
      %3170 = vmatpush.bf16.msra.mxu0 0
      %3171 = vmatpush.bf16.msra.mxu0 0
      %3172 = vmatpush.bf16.msra.mxu0 0
      %3173 = vmatpush.bf16.msra.mxu0 0
      %3174 = vmatpush.bf16.msra.mxu0 0
      %3175 = vmatpush.bf16.msra.mxu0 %v3160
      %3176 = vmatpush.bf16.msra.mxu0 %v3159
      %3177 = vmatmul.bf16.gmra.mxu0 %v3164
      %v3178 = vpop.f32.mrf.mxu0
      %v3179 = vadd.f32 0.0, %v3178
      %v3180 = vpop.f32.mrf.mxu0
      %v3181 = vadd.f32 0.0, %v3180
      %3182 = vmatmul.bf16.gmra.mxu0 %v3167
      %v3183 = vpop.f32.mrf.mxu0
      %v3184 = vadd.f32 0.0, %v3183
      %v3185 = vpop.f32.mrf.mxu0
      %3186 = vdwg.mxu0
      %v3187 = vadd.f32 %v3138, %v3179
      %v3188 = vadd.f32 %v3139, %v3181
      %v3189 = vadd.f32 %v3140, %v3184
      %v3190 = vsel %vm733, %v3187, 0.0
      %3191 = vadd.xlane.f32.xlu0 %v3190
      %v3192 = vpop.xlane.xlu0 %3191
      %v3193 = vsel %vm733, %v3188, 0.0
      %3194 = vadd.xlane.f32.xlu0 %v3193
      %v3195 = vpop.xlane.xlu0 %3194
      %v3196 = vsel %vm737, %v3189, 0.0
      %3197 = vadd.xlane.f32.xlu0 %v3196
      %v3198 = vpop.xlane.xlu0 %3197
      %v3199 = vmul.f32 %v3192, %v761
      %v3200 = vmul.f32 %v3195, %v761
      %v3201 = vmul.f32 %v3198, %v761
      %v3202 = vsub.f32 %v3187, %v3199
      %v3203 = vsub.f32 %v3188, %v3200
      %v3204 = vsub.f32 %v3189, %v3201
      %v3205 = vmul.f32 %v3202, %v3202
      %v3206 = vmul.f32 %v3203, %v3203
      %v3207 = vmul.f32 %v3204, %v3204
      %v3208 = vsel %vm733, %v3205, 0.0
      %3209 = vadd.xlane.f32.xlu0 %v3208
      %v3210 = vpop.xlane.xlu0 %3209
      %v3211 = vsel %vm733, %v3206, 0.0
      %3212 = vadd.xlane.f32.xlu0 %v3211
      %v3213 = vpop.xlane.xlu0 %3212
      %v3214 = vsel %vm737, %v3207, 0.0
      %3215 = vadd.xlane.f32.xlu0 %v3214
      %v3216 = vpop.xlane.xlu0 %3215
      %v3217 = vmul.f32 %v3210, %v761
      %v3218 = vmul.f32 %v3213, %v761
      %v3219 = vmul.f32 %v3216, %v761
      %v3220 = vadd.f32 %v3217, 1e-06
      %v3221 = vadd.f32 %v3218, 1e-06
      %v3222 = vadd.f32 %v3219, 1e-06
      %v3223 = vrsqrt.pop %v3220
      %v3224 = vmul.f32 %v3223, %v3220
      %v3225 = vmul.f32 %v3224, %v3223
      %v3226 = vmul.f32 0.5, %v3225
      %v3227 = vsub.f32 1.5, %v3226
      %v3228 = vmul.f32 %v3223, %v3227
      %vm3229 = vweird.f32 %v3220
      %vm3230 = vweird.f32 %v3223
      %vm3231 = vmor %vm3229, %vm3230
      %v3232 = vsel %vm3231, %v3223, %v3228
      %v3233 = vrsqrt.pop %v3221
      %v3234 = vmul.f32 %v3233, %v3221
      %v3235 = vmul.f32 %v3234, %v3233
      %v3236 = vmul.f32 0.5, %v3235
      %v3237 = vsub.f32 1.5, %v3236
      %v3238 = vmul.f32 %v3233, %v3237
      %vm3239 = vweird.f32 %v3221
      %vm3240 = vweird.f32 %v3233
      %vm3241 = vmor %vm3239, %vm3240
      %v3242 = vsel %vm3241, %v3233, %v3238
      %v3243 = vrsqrt.pop %v3222
      %v3244 = vmul.f32 %v3243, %v3222
      %v3245 = vmul.f32 %v3244, %v3243
      %v3246 = vmul.f32 0.5, %v3245
      %v3247 = vsub.f32 1.5, %v3246
      %v3248 = vmul.f32 %v3243, %v3247
      %vm3249 = vweird.f32 %v3222
      %vm3250 = vweird.f32 %v3243
      %vm3251 = vmor %vm3249, %vm3250
      %v3252 = vsel %vm3251, %v3243, %v3248
      %v3253 = vmul.f32 %v3202, %v3232
      %v3254 = vmul.f32 %v3203, %v3242
      %v3255 = vmul.f32 %v3204, %v3252
      %3256 = vrot.lane.b32.xlu0 %v2851, 64
      %v3257 = vpop.permute.xlu0 %3256
      %v3259 = vmul.f32 %v3253, %v3257
      %v3260 = vmul.f32 %v3254, %v3257
      %v3261 = vmul.f32 %v3255, %v3257
      %3262 = vrot.lane.b32.xlu0 %v2851, 32
      %v3263 = vpop.permute.xlu0 %3262
      %v3265 = vadd.f32 %v3259, %v3263
      %v3266 = vadd.f32 %v3260, %v3263
      %v3267 = vadd.f32 %v3261, %v3263
      %v3268 = vpack.c.bf16 %v3266, %v3265
      %v3269 = vpack.c.bf16 %v3267, %v3267
      %s3270 = scalar_lea.vmem %s5, 48
      %v3271 = vld [vmem:[%s3270] sm:$0xf]
      %v3272 = vld [vmem:[%s3270 + $0x4] sm:$0xf]
      %v3273 = vld [vmem:[%s3270 + $0x8] sm:$0xf]
      %v3274 = vld [vmem:[%s3270 + $0xc] sm:$0xf]
      %v3275 = vperm.slane %v2849, 0
      %v3280 = vunpack.c.l.b16 %v3271
      %v3281 = vunpack.c.l.b16 %v3272
      %v3282 = vunpack.c.l.b16 %v3273
      %v3283 = vunpack.c.l.b16 %v3274
      %v3284 = vpack.c.b16 %v3281, %v3280
      %v3285 = vpack.c.b16 %v3283, %v3282
      %v3289 = vsel %vm733, %v3268, 0
      %v3292 = vsel %vm733, %v3269, 0
      %3294 = vmatpush.bf16.msra.mxu0 0
      %3295 = vmatpush.bf16.msra.mxu0 0
      %3296 = vmatpush.bf16.msra.mxu0 0
      %3297 = vmatpush.bf16.msra.mxu0 0
      %3298 = vmatpush.bf16.msra.mxu0 0
      %3299 = vmatpush.bf16.msra.mxu0 0
      %3300 = vmatpush.bf16.msra.mxu0 %v3285
      %3301 = vmatpush.bf16.msra.mxu0 %v3284
      %3302 = vmatmul.bf16.gmra.mxu0 %v3289
      %v3303 = vpop.f32.mrf.mxu0
      %v3304 = vadd.f32 %v3275, %v3303
      %v3305 = vpop.f32.mrf.mxu0
      %v3306 = vadd.f32 %v3275, %v3305
      %3307 = vmatmul.bf16.gmra.mxu0 %v3292
      %v3308 = vpop.f32.mrf.mxu0
      %v3309 = vadd.f32 %v3275, %v3308
      %v3310 = vpop.f32.mrf.mxu0
      %3311 = vdwg.mxu0
      %v3312 = vmul.f32 %v3304, 0.5
      %v3313 = vmul.f32 %v3306, 0.5
      %v3314 = vmul.f32 %v3309, 0.5
      %v3315 = vmul.f32 %v3304, %v3304
      %v3316 = vmul.f32 %v3306, %v3306
      %v3317 = vmul.f32 %v3309, %v3309
      %v3318 = vmul.f32 %v3315, %v3304
      %v3319 = vmul.f32 %v3316, %v3306
      %v3320 = vmul.f32 %v3317, %v3309
      %v3321 = vmul.f32 %v3318, 0.044715
      %v3322 = vmul.f32 %v3319, 0.044715
      %v3323 = vmul.f32 %v3320, 0.044715
      %v3324 = vadd.f32 %v3304, %v3321
      %v3325 = vadd.f32 %v3306, %v3322
      %v3326 = vadd.f32 %v3309, %v3323
      %v3327 = vmul.f32 %v3324, 0.7978846
      %v3328 = vmul.f32 %v3325, 0.7978846
      %v3329 = vmul.f32 %v3326, 0.7978846
      %v3330 = vtanh.pop %v3327
      %v3331 = vtanh.pop %v3328
      %v3332 = vtanh.pop %v3329
      %v3333 = vadd.f32 %v3330, 1.0
      %v3334 = vadd.f32 %v3331, 1.0
      %v3335 = vadd.f32 %v3332, 1.0
      %v3336 = vmul.f32 %v3312, %v3333
      %v3337 = vmul.f32 %v3313, %v3334
      %v3338 = vmul.f32 %v3314, %v3335
      %v3339 = vperm.slane %v2850, 0
      %v3340 = vadd.f32 %v3187, %v3339
      %v3341 = vadd.f32 %v3188, %v3339
      %v3342 = vadd.f32 %v3189, %v3339
      %v3343 = vpack.c.bf16 %v3337, %v3336
      %v3344 = vpack.c.bf16 %v3338, %v3338
      %s3345 = scalar_lea.vmem %s6, 192
      %v3346 = vld [vmem:[%s3345] sm:$0xf]
      %v3347 = vld [vmem:[%s3345 + $0x4] sm:$0xf]
      %v3348 = vld [vmem:[%s3345 + $0x8] sm:$0xf]
      %v3349 = vld [vmem:[%s3345 + $0xc] sm:$0xf]
      %v3350 = vld [vmem:[%s3345 + $0x10] sm:$0xf]
      %v3351 = vld [vmem:[%s3345 + $0x14] sm:$0xf]
      %v3352 = vld [vmem:[%s3345 + $0x18] sm:$0xf]
      %v3353 = vld [vmem:[%s3345 + $0x1c] sm:$0xf]
      %v3354 = vld [vmem:[%s3345 + $0x20] sm:$0xf]
      %v3355 = vld [vmem:[%s3345 + $0x24] sm:$0xf]
      %v3356 = vld [vmem:[%s3345 + $0x28] sm:$0xf]
      %v3357 = vld [vmem:[%s3345 + $0x2c] sm:$0xf]
      %v3358 = vld [vmem:[%s3345 + $0x30] sm:$0xf]
      %v3359 = vld [vmem:[%s3345 + $0x34] sm:$0xf]
      %v3360 = vld [vmem:[%s3345 + $0x38] sm:$0xf]
      %v3361 = vld [vmem:[%s3345 + $0x3c] sm:$0xf]
      %v3378 = vunpack.c.l.b16 %v3346
      %v3379 = vunpack.c.l.b16 %v3347
      %v3380 = vunpack.c.l.b16 %v3348
      %v3381 = vunpack.c.l.b16 %v3349
      %v3382 = vunpack.c.l.b16 %v3350
      %v3383 = vunpack.c.l.b16 %v3351
      %v3384 = vunpack.c.l.b16 %v3352
      %v3385 = vunpack.c.l.b16 %v3353
      %v3386 = vunpack.c.l.b16 %v3354
      %v3387 = vunpack.c.l.b16 %v3355
      %v3388 = vunpack.c.l.b16 %v3356
      %v3389 = vunpack.c.l.b16 %v3357
      %v3390 = vunpack.c.l.b16 %v3358
      %v3391 = vunpack.c.l.b16 %v3359
      %v3392 = vunpack.c.l.b16 %v3360
      %v3393 = vunpack.c.l.b16 %v3361
      %v3394 = vpack.c.b16 %v3379, %v3378
      %v3395 = vpack.c.b16 %v3381, %v3380
      %v3396 = vpack.c.b16 %v3383, %v3382
      %v3397 = vpack.c.b16 %v3385, %v3384
      %v3398 = vpack.c.b16 %v3387, %v3386
      %v3399 = vpack.c.b16 %v3389, %v3388
      %v3400 = vpack.c.b16 %v3391, %v3390
      %v3401 = vpack.c.b16 %v3393, %v3392
      %3410 = vmatpush.bf16.msra.mxu0 %v3401
      %3411 = vmatpush.bf16.msra.mxu0 %v3400
      %3412 = vmatpush.bf16.msra.mxu0 %v3399
      %3413 = vmatpush.bf16.msra.mxu0 %v3398
      %3414 = vmatpush.bf16.msra.mxu0 %v3397
      %3415 = vmatpush.bf16.msra.mxu0 %v3396
      %3416 = vmatpush.bf16.msra.mxu0 %v3395
      %3417 = vmatpush.bf16.msra.mxu0 %v3394
      %3418 = vmatmul.bf16.gmra.mxu0 %v3343
      %v3419 = vpop.f32.mrf.mxu0
      %v3420 = vadd.f32 0.0, %v3419
      %v3421 = vpop.f32.mrf.mxu0
      %v3422 = vadd.f32 0.0, %v3421
      %3423 = vmatmul.bf16.gmra.mxu0 %v3344
      %v3424 = vpop.f32.mrf.mxu0
      %v3425 = vadd.f32 0.0, %v3424
      %v3426 = vpop.f32.mrf.mxu0
      %3427 = vdwg.mxu0
      %v3428 = vadd.f32 %v3340, %v3420
      %v3429 = vadd.f32 %v3341, %v3422
      %v3430 = vadd.f32 %v3342, %v3425
      %v3431 = vsel %vm733, %v3428, 0.0
      %3432 = vadd.xlane.f32.xlu0 %v3431
      %v3433 = vpop.xlane.xlu0 %3432
      %v3434 = vsel %vm733, %v3429, 0.0
      %3435 = vadd.xlane.f32.xlu0 %v3434
      %v3436 = vpop.xlane.xlu0 %3435
      %v3437 = vsel %vm737, %v3430, 0.0
      %3438 = vadd.xlane.f32.xlu0 %v3437
      %v3439 = vpop.xlane.xlu0 %3438
      %v3440 = vmul.f32 %v3433, %v761
      %v3441 = vmul.f32 %v3436, %v761
      %v3442 = vmul.f32 %v3439, %v761
      %v3443 = vsub.f32 %v3428, %v3440
      %v3444 = vsub.f32 %v3429, %v3441
      %v3445 = vsub.f32 %v3430, %v3442
      %v3446 = vmul.f32 %v3443, %v3443
      %v3447 = vmul.f32 %v3444, %v3444
      %v3448 = vmul.f32 %v3445, %v3445
      %v3449 = vsel %vm733, %v3446, 0.0
      %3450 = vadd.xlane.f32.xlu0 %v3449
      %v3451 = vpop.xlane.xlu0 %3450
      %v3452 = vsel %vm733, %v3447, 0.0
      %3453 = vadd.xlane.f32.xlu0 %v3452
      %v3454 = vpop.xlane.xlu0 %3453
      %v3455 = vsel %vm737, %v3448, 0.0
      %3456 = vadd.xlane.f32.xlu0 %v3455
      %v3457 = vpop.xlane.xlu0 %3456
      %v3458 = vmul.f32 %v3451, %v761
      %v3459 = vmul.f32 %v3454, %v761
      %v3460 = vmul.f32 %v3457, %v761
      %v3461 = vadd.f32 %v3458, 1e-06
      %v3462 = vadd.f32 %v3459, 1e-06
      %v3463 = vadd.f32 %v3460, 1e-06
      %v3464 = vrsqrt.pop %v3461
      %v3465 = vmul.f32 %v3464, %v3461
      %v3466 = vmul.f32 %v3465, %v3464
      %v3467 = vmul.f32 0.5, %v3466
      %v3468 = vsub.f32 1.5, %v3467
      %v3469 = vmul.f32 %v3464, %v3468
      %vm3470 = vweird.f32 %v3461
      %vm3471 = vweird.f32 %v3464
      %vm3472 = vmor %vm3470, %vm3471
      %v3473 = vsel %vm3472, %v3464, %v3469
      %v3474 = vrsqrt.pop %v3462
      %v3475 = vmul.f32 %v3474, %v3462
      %v3476 = vmul.f32 %v3475, %v3474
      %v3477 = vmul.f32 0.5, %v3476
      %v3478 = vsub.f32 1.5, %v3477
      %v3479 = vmul.f32 %v3474, %v3478
      %vm3480 = vweird.f32 %v3462
      %vm3481 = vweird.f32 %v3474
      %vm3482 = vmor %vm3480, %vm3481
      %v3483 = vsel %vm3482, %v3474, %v3479
      %v3484 = vrsqrt.pop %v3463
      %v3485 = vmul.f32 %v3484, %v3463
      %v3486 = vmul.f32 %v3485, %v3484
      %v3487 = vmul.f32 0.5, %v3486
      %v3488 = vsub.f32 1.5, %v3487
      %v3489 = vmul.f32 %v3484, %v3488
      %vm3490 = vweird.f32 %v3463
      %vm3491 = vweird.f32 %v3484
      %vm3492 = vmor %vm3490, %vm3491
      %v3493 = vsel %vm3492, %v3484, %v3489
      %v3494 = vmul.f32 %v3443, %v3473
      %v3495 = vmul.f32 %v3444, %v3483
      %v3496 = vmul.f32 %v3445, %v3493
      %3498 = vrot.lane.b32.xlu0 %v3339, 96
      %v3499 = vpop.permute.xlu0 %3498
      %v3501 = vmul.f32 %v3494, %v3499
      %v3502 = vmul.f32 %v3495, %v3499
      %v3503 = vmul.f32 %v3496, %v3499
      %3504 = vrot.lane.b32.xlu0 %v3339, 64
      %v3505 = vpop.permute.xlu0 %3504
      %v3507 = vadd.f32 %v3501, %v3505
      %v3508 = vadd.f32 %v3502, %v3505
      %v3509 = vadd.f32 %v3503, %v3505
      %3513 = vrot.lane.b32.xlu0 %v3507, 96
      %v3514 = vpop.permute.xlu0 %3513
      %3515 = vrot.lane.b32.xlu0 %v3508, 96
      %v3516 = vpop.permute.xlu0 %3515
      %3517 = vrot.lane.b32.xlu0 %v3509, 96
      %v3518 = vpop.permute.xlu0 %3517
      %vm3522 = vcmask 1048320
      %3523 = vst.msk [vmem:[%s305] sm:$0xff] %vm3522, %v3514
      %3524 = vst.msk [vmem:[%s305 + $0x8] sm:$0xff] %vm3522, %v3516
      %vm3525 = vcmask 1045248
      %3526 = vst.msk [vmem:[%s305 + $0x10] sm:$0x1f] %vm3525, %v3518
      %p3527 = scmp.lt.s32.totalorder %s19, 1
      %s3528 = scalar_select %p3527, %s19, 1
      %s3529 = smul.addr %s3528, 3
      %s3530 = smul.addr %s3529, 8
      %s3531 = scalar_lea.vmem %s8, %s3530
      // Predicated region
      $region53: #{_lambda_.1} parent=51 // pred_check
        %p3532 = pneg %p210
      $region54: #{_lambda_.1} parent=51 // pred_check_branch
        %3534 = sbr.rel (%p3532) target = $region56
      $region55: #{_lambda_.1} parent=51 // pred_region
        _
      $region56: #{_lambda_.1} parent=51 // pred_fallthru
        _
    $region52: #{_lambda_.1} parent=5 // pred_fallthru
      _
    %p3535 = scmp.le.s32.totalorder 2, %s14
    // Predicated region
    $region57: #{_lambda_.1} parent=5 // pred_check
      %p3536 = pneg %p3535
    $region58: #{_lambda_.1} parent=5 // pred_check_branch
      %3538 = sbr.rel (%p3536) target = $region60
    $region59: #{_lambda_.1} parent=5 // pred_region
      %s3539 = ssub.s32 %s14, 2
      // Predicated region
      $region61: #{_lambda_.1} parent=59 // pred_check
        %p3540 = pneg %p216
      $region62: #{_lambda_.1} parent=59 // pred_check_branch
        %3542 = sbr.rel (%p3540) target = $region64
      $region63: #{_lambda_.1} parent=59 // pred_region
        %p3543 = scmp.lt.s32.totalorder %s20, 1
        %s3544 = scalar_select %p3543, %s20, 1
        %s3545 = smul.addr %s3544, 3
        %s3546 = smul.addr %s3545, 8
        %s3547 = scalar_lea.vmem %s8, %s3546
      $region64: #{_lambda_.1} parent=59 // pred_fallthru
        _
    $region60: #{_lambda_.1} parent=5 // pred_fallthru
      _
  $region6: #{_lambda_.1} parent=0 // loop_footer
    %s18 = sadd.s32 1, %s14
  $region7: #{_lambda_.1} parent=0 // loop_footer_branch
    %13 = sbr.rel target = $region3
  $region8: #{_lambda_.1} parent=0 // loop_exit
    _

</llo_original>
